<compile_context>
chip_gen: v7x
topology: tpu7x:2x2x1
jax: 0.10.0
libtpu: 0.0.40
codegen_flags: <defaults>
</compile_context>

<pallas_src>
import jax
import jax.numpy as jnp
from jax.experimental import pallas as pl
from jax.experimental.pallas import tpu as pltpu


def _round_up(n, m):
    return (n + m - 1) // m * m


def autoenc_kernel(x_ref, wbig_ref, b1_ref, w2_ref, b2_ref,
                   wl1_ref, bl1_ref, wf_ref, bd1_ref,
                   wd2_ref, bd2_ref, wout_ref, out_ref):
    # en_conv1 (k=1, all 3 taps) via the block-structured weight: (T,3C)@(3C,384).
    x = x_ref[...].astype(jnp.bfloat16)                                # cast in VMEM
    h1 = jnp.dot(x, wbig_ref[...], preferred_element_type=jnp.float32) + b1_ref[...]
    h1 = jnp.maximum(h1, 0.0).astype(jnp.bfloat16)                     # (T, 384)

    # en_conv2 (k=3, valid, L=3 -> 1) + ReLU: single (T,384)@(384,64) matmul.
    h2 = jnp.maximum(jnp.dot(h1, w2_ref[...],
                             preferred_element_type=jnp.float32) + b2_ref[...], 0.0)

    # en_lin1 + ReLU
    z = jnp.maximum(jnp.dot(h2.astype(jnp.bfloat16), wl1_ref[...],
                            preferred_element_type=jnp.float32) + bl1_ref[...], 0.0)
    # en_lin2 (no bias) fused with de_lin1: one (32,32) dot + bias + ReLU
    z = jnp.maximum(jnp.dot(z.astype(jnp.bfloat16), wf_ref[...],
                            preferred_element_type=jnp.float32) + bd1_ref[...], 0.0)
    # de_lin2 + ReLU
    z = jnp.maximum(jnp.dot(z.astype(jnp.bfloat16), wd2_ref[...],
                            preferred_element_type=jnp.float32) + bd2_ref[...], 0.0)
    # out_lin (no bias), lane-dense padded columns, bf16 writeback.
    out_ref[...] = jnp.dot(z.astype(jnp.bfloat16), wout_ref[...],
                           preferred_element_type=jnp.float32).astype(out_ref.dtype)


def prepare_kernel_params(p, num_channels, n_axes=3):
    """One-time conversion of the f32 parameters to kernel-ready form:
      * wbig (3C, 384): block-structured conv1 weight -- rows c*3+t map to output
        columns [t*128:(t+1)*128] so the (B,3C) NCL-flattened input needs no transpose.
      * w2flat (384, 64): conv2 taps stacked along K.
      * wfuse = wl2 @ wd1 (exact in f32) fuses en_lin2 into de_lin1.
      * out_lin columns padded to a multiple of 128 (lane-dense stores).
      * matmul weights cast to bf16; biases stay f32."""
    assert n_axes == 3, "en_conv2 has kernel size 3 and the spec uses L == 3"
    C = num_channels
    n_out = C * n_axes
    n_pad = _round_up(n_out, 128)

    wbig = jnp.zeros((n_axes * C, n_axes * 128), jnp.float32)
    for t in range(n_axes):
        wbig = wbig.at[t::n_axes, t * 128:(t + 1) * 128].set(p["w1"])
    b1big = jnp.tile(p["b1"], (1, n_axes))                              # (1, 384)
    w2flat = p["w2"].reshape(n_axes * 128, 64)
    wfuse = jnp.dot(p["wl2"], p["wd1"], preferred_element_type=jnp.float32)  # (32, 32)
    wout = jnp.pad(p["wout"], ((0, 0), (0, n_pad - n_out)))

    bf16 = lambda a: a.astype(jnp.bfloat16)
    return {
        "wbig": bf16(wbig),     "b1big": b1big,
        "w2flat": bf16(w2flat), "b2": p["b2"],
        "wl1": bf16(p["wl1"]),  "bl1": p["bl1"],
        "wfuse": bf16(wfuse),   "bd1": p["bd1"],
        "wd2": bf16(p["wd2"]),  "bd2": p["bd2"],
        "wout": bf16(wout),
    }


def ai85_autoencoder_forward(x_ncl, kp, *, tile_b=None):
    """x_ncl: (B, num_channels, 3) float32 (PyTorch NCL). Returns (B, num_channels, 3)
    bfloat16.  No transpose and no extra cast pass on the input; no post-kernel slice
    pass when 3*C % 128 == 0 and TILE_B divides B."""
    B, C, L = x_ncl.shape
    assert L == 3, "Conv1d(k=3, p=0) followed by view() requires input length 3"
    n_in = 3 * C
    n_out = 3 * C
    n_pad = kp["wout"].shape[1]
    assert n_pad >= n_out and n_pad % 128 == 0

    # Tile choice: aim for >=8 grid steps when B allows (feeds both v7x TCs and lets
    # the BlockSpec pipeline overlap DMA with compute), rows a multiple of 64, capped
    # at 1024 to stay well inside v7x's 64 MiB VMEM even at C=256.
    if tile_b is None:
        tile_b = max(64, min(1024, _round_up(pl.cdiv(B, 8), 64)))
    TILE_B = min(tile_b, _round_up(B, 64))
    B_pad = _round_up(B, TILE_B)

    # FREE reshape (B, C, 3) -> (B, 3C): row = [c0t0, c0t1, c0t2, c1t0, ...].
    # The block-structured conv1 weight absorbs this layout, so no transpose is needed
    # and the kernel reads the f32 rows directly (bf16 cast happens in VMEM).
    x_flat = x_ncl.reshape(B, n_in)
    if B_pad != B:
        # TODO(synk): shrink/mask the last tile instead of padding to avoid up to one
        #             wasted tile of MXU work + writeback for ragged B.
        x_flat = jnp.pad(x_flat, ((0, B_pad - B), (0, 0)))

    def _resident(shape):   # full-array block, same index every step -> stays in VMEM
        nd = len(shape)
        return pl.BlockSpec(shape, lambda i, nd=nd: (0,) * nd)

    args = (x_flat,
            kp["wbig"], kp["b1big"], kp["w2flat"], kp["b2"],
            kp["wl1"], kp["bl1"], kp["wfuse"], kp["bd1"],
            kp["wd2"], kp["bd2"], kp["wout"])
    in_specs = ([pl.BlockSpec((TILE_B, n_in), lambda i: (i, 0))]
                + [_resident(a.shape) for a in args[1:]])

    flops = 2 * B_pad * (n_in * 384 + 384 * 64 + 64 * 32 + 32 * 32 + 32 * 96
                         + 96 * n_pad)
    bytes_accessed = (B_pad * n_in * 4 + B_pad * n_pad * 2
                      + sum(int(a.size) * a.dtype.itemsize for a in args[1:]))

    out = pl.pallas_call(
        autoenc_kernel,
        out_shape=jax.ShapeDtypeStruct((B_pad, n_pad), jnp.bfloat16),
        grid=(B_pad // TILE_B,),
        in_specs=in_specs,
        out_specs=pl.BlockSpec((TILE_B, n_pad), lambda i: (i, 0)),
        compiler_params=pltpu.CompilerParams(dimension_semantics=("parallel",)),
        cost_estimate=pl.CostEstimate(flops=flops, transcendentals=0,
                                      bytes_accessed=bytes_accessed),
    )(*args)

    if B_pad == B and n_pad == n_out:
        return out.reshape(B, C, 3)                 # no extra slice/copy pass
    return out[:B, :n_out].reshape(B, C, 3)


def init_params(key, num_channels, n_axes=3, bottleneck=4):
    """Deterministic kaiming-normal-ish init (fan_out mode), f32, weights stored
    pre-transposed as (in, out) so the kernel does x @ W directly.
    (Checkpoint-conversion hazard: torch Linear (out,in) -> transpose to (in,out);
    torch Conv1d W[o,c,t] -> w1[c,o] (t=0 only) and w2[t][c,o].)"""
    ks = jax.random.split(key, 8)

    def w(k, shape, fan_out):
        return jax.random.normal(k, shape, jnp.float32) * jnp.sqrt(2.0 / fan_out)

    C = num_channels
    return {
        "w1":  w(ks[0], (C, 128), 128 * 1),          # en_conv1 (128,C,1) -> (C,128)
        "b1":  jnp.zeros((1, 128), jnp.float32),
        "w2":  w(ks[1], (3, 128, 64), 64 * 3),       # en_conv2 (64,128,3) -> (3,128,64)
        "b2":  jnp.zeros((1, 64), jnp.float32),
        "wl1": w(ks[2], (64, 32), 32),               # en_lin1
        "bl1": jnp.zeros((1, 32), jnp.float32),
        "wl2": w(ks[3], (32, bottleneck), bottleneck),   # en_lin2 (no bias)
        "wd1": w(ks[4], (bottleneck, 32), 32),       # de_lin1
        "bd1": jnp.zeros((1, 32), jnp.float32),
        "wd2": w(ks[5], (32, 96), 96),               # de_lin2
        "bd2": jnp.zeros((1, 96), jnp.float32),
        "wout": w(ks[6], (96, C * n_axes), C * n_axes),  # out_lin (no bias)
    }


def reference_forward_kernel(x_ncl, kp):
    """Pure-JAX mirror of the kernel's numerics (bf16 matmul operands, f32 accumulation,
    block-structured conv1, fused wl2@wd1, bf16 output)."""
    B, C, _ = x_ncl.shape
    x = x_ncl.reshape(B, 3 * C).astype(jnp.bfloat16)
    h1 = jax.nn.relu(jnp.dot(x, kp["wbig"],
                             preferred_element_type=jnp.float32) + kp["b1big"])
    h2 = jax.nn.relu(jnp.dot(h1.astype(jnp.bfloat16), kp["w2flat"],
                             preferred_element_type=jnp.float32) + kp["b2"])

    def lin(z, w, b, relu=True):
        y = jnp.dot(z.astype(jnp.bfloat16), w, preferred_element_type=jnp.float32)
        if b is not None:
            y = y + b
        return jax.nn.relu(y) if relu else y

    z = lin(h2, kp["wl1"], kp["bl1"])
    z = lin(z, kp["wfuse"], kp["bd1"])
    z = lin(z, kp["wd2"], kp["bd2"])
    out = lin(z, kp["wout"], None, relu=False).astype(jnp.bfloat16)      # (B, n_pad)
    return out[:, :3 * C].reshape(B, C, 3)


def reference_forward_f32(x_ncl, p):
    """Exact f32, unfused reference of the PyTorch float training path."""
    B, C, _ = x_ncl.shape
    h1 = jax.nn.relu(jnp.einsum("bct,co->bot", x_ncl, p["w1"])
                     + p["b1"][0][None, :, None])                        # (B,128,3)
    h2 = jax.nn.relu(jnp.einsum("bkt,tko->bo", h1, p["w2"]) + p["b2"][0])  # (B,64)
    z = jax.nn.relu(h2 @ p["wl1"] + p["bl1"][0])
    z = z @ p["wl2"]                                                     # en_lin2
    z = jax.nn.relu(z @ p["wd1"] + p["bd1"][0])
    z = jax.nn.relu(z @ p["wd2"] + p["bd2"][0])
    out = z @ p["wout"]
    return out.reshape(B, C, 3)


if __name__ == "__main__":
    # C=128 -> 3C = 384 (multiple of 128): lane-dense input & output, no padding, no
    # post-kernel slice.  B=1024 with auto TILE_B=128 -> 8 grid steps (>=4 per v7x TC).
    B = 1024
    NUM_CHANNELS = 128
    N_AXES = 3

    key = jax.random.PRNGKey(0)
    kx, kparam = jax.random.split(key)
    x = jax.random.normal(kx, (B, NUM_CHANNELS, N_AXES), jnp.float32)    # NCL, L=3
    params = init_params(kparam, NUM_CHANNELS, n_axes=N_AXES, bottleneck=4)
    kparams = prepare_kernel_params(params, NUM_CHANNELS, N_AXES)

    out = jax.block_until_ready(ai85_autoencoder_forward(x, kparams))
    assert out.shape == (B, NUM_CHANNELS, N_AXES), out.shape
    assert out.dtype == jnp.bfloat16, out.dtype

    # (1) Tight check vs a pure-JAX mirror of the kernel numerics.
    ref_k = reference_forward_kernel(x, kparams)
    assert jnp.allclose(out.astype(jnp.float32), ref_k.astype(jnp.float32),
                        atol=6e-2, rtol=2e-2), "mismatch vs bf16 kernel-numerics ref"

    # (2) Loose check vs the exact f32 unfused PyTorch-path reference
    #     (bf16 weights/activations + bf16 output -> per-element drift of a few %).
    ref_f32 = reference_forward_f32(x, params)
    err = jnp.max(jnp.abs(out.astype(jnp.float32) - ref_f32))
    scale = jnp.max(jnp.abs(ref_f32)) + 1e-6
    assert float(err / scale) < 1e-1, f"normalized max err {float(err / scale):.4f}"

    print("KERNEL_OK")
</pallas_src>

<mosaic_0001>
module attributes {stable_mosaic.version = 11 : i64} {
  func.func @autoenc_kernel(%arg0: i32, %arg1: memref<128x384xf32, #tpu.memory_space<vmem>>, %arg2: memref<384x384xbf16, #tpu.memory_space<vmem>>, %arg3: memref<1x384xf32, #tpu.memory_space<vmem>>, %arg4: memref<384x64xbf16, #tpu.memory_space<vmem>>, %arg5: memref<1x64xf32, #tpu.memory_space<vmem>>, %arg6: memref<64x32xbf16, #tpu.memory_space<vmem>>, %arg7: memref<1x32xf32, #tpu.memory_space<vmem>>, %arg8: memref<32x32xbf16, #tpu.memory_space<vmem>>, %arg9: memref<1x32xf32, #tpu.memory_space<vmem>>, %arg10: memref<32x96xbf16, #tpu.memory_space<vmem>>, %arg11: memref<1x96xf32, #tpu.memory_space<vmem>>, %arg12: memref<96x384xbf16, #tpu.memory_space<vmem>>, %arg13: memref<128x384xbf16, #tpu.memory_space<vmem>>) attributes {dimension_semantics = [#tpu.dimension_semantics<parallel>], iteration_bounds = array<i64: 8>, scalar_prefetch = 0 : i64, scratch_operands = 0 : i64, tpu.core_type = #tpu.core_type<tc>, window_params = [{transform_indices = @transform_0, window_bounds = array<i64: 128, 384>}, {pipeline_mode = #tpu.pipeline_mode<synchronous>, transform_indices = @transform_1, window_bounds = array<i64: 384, 384>}, {pipeline_mode = #tpu.pipeline_mode<synchronous>, transform_indices = @transform_2, window_bounds = array<i64: 1, 384>}, {pipeline_mode = #tpu.pipeline_mode<synchronous>, transform_indices = @transform_3, window_bounds = array<i64: 384, 64>}, {pipeline_mode = #tpu.pipeline_mode<synchronous>, transform_indices = @transform_4, window_bounds = array<i64: 1, 64>}, {pipeline_mode = #tpu.pipeline_mode<synchronous>, transform_indices = @transform_5, window_bounds = array<i64: 64, 32>}, {pipeline_mode = #tpu.pipeline_mode<synchronous>, transform_indices = @transform_6, window_bounds = array<i64: 1, 32>}, {pipeline_mode = #tpu.pipeline_mode<synchronous>, transform_indices = @transform_7, window_bounds = array<i64: 32, 32>}, {pipeline_mode = #tpu.pipeline_mode<synchronous>, transform_indices = @transform_8, window_bounds = array<i64: 1, 32>}, {pipeline_mode = #tpu.pipeline_mode<synchronous>, transform_indices = @transform_9, window_bounds = array<i64: 32, 96>}, {pipeline_mode = #tpu.pipeline_mode<synchronous>, transform_indices = @transform_10, window_bounds = array<i64: 1, 96>}, {pipeline_mode = #tpu.pipeline_mode<synchronous>, transform_indices = @transform_11, window_bounds = array<i64: 96, 384>}, {transform_indices = @transform_12, window_bounds = array<i64: 128, 384>}]} {
    %c0 = arith.constant 0 : index
    %c0_0 = arith.constant 0 : index
    %0 = vector.load %arg1[%c0, %c0_0] : memref<128x384xf32, #tpu.memory_space<vmem>>, vector<128x384xf32>
    %1 = arith.truncf %0 : vector<128x384xf32> to vector<128x384xbf16>
    %c0_1 = arith.constant 0 : index
    %c0_2 = arith.constant 0 : index
    %2 = vector.load %arg2[%c0_1, %c0_2] : memref<384x384xbf16, #tpu.memory_space<vmem>>, vector<384x384xbf16>
    %cst = arith.constant dense<0.000000e+00> : vector<128x384xf32>
    %3 = tpu.matmul %1, %2, %cst {dimension_numbers = #tpu.dot_dimension_numbers<[1], [0], [0], [1], [0, 0, 1, 1], [], []>} : vector<128x384xbf16>, vector<384x384xbf16>, vector<128x384xf32> -> vector<128x384xf32>
    %c0_3 = arith.constant 0 : index
    %c0_4 = arith.constant 0 : index
    %4 = vector.load %arg3[%c0_3, %c0_4] : memref<1x384xf32, #tpu.memory_space<vmem>>, vector<1x384xf32>
    %5 = vector.broadcast %4 : vector<1x384xf32> to vector<128x384xf32>
    %6 = arith.addf %3, %5 : vector<128x384xf32>
    %cst_5 = arith.constant 0.000000e+00 : f32
    %7 = vector.broadcast %cst_5 : f32 to vector<128x384xf32>
    %8 = arith.maximumf %6, %7 : vector<128x384xf32>
    %9 = arith.truncf %8 : vector<128x384xf32> to vector<128x384xbf16>
    %c0_6 = arith.constant 0 : index
    %c0_7 = arith.constant 0 : index
    %10 = vector.load %arg4[%c0_6, %c0_7] : memref<384x64xbf16, #tpu.memory_space<vmem>>, vector<384x64xbf16>
    %cst_8 = arith.constant dense<0.000000e+00> : vector<128x64xf32>
    %11 = tpu.matmul %9, %10, %cst_8 {dimension_numbers = #tpu.dot_dimension_numbers<[1], [0], [0], [1], [0, 0, 1, 1], [], []>} : vector<128x384xbf16>, vector<384x64xbf16>, vector<128x64xf32> -> vector<128x64xf32>
    %c0_9 = arith.constant 0 : index
    %c0_10 = arith.constant 0 : index
    %12 = vector.load %arg5[%c0_9, %c0_10] : memref<1x64xf32, #tpu.memory_space<vmem>>, vector<1x64xf32>
    %13 = vector.broadcast %12 : vector<1x64xf32> to vector<128x64xf32>
    %14 = arith.addf %11, %13 : vector<128x64xf32>
    %cst_11 = arith.constant 0.000000e+00 : f32
    %15 = vector.broadcast %cst_11 : f32 to vector<128x64xf32>
    %16 = arith.maximumf %14, %15 : vector<128x64xf32>
    %17 = arith.truncf %16 : vector<128x64xf32> to vector<128x64xbf16>
    %c0_12 = arith.constant 0 : index
    %c0_13 = arith.constant 0 : index
    %18 = vector.load %arg6[%c0_12, %c0_13] : memref<64x32xbf16, #tpu.memory_space<vmem>>, vector<64x32xbf16>
    %cst_14 = arith.constant dense<0.000000e+00> : vector<128x32xf32>
    %19 = tpu.matmul %17, %18, %cst_14 {dimension_numbers = #tpu.dot_dimension_numbers<[1], [0], [0], [1], [0, 0, 1, 1], [], []>} : vector<128x64xbf16>, vector<64x32xbf16>, vector<128x32xf32> -> vector<128x32xf32>
    %c0_15 = arith.constant 0 : index
    %c0_16 = arith.constant 0 : index
    %20 = vector.load %arg7[%c0_15, %c0_16] : memref<1x32xf32, #tpu.memory_space<vmem>>, vector<1x32xf32>
    %21 = vector.broadcast %20 : vector<1x32xf32> to vector<128x32xf32>
    %22 = arith.addf %19, %21 : vector<128x32xf32>
    %cst_17 = arith.constant 0.000000e+00 : f32
    %23 = vector.broadcast %cst_17 : f32 to vector<128x32xf32>
    %24 = arith.maximumf %22, %23 : vector<128x32xf32>
    %25 = arith.truncf %24 : vector<128x32xf32> to vector<128x32xbf16>
    %c0_18 = arith.constant 0 : index
    %c0_19 = arith.constant 0 : index
    %26 = vector.load %arg8[%c0_18, %c0_19] : memref<32x32xbf16, #tpu.memory_space<vmem>>, vector<32x32xbf16>
    %cst_20 = arith.constant dense<0.000000e+00> : vector<128x32xf32>
    %27 = tpu.matmul %25, %26, %cst_20 {dimension_numbers = #tpu.dot_dimension_numbers<[1], [0], [0], [1], [0, 0, 1, 1], [], []>} : vector<128x32xbf16>, vector<32x32xbf16>, vector<128x32xf32> -> vector<128x32xf32>
    %c0_21 = arith.constant 0 : index
    %c0_22 = arith.constant 0 : index
    %28 = vector.load %arg9[%c0_21, %c0_22] : memref<1x32xf32, #tpu.memory_space<vmem>>, vector<1x32xf32>
    %29 = vector.broadcast %28 : vector<1x32xf32> to vector<128x32xf32>
    %30 = arith.addf %27, %29 : vector<128x32xf32>
    %cst_23 = arith.constant 0.000000e+00 : f32
    %31 = vector.broadcast %cst_23 : f32 to vector<128x32xf32>
    %32 = arith.maximumf %30, %31 : vector<128x32xf32>
    %33 = arith.truncf %32 : vector<128x32xf32> to vector<128x32xbf16>
    %c0_24 = arith.constant 0 : index
    %c0_25 = arith.constant 0 : index
    %34 = vector.load %arg10[%c0_24, %c0_25] : memref<32x96xbf16, #tpu.memory_space<vmem>>, vector<32x96xbf16>
    %cst_26 = arith.constant dense<0.000000e+00> : vector<128x96xf32>
    %35 = tpu.matmul %33, %34, %cst_26 {dimension_numbers = #tpu.dot_dimension_numbers<[1], [0], [0], [1], [0, 0, 1, 1], [], []>} : vector<128x32xbf16>, vector<32x96xbf16>, vector<128x96xf32> -> vector<128x96xf32>
    %c0_27 = arith.constant 0 : index
    %c0_28 = arith.constant 0 : index
    %36 = vector.load %arg11[%c0_27, %c0_28] : memref<1x96xf32, #tpu.memory_space<vmem>>, vector<1x96xf32>
    %37 = vector.broadcast %36 : vector<1x96xf32> to vector<128x96xf32>
    %38 = arith.addf %35, %37 : vector<128x96xf32>
    %cst_29 = arith.constant 0.000000e+00 : f32
    %39 = vector.broadcast %cst_29 : f32 to vector<128x96xf32>
    %40 = arith.maximumf %38, %39 : vector<128x96xf32>
    %41 = arith.truncf %40 : vector<128x96xf32> to vector<128x96xbf16>
    %c0_30 = arith.constant 0 : index
    %c0_31 = arith.constant 0 : index
    %42 = vector.load %arg12[%c0_30, %c0_31] : memref<96x384xbf16, #tpu.memory_space<vmem>>, vector<96x384xbf16>
    %cst_32 = arith.constant dense<0.000000e+00> : vector<128x384xf32>
    %43 = tpu.matmul %41, %42, %cst_32 {dimension_numbers = #tpu.dot_dimension_numbers<[1], [0], [0], [1], [0, 0, 1, 1], [], []>} : vector<128x96xbf16>, vector<96x384xbf16>, vector<128x384xf32> -> vector<128x384xf32>
    %44 = arith.truncf %43 : vector<128x384xf32> to vector<128x384xbf16>
    %c0_33 = arith.constant 0 : index
    %c0_34 = arith.constant 0 : index
    %45 = vector.load %arg13[%c0_33, %c0_34] : memref<128x384xbf16, #tpu.memory_space<vmem>>, vector<128x384xbf16>
    tpu.vector_store %arg13[%c0_33, %c0_34], %44 {strides = array<i32>} : memref<128x384xbf16, #tpu.memory_space<vmem>>, vector<128x384xbf16>,
    return
  }
  func.func @transform_0(%arg0: i32) -> (i32, i32) {
    %c0_i32 = arith.constant 0 : i32
    %c0_i32_0 = arith.constant 0 : i32
    return %arg0, %c0_i32 : i32, i32
  }
  func.func @transform_1(%arg0: i32) -> (i32, i32) {
    %c0_i32 = arith.constant 0 : i32
    %c0_i32_0 = arith.constant 0 : i32
    %c0_i32_1 = arith.constant 0 : i32
    return %c0_i32, %c0_i32_0 : i32, i32
  }
  func.func @transform_2(%arg0: i32) -> (i32, i32) {
    %c0_i32 = arith.constant 0 : i32
    %c0_i32_0 = arith.constant 0 : i32
    %c0_i32_1 = arith.constant 0 : i32
    return %c0_i32, %c0_i32_0 : i32, i32
  }
  func.func @transform_3(%arg0: i32) -> (i32, i32) {
    %c0_i32 = arith.constant 0 : i32
    %c0_i32_0 = arith.constant 0 : i32
    %c0_i32_1 = arith.constant 0 : i32
    return %c0_i32, %c0_i32_0 : i32, i32
  }
  func.func @transform_4(%arg0: i32) -> (i32, i32) {
    %c0_i32 = arith.constant 0 : i32
    %c0_i32_0 = arith.constant 0 : i32
    %c0_i32_1 = arith.constant 0 : i32
    return %c0_i32, %c0_i32_0 : i32, i32
  }
  func.func @transform_5(%arg0: i32) -> (i32, i32) {
    %c0_i32 = arith.constant 0 : i32
    %c0_i32_0 = arith.constant 0 : i32
    %c0_i32_1 = arith.constant 0 : i32
    return %c0_i32, %c0_i32_0 : i32, i32
  }
  func.func @transform_6(%arg0: i32) -> (i32, i32) {
    %c0_i32 = arith.constant 0 : i32
    %c0_i32_0 = arith.constant 0 : i32
    %c0_i32_1 = arith.constant 0 : i32
    return %c0_i32, %c0_i32_0 : i32, i32
  }
  func.func @transform_7(%arg0: i32) -> (i32, i32) {
    %c0_i32 = arith.constant 0 : i32
    %c0_i32_0 = arith.constant 0 : i32
    %c0_i32_1 = arith.constant 0 : i32
    return %c0_i32, %c0_i32_0 : i32, i32
  }
  func.func @transform_8(%arg0: i32) -> (i32, i32) {
    %c0_i32 = arith.constant 0 : i32
    %c0_i32_0 = arith.constant 0 : i32
    %c0_i32_1 = arith.constant 0 : i32
    return %c0_i32, %c0_i32_0 : i32, i32
  }
  func.func @transform_9(%arg0: i32) -> (i32, i32) {
    %c0_i32 = arith.constant 0 : i32
    %c0_i32_0 = arith.constant 0 : i32
    %c0_i32_1 = arith.constant 0 : i32
    return %c0_i32, %c0_i32_0 : i32, i32
  }
  func.func @transform_10(%arg0: i32) -> (i32, i32) {
    %c0_i32 = arith.constant 0 : i32
    %c0_i32_0 = arith.constant 0 : i32
    %c0_i32_1 = arith.constant 0 : i32
    return %c0_i32, %c0_i32_0 : i32, i32
  }
  func.func @transform_11(%arg0: i32) -> (i32, i32) {
    %c0_i32 = arith.constant 0 : i32
    %c0_i32_0 = arith.constant 0 : i32
    %c0_i32_1 = arith.constant 0 : i32
    return %c0_i32, %c0_i32_0 : i32, i32
  }
  func.func @transform_12(%arg0: i32) -> (i32, i32) {
    %c0_i32 = arith.constant 0 : i32
    %c0_i32_0 = arith.constant 0 : i32
    return %arg0, %c0_i32 : i32, i32
  }
}

</mosaic_0001>

<llo_original>
// kernel: tpu_custom_call.1
$region0: #{tpu_custom_call.1}
  #allocation0 [shape = 'u32[]', space=smem, size = 0x4, offset = 0x4, fixed_abs, tag = 'smem constant byte address 0x4 - core index']
  #allocation1 [shape = 'u32[144,128]{1,0:T(1,128)}', space=vmem, size = 0x12000, scoped, tag = 'internal scratch']
  %s0 = inlined_call_operand.hbm [shape: f32[1024,384], index: 0, kind: input, shape index: {}]
  %s1 = inlined_call_operand.hbm [shape: bf16[384,384], index: 1, kind: input, shape index: {}]
  %s2 = inlined_call_operand.hbm [shape: f32[1,384], index: 2, kind: input, shape index: {}]
  %s3 = inlined_call_operand.vmem [shape: bf16[384,64], index: 3, kind: input, shape index: {}]
  %s4 = inlined_call_operand.hbm [shape: f32[1,64], index: 4, kind: input, shape index: {}]
  %s5 = inlined_call_operand.vmem [shape: bf16[64,32], index: 5, kind: input, shape index: {}]
  %s6 = inlined_call_operand.hbm [shape: f32[1,32], index: 6, kind: input, shape index: {}]
  %s7 = inlined_call_operand.hbm [shape: bf16[32,32], index: 7, kind: input, shape index: {}]
  %s8 = inlined_call_operand.hbm [shape: f32[1,32], index: 8, kind: input, shape index: {}]
  %s9 = inlined_call_operand.hbm [shape: bf16[32,96], index: 9, kind: input, shape index: {}]
  %s10 = inlined_call_operand.hbm [shape: f32[1,96], index: 10, kind: input, shape index: {}]
  %s11 = inlined_call_operand.hbm [shape: bf16[96,384], index: 11, kind: input, shape index: {}]
  %s12 = inlined_call_operand.hbm [shape: bf16[1024,384], index: 12, kind: output, shape index: {}]
  %s13 = sld [smem:[#allocation0]]
  $region121: #{tpu_custom_call.1} parent=0
    _
  %s15 = ssub.s32 1, %s13
  %s16 = scalar_select 0, %s15, %s13
  $region1: #{tpu_custom_call.1} parent=0
    #allocation2 [shape = 'u8[393216]{0}', space=vmem, size = 0x60000, scoped, tag = 'input window, operand 0']
    #allocation3 [shape = 's32[2]{0}', space=sflag, size = 0x8, scoped, tag = 'scoped memory for tpu_custom_call.1']
    #allocation4 [shape = 's32[2]{0}', space=sflag, size = 0x8, scoped, tag = 'scoped memory for tpu_custom_call.1']
    #allocation5 [shape = 'u8[294912]{0}', space=vmem, size = 0x48000, scoped, tag = 'input window, operand 1, single buffered']
    #allocation6 [shape = 's32[1]{0}', space=sflag, size = 0x4, scoped, tag = 'scoped memory for tpu_custom_call.1']
    #allocation7 [shape = 'u8[1536]{0}', space=vmem, size = 0x800, scoped, tag = 'input window, operand 2, single buffered']
    #allocation8 [shape = 'u8[512]{0}', space=vmem, size = 0x400, scoped, tag = 'input window, operand 4, single buffered']
    #allocation9 [shape = 's32[1]{0}', space=sflag, size = 0x4, scoped, tag = 'scoped memory for tpu_custom_call.1']
    #allocation10 [shape = 'u8[512]{0}', space=vmem, size = 0x400, scoped, tag = 'input window, operand 6, single buffered']
    #allocation11 [shape = 'u8[8192]{0}', space=vmem, size = 0x2000, scoped, tag = 'input window, operand 7, single buffered']
    #allocation12 [shape = 's32[1]{0}', space=sflag, size = 0x4, scoped, tag = 'scoped memory for tpu_custom_call.1']
    #allocation13 [shape = 'u8[512]{0}', space=vmem, size = 0x400, scoped, tag = 'input window, operand 8, single buffered']
    #allocation14 [shape = 'u8[8192]{0}', space=vmem, size = 0x2000, scoped, tag = 'input window, operand 9, single buffered']
    #allocation15 [shape = 's32[1]{0}', space=sflag, size = 0x4, scoped, tag = 'scoped memory for tpu_custom_call.1']
    #allocation16 [shape = 'u8[512]{0}', space=vmem, size = 0x400, scoped, tag = 'input window, operand 10, single buffered']
    #allocation17 [shape = 'u8[73728]{0}', space=vmem, size = 0x12000, scoped, tag = 'input window, operand 11, single buffered']
    #allocation18 [shape = 's32[1]{0}', space=sflag, size = 0x4, scoped, tag = 'scoped memory for tpu_custom_call.1']
    #allocation19 [shape = 'u8[196608]{0}', space=vmem, size = 0x30000, scoped, tag = 'output window, operand 0']
    %17 = vsyncpa [#allocation3], 0
    %s18 = scalar_lea.sflag [#allocation3], 1
    %19 = vsyncpa %s18, 0
    %20 = vsyncpa [#allocation6], 0
    %21 = vsyncpa [#allocation9], 0
    %22 = vsyncpa [#allocation12], 0
    %23 = vsyncpa [#allocation15], 0
    %24 = vsyncpa [#allocation18], 0
    %25 = vsyncpa [#allocation4], 0
    %s26 = scalar_lea.sflag [#allocation4], 1
    %27 = vsyncpa %s26, 0
    loop: start=0, step=1, limit=10
    $region2: #{tpu_custom_call.1} parent=1 // loop_pre_header
      _
    $region3: #{tpu_custom_call.1} parent=1 // loop_header
      %s29 = sphi 0, %s33
      %p30 = scmp.ge.s32.totalorder %s29, 10
      %s39 = sphi 0, %s41
      %s42 = sphi 0, %s39
      %s43 = sphi 0, %s42
      %s59 = sphi 0, %s43
      %s63 = sphi 0, %s63
      %s65 = sphi 0, %s63
      %s66 = sphi 0, %s65
      %s80 = sphi 0, %s66
      %s84 = sphi 0, %s84
      %s86 = sphi 0, %s84
      %s87 = sphi 0, %s86
      %s101 = sphi 0, %s87
      %s105 = sphi 0, %s105
      %s107 = sphi 0, %s105
      %s108 = sphi 0, %s107
      %s122 = sphi 0, %s108
      %s126 = sphi 0, %s126
      %s128 = sphi 0, %s126
      %s129 = sphi 0, %s128
      %s143 = sphi 0, %s129
      %s147 = sphi 0, %s147
      %s149 = sphi 0, %s147
      %s150 = sphi 0, %s149
      %s164 = sphi 0, %s150
      %s168 = sphi 0, %s168
      %s170 = sphi 0, %s168
      %s171 = sphi 0, %s170
      %s185 = sphi 0, %s171
      %s189 = sphi 0, %s189
      %s191 = sphi 0, %s189
      %s192 = sphi 0, %s191
      %s206 = sphi 0, %s192
      %s210 = sphi 0, %s210
      %s212 = sphi 0, %s210
      %s213 = sphi 0, %s212
      %s227 = sphi 0, %s213
      %s231 = sphi 0, %s231
      %s233 = sphi 0, %s231
      %s234 = sphi 0, %s233
      %s248 = sphi 0, %s234
      %s252 = sphi 0, %s252
      %s254 = sphi 0, %s252
      %s255 = sphi 0, %s254
      %s269 = sphi 0, %s255
      %s273 = sphi 0, %s273
      %s275 = sphi 0, %s273
      %s276 = sphi 0, %s275
      %s290 = sphi 0, %s276
      %s296 = sphi 0, %s298
      %s299 = sphi 0, %s296
      %s300 = sphi 0, %s299
      %s316 = sphi 0, %s300
    $region4: #{tpu_custom_call.1} parent=1 // loop_header_branch
      %32 = sbr.rel (%p30) target = $region8
    $region5: #{tpu_custom_call.1} parent=1 // loop_body
      %s34 = ssub.s32 %s29, 1
      %s35 = ssub.s32 %s29, 2
      %s36 = sadd.s32 %s29, 1
      %s37 = ssub.s32 %s29, %s36
      %p38 = scmp.eq.s32.totalorder %s37, 0
      %s40 = sadd.s32 %s39, 1
      %s41 = scalar_select %p38, %s39, %s40
      %p44 = pneg %p38
      %p45 = scmp.eq.s32.totalorder %s29, 7
      %p46 = por %p44, %p45
      %p47 = scmp.ne.s32.totalorder %s39, %s42
      %p48 = scmp.eq.s32.totalorder %s29, 0
      %p49 = por %p47, %p48
      %p50 = scmp.ne.s32.totalorder %s39, %s42
      %p51 = scmp.eq.s32.totalorder %s34, 7
      %p52 = por %p50, %p51
      %p53 = scmp.ne.s32.totalorder %s42, %s43
      %p54 = scmp.eq.s32.totalorder %s34, 0
      %p55 = por %p53, %p54
      %p56 = scmp.ne.s32.totalorder %s42, %s43
      %p57 = scmp.eq.s32.totalorder %s35, 7
      %p58 = por %p56, %p57
      %p60 = scmp.ne.s32.totalorder %s43, %s59
      %p61 = scmp.eq.s32.totalorder %s35, 0
      %p62 = por %p60, %p61
      %s64 = sadd.s32 %s63, 1
      %p67 = scmp.eq.s32.totalorder %s29, 7
      %p68 = scmp.ne.s32.totalorder %s63, %s65
      %p69 = scmp.eq.s32.totalorder %s29, 0
      %p70 = por %p68, %p69
      %p71 = scmp.ne.s32.totalorder %s63, %s65
      %p72 = scmp.eq.s32.totalorder %s34, 7
      %p73 = por %p71, %p72
      %p74 = scmp.ne.s32.totalorder %s65, %s66
      %p75 = scmp.eq.s32.totalorder %s34, 0
      %p76 = por %p74, %p75
      %p77 = scmp.ne.s32.totalorder %s65, %s66
      %p78 = scmp.eq.s32.totalorder %s35, 7
      %p79 = por %p77, %p78
      %p81 = scmp.ne.s32.totalorder %s66, %s80
      %p82 = scmp.eq.s32.totalorder %s35, 0
      %p83 = por %p81, %p82
      %s85 = sadd.s32 %s84, 1
      %p88 = scmp.eq.s32.totalorder %s29, 7
      %p89 = scmp.ne.s32.totalorder %s84, %s86
      %p90 = scmp.eq.s32.totalorder %s29, 0
      %p91 = por %p89, %p90
      %p92 = scmp.ne.s32.totalorder %s84, %s86
      %p93 = scmp.eq.s32.totalorder %s34, 7
      %p94 = por %p92, %p93
      %p95 = scmp.ne.s32.totalorder %s86, %s87
      %p96 = scmp.eq.s32.totalorder %s34, 0
      %p97 = por %p95, %p96
      %p98 = scmp.ne.s32.totalorder %s86, %s87
      %p99 = scmp.eq.s32.totalorder %s35, 7
      %p100 = por %p98, %p99
      %p102 = scmp.ne.s32.totalorder %s87, %s101
      %p103 = scmp.eq.s32.totalorder %s35, 0
      %p104 = por %p102, %p103
      %s106 = sadd.s32 %s105, 1
      %p109 = scmp.eq.s32.totalorder %s29, 7
      %p110 = scmp.ne.s32.totalorder %s105, %s107
      %p111 = scmp.eq.s32.totalorder %s29, 0
      %p112 = por %p110, %p111
      %p113 = scmp.ne.s32.totalorder %s105, %s107
      %p114 = scmp.eq.s32.totalorder %s34, 7
      %p115 = por %p113, %p114
      %p116 = scmp.ne.s32.totalorder %s107, %s108
      %p117 = scmp.eq.s32.totalorder %s34, 0
      %p118 = por %p116, %p117
      %p119 = scmp.ne.s32.totalorder %s107, %s108
      %p120 = scmp.eq.s32.totalorder %s35, 7
      %p121 = por %p119, %p120
      %p123 = scmp.ne.s32.totalorder %s108, %s122
      %p124 = scmp.eq.s32.totalorder %s35, 0
      %p125 = por %p123, %p124
      %s127 = sadd.s32 %s126, 1
      %p130 = scmp.eq.s32.totalorder %s29, 7
      %p131 = scmp.ne.s32.totalorder %s126, %s128
      %p132 = scmp.eq.s32.totalorder %s29, 0
      %p133 = por %p131, %p132
      %p134 = scmp.ne.s32.totalorder %s126, %s128
      %p135 = scmp.eq.s32.totalorder %s34, 7
      %p136 = por %p134, %p135
      %p137 = scmp.ne.s32.totalorder %s128, %s129
      %p138 = scmp.eq.s32.totalorder %s34, 0
      %p139 = por %p137, %p138
      %p140 = scmp.ne.s32.totalorder %s128, %s129
      %p141 = scmp.eq.s32.totalorder %s35, 7
      %p142 = por %p140, %p141
      %p144 = scmp.ne.s32.totalorder %s129, %s143
      %p145 = scmp.eq.s32.totalorder %s35, 0
      %p146 = por %p144, %p145
      %s148 = sadd.s32 %s147, 1
      %p151 = scmp.eq.s32.totalorder %s29, 7
      %p152 = scmp.ne.s32.totalorder %s147, %s149
      %p153 = scmp.eq.s32.totalorder %s29, 0
      %p154 = por %p152, %p153
      %p155 = scmp.ne.s32.totalorder %s147, %s149
      %p156 = scmp.eq.s32.totalorder %s34, 7
      %p157 = por %p155, %p156
      %p158 = scmp.ne.s32.totalorder %s149, %s150
      %p159 = scmp.eq.s32.totalorder %s34, 0
      %p160 = por %p158, %p159
      %p161 = scmp.ne.s32.totalorder %s149, %s150
      %p162 = scmp.eq.s32.totalorder %s35, 7
      %p163 = por %p161, %p162
      %p165 = scmp.ne.s32.totalorder %s150, %s164
      %p166 = scmp.eq.s32.totalorder %s35, 0
      %p167 = por %p165, %p166
      %s169 = sadd.s32 %s168, 1
      %p172 = scmp.eq.s32.totalorder %s29, 7
      %p173 = scmp.ne.s32.totalorder %s168, %s170
      %p174 = scmp.eq.s32.totalorder %s29, 0
      %p175 = por %p173, %p174
      %p176 = scmp.ne.s32.totalorder %s168, %s170
      %p177 = scmp.eq.s32.totalorder %s34, 7
      %p178 = por %p176, %p177
      %p179 = scmp.ne.s32.totalorder %s170, %s171
      %p180 = scmp.eq.s32.totalorder %s34, 0
      %p181 = por %p179, %p180
      %p182 = scmp.ne.s32.totalorder %s170, %s171
      %p183 = scmp.eq.s32.totalorder %s35, 7
      %p184 = por %p182, %p183
      %p186 = scmp.ne.s32.totalorder %s171, %s185
      %p187 = scmp.eq.s32.totalorder %s35, 0
      %p188 = por %p186, %p187
      %s190 = sadd.s32 %s189, 1
      %p193 = scmp.eq.s32.totalorder %s29, 7
      %p194 = scmp.ne.s32.totalorder %s189, %s191
      %p195 = scmp.eq.s32.totalorder %s29, 0
      %p196 = por %p194, %p195
      %p197 = scmp.ne.s32.totalorder %s189, %s191
      %p198 = scmp.eq.s32.totalorder %s34, 7
      %p199 = por %p197, %p198
      %p200 = scmp.ne.s32.totalorder %s191, %s192
      %p201 = scmp.eq.s32.totalorder %s34, 0
      %p202 = por %p200, %p201
      %p203 = scmp.ne.s32.totalorder %s191, %s192
      %p204 = scmp.eq.s32.totalorder %s35, 7
      %p205 = por %p203, %p204
      %p207 = scmp.ne.s32.totalorder %s192, %s206
      %p208 = scmp.eq.s32.totalorder %s35, 0
      %p209 = por %p207, %p208
      %s211 = sadd.s32 %s210, 1
      %p214 = scmp.eq.s32.totalorder %s29, 7
      %p215 = scmp.ne.s32.totalorder %s210, %s212
      %p216 = scmp.eq.s32.totalorder %s29, 0
      %p217 = por %p215, %p216
      %p218 = scmp.ne.s32.totalorder %s210, %s212
      %p219 = scmp.eq.s32.totalorder %s34, 7
      %p220 = por %p218, %p219
      %p221 = scmp.ne.s32.totalorder %s212, %s213
      %p222 = scmp.eq.s32.totalorder %s34, 0
      %p223 = por %p221, %p222
      %p224 = scmp.ne.s32.totalorder %s212, %s213
      %p225 = scmp.eq.s32.totalorder %s35, 7
      %p226 = por %p224, %p225
      %p228 = scmp.ne.s32.totalorder %s213, %s227
      %p229 = scmp.eq.s32.totalorder %s35, 0
      %p230 = por %p228, %p229
      %s232 = sadd.s32 %s231, 1
      %p235 = scmp.eq.s32.totalorder %s29, 7
      %p236 = scmp.ne.s32.totalorder %s231, %s233
      %p237 = scmp.eq.s32.totalorder %s29, 0
      %p238 = por %p236, %p237
      %p239 = scmp.ne.s32.totalorder %s231, %s233
      %p240 = scmp.eq.s32.totalorder %s34, 7
      %p241 = por %p239, %p240
      %p242 = scmp.ne.s32.totalorder %s233, %s234
      %p243 = scmp.eq.s32.totalorder %s34, 0
      %p244 = por %p242, %p243
      %p245 = scmp.ne.s32.totalorder %s233, %s234
      %p246 = scmp.eq.s32.totalorder %s35, 7
      %p247 = por %p245, %p246
      %p249 = scmp.ne.s32.totalorder %s234, %s248
      %p250 = scmp.eq.s32.totalorder %s35, 0
      %p251 = por %p249, %p250
      %s253 = sadd.s32 %s252, 1
      %p256 = scmp.eq.s32.totalorder %s29, 7
      %p257 = scmp.ne.s32.totalorder %s252, %s254
      %p258 = scmp.eq.s32.totalorder %s29, 0
      %p259 = por %p257, %p258
      %p260 = scmp.ne.s32.totalorder %s252, %s254
      %p261 = scmp.eq.s32.totalorder %s34, 7
      %p262 = por %p260, %p261
      %p263 = scmp.ne.s32.totalorder %s254, %s255
      %p264 = scmp.eq.s32.totalorder %s34, 0
      %p265 = por %p263, %p264
      %p266 = scmp.ne.s32.totalorder %s254, %s255
      %p267 = scmp.eq.s32.totalorder %s35, 7
      %p268 = por %p266, %p267
      %p270 = scmp.ne.s32.totalorder %s255, %s269
      %p271 = scmp.eq.s32.totalorder %s35, 0
      %p272 = por %p270, %p271
      %s274 = sadd.s32 %s273, 1
      %p277 = scmp.eq.s32.totalorder %s29, 7
      %p278 = scmp.ne.s32.totalorder %s273, %s275
      %p279 = scmp.eq.s32.totalorder %s29, 0
      %p280 = por %p278, %p279
      %p281 = scmp.ne.s32.totalorder %s273, %s275
      %p282 = scmp.eq.s32.totalorder %s34, 7
      %p283 = por %p281, %p282
      %p284 = scmp.ne.s32.totalorder %s275, %s276
      %p285 = scmp.eq.s32.totalorder %s34, 0
      %p286 = por %p284, %p285
      %p287 = scmp.ne.s32.totalorder %s275, %s276
      %p288 = scmp.eq.s32.totalorder %s35, 7
      %p289 = por %p287, %p288
      %p291 = scmp.ne.s32.totalorder %s276, %s290
      %p292 = scmp.eq.s32.totalorder %s35, 0
      %p293 = por %p291, %p292
      %s294 = ssub.s32 %s29, %s36
      %p295 = scmp.eq.s32.totalorder %s294, 0
      %s297 = sadd.s32 %s296, 1
      %s298 = scalar_select %p295, %s296, %s297
      %p301 = pneg %p295
      %p302 = scmp.eq.s32.totalorder %s29, 7
      %p303 = por %p301, %p302
      %p304 = scmp.ne.s32.totalorder %s296, %s299
      %p305 = scmp.eq.s32.totalorder %s29, 0
      %p306 = por %p304, %p305
      %p307 = scmp.ne.s32.totalorder %s296, %s299
      %p308 = scmp.eq.s32.totalorder %s34, 7
      %p309 = por %p307, %p308
      %p310 = scmp.ne.s32.totalorder %s299, %s300
      %p311 = scmp.eq.s32.totalorder %s34, 0
      %p312 = por %p310, %p311
      %p313 = scmp.ne.s32.totalorder %s299, %s300
      %p314 = scmp.eq.s32.totalorder %s35, 7
      %p315 = por %p313, %p314
      %p317 = scmp.ne.s32.totalorder %s300, %s316
      %p318 = scmp.eq.s32.totalorder %s35, 0
      %p319 = por %p317, %p318
      %p320 = scmp.le.s32.totalorder 1, %s29
      %p321 = scmp.lt.s32.totalorder %s29, 9
      %p322 = pnand %p320, %p321
      %p323 = pneg %p322
      // Predicated region
      $region9: #{tpu_custom_call.1} parent=5 // pred_check
        _
      $region10: #{tpu_custom_call.1} parent=5 // pred_check_branch
        %325 = sbr.rel (%p322) target = $region12
      $region11: #{tpu_custom_call.1} parent=5 // pred_region
        %s326 = ssub.s32 %s29, 1
        // Predicated region
        $region13: #{tpu_custom_call.1} parent=11 // pred_check
          %p327 = pneg %p76
        $region14: #{tpu_custom_call.1} parent=11 // pred_check_branch
          %329 = sbr.rel (%p327) target = $region16
        $region15: #{tpu_custom_call.1} parent=11 // pred_region
          %s331 = ssub.s32 9216, 9216
          %332 = vsyncadd [#allocation6], %s331
          %s333 = sshll.u32 [#allocation5], 4
          %s334 = int_to_ptr.vmem [resolvable:$true] %s333
          %339 = dma.hbm_to_vmem [thread:$0]  %s1, 9216, %s334, [#allocation6], 192, 192, 12
        $region16: #{tpu_custom_call.1} parent=11 // pred_fallthru
          _
        // Predicated region
        $region17: #{tpu_custom_call.1} parent=11 // pred_check
          %p340 = pneg %p97
        $region18: #{tpu_custom_call.1} parent=11 // pred_check_branch
          %342 = sbr.rel (%p340) target = $region20
        $region19: #{tpu_custom_call.1} parent=11 // pred_region
          %s344 = ssub.s32 48, 48
          %345 = vsyncadd [#allocation6], %s344
          %s347 = sshll.u32 [#allocation7], 4
          %s348 = int_to_ptr.vmem [resolvable:$true] %s347
          %350 = dma.hbm_to_vmem [thread:$0]  %s2, 48, %s348, [#allocation6]
        $region20: #{tpu_custom_call.1} parent=11 // pred_fallthru
          _
        // Predicated region
        $region21: #{tpu_custom_call.1} parent=11 // pred_check
          %p351 = pneg %p118
        $region22: #{tpu_custom_call.1} parent=11 // pred_check_branch
          %353 = sbr.rel (%p351) target = $region24
        $region23: #{tpu_custom_call.1} parent=11 // pred_region
          _
        $region24: #{tpu_custom_call.1} parent=11 // pred_fallthru
          _
        // Predicated region
        $region25: #{tpu_custom_call.1} parent=11 // pred_check
          %p354 = pneg %p139
        $region26: #{tpu_custom_call.1} parent=11 // pred_check_branch
          %356 = sbr.rel (%p354) target = $region28
        $region27: #{tpu_custom_call.1} parent=11 // pred_region
          %s358 = ssub.s32 16, 16
          %359 = vsyncadd [#allocation9], %s358
          %s361 = sshll.u32 [#allocation8], 4
          %s362 = int_to_ptr.vmem [resolvable:$true] %s361
          %364 = dma.hbm_to_vmem [thread:$0]  %s4, 16, %s362, [#allocation9]
        $region28: #{tpu_custom_call.1} parent=11 // pred_fallthru
          _
        // Predicated region
        $region29: #{tpu_custom_call.1} parent=11 // pred_check
          %p365 = pneg %p160
        $region30: #{tpu_custom_call.1} parent=11 // pred_check_branch
          %367 = sbr.rel (%p365) target = $region32
        $region31: #{tpu_custom_call.1} parent=11 // pred_region
          _
        $region32: #{tpu_custom_call.1} parent=11 // pred_fallthru
          _
        // Predicated region
        $region33: #{tpu_custom_call.1} parent=11 // pred_check
          %p368 = pneg %p181
        $region34: #{tpu_custom_call.1} parent=11 // pred_check_branch
          %370 = sbr.rel (%p368) target = $region36
        $region35: #{tpu_custom_call.1} parent=11 // pred_region
          %s372 = ssub.s32 16, 16
          %373 = vsyncadd [#allocation9], %s372
          %s375 = sshll.u32 [#allocation10], 4
          %s376 = int_to_ptr.vmem [resolvable:$true] %s375
          %378 = dma.hbm_to_vmem [thread:$0]  %s6, 16, %s376, [#allocation9]
        $region36: #{tpu_custom_call.1} parent=11 // pred_fallthru
          _
        // Predicated region
        $region37: #{tpu_custom_call.1} parent=11 // pred_check
          %p379 = pneg %p202
        $region38: #{tpu_custom_call.1} parent=11 // pred_check_branch
          %381 = sbr.rel (%p379) target = $region40
        $region39: #{tpu_custom_call.1} parent=11 // pred_region
          %s383 = ssub.s32 256, 256
          %384 = vsyncadd [#allocation12], %s383
          %s385 = sshll.u32 [#allocation11], 4
          %s386 = int_to_ptr.vmem [resolvable:$true] %s385
          %391 = dma.hbm_to_vmem [thread:$0]  %s7, 256, %s386, [#allocation12], 64, 64, 4
        $region40: #{tpu_custom_call.1} parent=11 // pred_fallthru
          _
        // Predicated region
        $region41: #{tpu_custom_call.1} parent=11 // pred_check
          %p392 = pneg %p223
        $region42: #{tpu_custom_call.1} parent=11 // pred_check_branch
          %394 = sbr.rel (%p392) target = $region44
        $region43: #{tpu_custom_call.1} parent=11 // pred_region
          %s396 = ssub.s32 16, 16
          %397 = vsyncadd [#allocation12], %s396
          %s399 = sshll.u32 [#allocation13], 4
          %s400 = int_to_ptr.vmem [resolvable:$true] %s399
          %402 = dma.hbm_to_vmem [thread:$0]  %s8, 16, %s400, [#allocation12]
        $region44: #{tpu_custom_call.1} parent=11 // pred_fallthru
          _
        // Predicated region
        $region45: #{tpu_custom_call.1} parent=11 // pred_check
          %p403 = pneg %p244
        $region46: #{tpu_custom_call.1} parent=11 // pred_check_branch
          %405 = sbr.rel (%p403) target = $region48
        $region47: #{tpu_custom_call.1} parent=11 // pred_region
          %s407 = ssub.s32 256, 256
          %408 = vsyncadd [#allocation15], %s407
          %s409 = sshll.u32 [#allocation14], 4
          %s410 = int_to_ptr.vmem [resolvable:$true] %s409
          %415 = dma.hbm_to_vmem [thread:$0]  %s9, 256, %s410, [#allocation15], 64, 64, 4
        $region48: #{tpu_custom_call.1} parent=11 // pred_fallthru
          _
        // Predicated region
        $region49: #{tpu_custom_call.1} parent=11 // pred_check
          %p416 = pneg %p265
        $region50: #{tpu_custom_call.1} parent=11 // pred_check_branch
          %418 = sbr.rel (%p416) target = $region52
        $region51: #{tpu_custom_call.1} parent=11 // pred_region
          %s420 = ssub.s32 16, 16
          %421 = vsyncadd [#allocation15], %s420
          %s423 = sshll.u32 [#allocation16], 4
          %s424 = int_to_ptr.vmem [resolvable:$true] %s423
          %426 = dma.hbm_to_vmem [thread:$0]  %s10, 16, %s424, [#allocation15]
        $region52: #{tpu_custom_call.1} parent=11 // pred_fallthru
          _
        // Predicated region
        $region53: #{tpu_custom_call.1} parent=11 // pred_check
          %p427 = pneg %p286
        $region54: #{tpu_custom_call.1} parent=11 // pred_check_branch
          %429 = sbr.rel (%p427) target = $region56
        $region55: #{tpu_custom_call.1} parent=11 // pred_region
          %s431 = ssub.s32 2304, 2304
          %432 = vsyncadd [#allocation18], %s431
          %s433 = sshll.u32 [#allocation17], 4
          %s434 = int_to_ptr.vmem [resolvable:$true] %s433
          %439 = dma.hbm_to_vmem [thread:$0]  %s11, 2304, %s434, [#allocation18], 192, 192, 12
        $region56: #{tpu_custom_call.1} parent=11 // pred_fallthru
          _
      $region12: #{tpu_custom_call.1} parent=5 // pred_fallthru
        _
      %p440 = scmp.lt.s32.totalorder %s29, 8
      // Predicated region
      $region57: #{tpu_custom_call.1} parent=5 // pred_check
        %p441 = pneg %p440
      $region58: #{tpu_custom_call.1} parent=5 // pred_check_branch
        %443 = sbr.rel (%p441) target = $region60
      $region59: #{tpu_custom_call.1} parent=5 // pred_region
        // Predicated region
        $region61: #{tpu_custom_call.1} parent=59 // pred_check
          %p444 = pneg %p49
        $region62: #{tpu_custom_call.1} parent=59 // pred_check_branch
          %446 = sbr.rel (%p444) target = $region64
        $region63: #{tpu_custom_call.1} parent=59 // pred_region
          %s447 = sand.u32 %s39, 1
          %s448 = scalar_lea.sflag [#allocation3], %s447
          %s449 = sand.u32 %s39, 1
          %s450 = smul.addr %s449, 384
          %s451 = scalar_lea.vmem [#allocation2], %s450
          %s452 = smul.u32 16, %s29
          %s454 = ssub.s32 6144, 6144
          %455 = vsyncadd %s448, %s454
          %s456 = smul.addr %s452, 3
          %s457 = smul.addr %s456, 128
          %s458 = scalar_lea.hbm %s0, %s457
          %s459 = sshll.u32 %s451, 4
          %s460 = int_to_ptr.vmem [resolvable:$true] %s459
          %465 = dma.hbm_to_vmem [thread:$0]  %s458, 6144, %s460, %s448, 384, 384, 24
        $region64: #{tpu_custom_call.1} parent=59 // pred_fallthru
          _
      $region60: #{tpu_custom_call.1} parent=5 // pred_fallthru
        _
      %p466 = scmp.le.s32.totalorder 1, %s29
      %p467 = scmp.lt.s32.totalorder %s29, 9
      %p468 = pnand %p466, %p467
      %p469 = pneg %p468
      // Predicated region
      $region65: #{tpu_custom_call.1} parent=5 // pred_check
        _
      $region66: #{tpu_custom_call.1} parent=5 // pred_check_branch
        %471 = sbr.rel (%p468) target = $region68
      $region67: #{tpu_custom_call.1} parent=5 // pred_region
        %s472 = ssub.s32 %s29, 1
        %s473 = sand.u32 %s42, 1
        %s474 = scalar_lea.sflag [#allocation3], %s473
        %s475 = sand.u32 %s42, 1
        %s476 = smul.addr %s475, 384
        %s477 = scalar_lea.vmem [#allocation2], %s476
        // Predicated region
        $region69: #{tpu_custom_call.1} parent=67 // pred_check
          %p478 = pneg %p55
        $region70: #{tpu_custom_call.1} parent=67 // pred_check_branch
          %480 = sbr.rel (%p478) target = $region72
        $region71: #{tpu_custom_call.1} parent=67 // pred_region
          %481 = dma.done %s474, 6144
        $region72: #{tpu_custom_call.1} parent=67 // pred_fallthru
          _
        // Predicated region
        $region73: #{tpu_custom_call.1} parent=67 // pred_check
          %p482 = pneg %p76
        $region74: #{tpu_custom_call.1} parent=67 // pred_check_branch
          %484 = sbr.rel (%p482) target = $region76
        $region75: #{tpu_custom_call.1} parent=67 // pred_region
          %485 = dma.done [#allocation6], 9216
        $region76: #{tpu_custom_call.1} parent=67 // pred_fallthru
          _
        // Predicated region
        $region77: #{tpu_custom_call.1} parent=67 // pred_check
          %p486 = pneg %p97
        $region78: #{tpu_custom_call.1} parent=67 // pred_check_branch
          %488 = sbr.rel (%p486) target = $region80
        $region79: #{tpu_custom_call.1} parent=67 // pred_region
          %489 = dma.done [#allocation6], 48
        $region80: #{tpu_custom_call.1} parent=67 // pred_fallthru
          _
        // Predicated region
        $region81: #{tpu_custom_call.1} parent=67 // pred_check
          %p490 = pneg %p139
        $region82: #{tpu_custom_call.1} parent=67 // pred_check_branch
          %492 = sbr.rel (%p490) target = $region84
        $region83: #{tpu_custom_call.1} parent=67 // pred_region
          %493 = dma.done [#allocation9], 16
        $region84: #{tpu_custom_call.1} parent=67 // pred_fallthru
          _
        // Predicated region
        $region85: #{tpu_custom_call.1} parent=67 // pred_check
          %p494 = pneg %p181
        $region86: #{tpu_custom_call.1} parent=67 // pred_check_branch
          %496 = sbr.rel (%p494) target = $region88
        $region87: #{tpu_custom_call.1} parent=67 // pred_region
          %497 = dma.done [#allocation9], 16
        $region88: #{tpu_custom_call.1} parent=67 // pred_fallthru
          _
        // Predicated region
        $region89: #{tpu_custom_call.1} parent=67 // pred_check
          %p498 = pneg %p202
        $region90: #{tpu_custom_call.1} parent=67 // pred_check_branch
          %500 = sbr.rel (%p498) target = $region92
        $region91: #{tpu_custom_call.1} parent=67 // pred_region
          %501 = dma.done [#allocation12], 256
        $region92: #{tpu_custom_call.1} parent=67 // pred_fallthru
          _
        // Predicated region
        $region93: #{tpu_custom_call.1} parent=67 // pred_check
          %p502 = pneg %p223
        $region94: #{tpu_custom_call.1} parent=67 // pred_check_branch
          %504 = sbr.rel (%p502) target = $region96
        $region95: #{tpu_custom_call.1} parent=67 // pred_region
          %505 = dma.done [#allocation12], 16
        $region96: #{tpu_custom_call.1} parent=67 // pred_fallthru
          _
        // Predicated region
        $region97: #{tpu_custom_call.1} parent=67 // pred_check
          %p506 = pneg %p244
        $region98: #{tpu_custom_call.1} parent=67 // pred_check_branch
          %508 = sbr.rel (%p506) target = $region100
        $region99: #{tpu_custom_call.1} parent=67 // pred_region
          %509 = dma.done [#allocation15], 256
        $region100: #{tpu_custom_call.1} parent=67 // pred_fallthru
          _
        // Predicated region
        $region101: #{tpu_custom_call.1} parent=67 // pred_check
          %p510 = pneg %p265
        $region102: #{tpu_custom_call.1} parent=67 // pred_check_branch
          %512 = sbr.rel (%p510) target = $region104
        $region103: #{tpu_custom_call.1} parent=67 // pred_region
          %513 = dma.done [#allocation15], 16
        $region104: #{tpu_custom_call.1} parent=67 // pred_fallthru
          _
        // Predicated region
        $region105: #{tpu_custom_call.1} parent=67 // pred_check
          %p514 = pneg %p286
        $region106: #{tpu_custom_call.1} parent=67 // pred_check_branch
          %516 = sbr.rel (%p514) target = $region108
        $region107: #{tpu_custom_call.1} parent=67 // pred_region
          %517 = dma.done [#allocation18], 2304
        $region108: #{tpu_custom_call.1} parent=67 // pred_fallthru
          _
        %s518 = sand.u32 %s42, 1
        %s519 = scalar_lea.sflag [#allocation3], %s518
        %s520 = sand.u32 %s42, 1
        %s521 = smul.addr %s520, 384
        %s522 = scalar_lea.vmem [#allocation2], %s521
        %p523 = pneg %p55
        %p524 = pneg %p52
        %p525 = pneg %p76
        %p526 = pneg %p73
        %p527 = pneg %p97
        %p528 = pneg %p94
        %p529 = pneg %p118
        %p530 = pneg %p115
        %p531 = pneg %p139
        %p532 = pneg %p136
        %p533 = pneg %p160
        %p534 = pneg %p157
        %p535 = pneg %p181
        %p536 = pneg %p178
        %p537 = pneg %p202
        %p538 = pneg %p199
        %p539 = pneg %p223
        %p540 = pneg %p220
        %p541 = pneg %p244
        %p542 = pneg %p241
        %p543 = pneg %p265
        %p544 = pneg %p262
        %p545 = pneg %p286
        %p546 = pneg %p283
        %p547 = pneg %p312
        %p548 = pneg %p309
        %s549 = sand.u32 %s299, 1
        %s550 = scalar_lea.sflag [#allocation4], %s549
        %s551 = sand.u32 %s299, 1
        %s552 = smul.addr %s551, 192
        %s553 = scalar_lea.vmem [#allocation19], %s552
        %s554 = smul.u32 16, %s34
        %s555 = smul.u32 16, %s34
        %v557 = vld [vmem:[%s477] sm:$0xff]
        %v558 = vld [vmem:[%s477 + $0x8] sm:$0xff]
        %v559 = vld [vmem:[%s477 + $0x10] sm:$0xff]
        %v560 = vld [vmem:[%s477 + $0x18] sm:$0xff]
        %v561 = vld [vmem:[%s477 + $0x20] sm:$0xff]
        %v562 = vld [vmem:[%s477 + $0x28] sm:$0xff]
        %v563 = vld [vmem:[%s477 + $0x30] sm:$0xff]
        %v564 = vld [vmem:[%s477 + $0x38] sm:$0xff]
        %v565 = vld [vmem:[%s477 + $0x40] sm:$0xff]
        %v566 = vld [vmem:[%s477 + $0x48] sm:$0xff]
        %v567 = vld [vmem:[%s477 + $0x50] sm:$0xff]
        %v568 = vld [vmem:[%s477 + $0x58] sm:$0xff]
        %v569 = vld [vmem:[%s477 + $0x60] sm:$0xff]
        %v570 = vld [vmem:[%s477 + $0x68] sm:$0xff]
        %v571 = vld [vmem:[%s477 + $0x70] sm:$0xff]
        %v572 = vld [vmem:[%s477 + $0x78] sm:$0xff]
        %v573 = vld [vmem:[%s477 + $0x80] sm:$0xff]
        %v574 = vld [vmem:[%s477 + $0x88] sm:$0xff]
        %v575 = vld [vmem:[%s477 + $0x90] sm:$0xff]
        %v576 = vld [vmem:[%s477 + $0x98] sm:$0xff]
        %v577 = vld [vmem:[%s477 + $0xa0] sm:$0xff]
        %v578 = vld [vmem:[%s477 + $0xa8] sm:$0xff]
        %v579 = vld [vmem:[%s477 + $0xb0] sm:$0xff]
        %v580 = vld [vmem:[%s477 + $0xb8] sm:$0xff]
        %v581 = vld [vmem:[%s477 + $0xc0] sm:$0xff]
        %v582 = vld [vmem:[%s477 + $0xc8] sm:$0xff]
        %v583 = vld [vmem:[%s477 + $0xd0] sm:$0xff]
        %v584 = vld [vmem:[%s477 + $0xd8] sm:$0xff]
        %v585 = vld [vmem:[%s477 + $0xe0] sm:$0xff]
        %v586 = vld [vmem:[%s477 + $0xe8] sm:$0xff]
        %v587 = vld [vmem:[%s477 + $0xf0] sm:$0xff]
        %v588 = vld [vmem:[%s477 + $0xf8] sm:$0xff]
        %v589 = vld [vmem:[%s477 + $0x100] sm:$0xff]
        %v590 = vld [vmem:[%s477 + $0x108] sm:$0xff]
        %v591 = vld [vmem:[%s477 + $0x110] sm:$0xff]
        %v592 = vld [vmem:[%s477 + $0x118] sm:$0xff]
        %v593 = vld [vmem:[%s477 + $0x120] sm:$0xff]
        %v594 = vld [vmem:[%s477 + $0x128] sm:$0xff]
        %v595 = vld [vmem:[%s477 + $0x130] sm:$0xff]
        %v596 = vld [vmem:[%s477 + $0x138] sm:$0xff]
        %v597 = vld [vmem:[%s477 + $0x140] sm:$0xff]
        %v598 = vld [vmem:[%s477 + $0x148] sm:$0xff]
        %v599 = vld [vmem:[%s477 + $0x150] sm:$0xff]
        %v600 = vld [vmem:[%s477 + $0x158] sm:$0xff]
        %v601 = vld [vmem:[%s477 + $0x160] sm:$0xff]
        %v602 = vld [vmem:[%s477 + $0x168] sm:$0xff]
        %v603 = vld [vmem:[%s477 + $0x170] sm:$0xff]
        %v604 = vld [vmem:[%s477 + $0x178] sm:$0xff]
        %v605 = vpack.c.bf16 %v560, %v557
        %v606 = vpack.c.bf16 %v561, %v558
        %v607 = vpack.c.bf16 %v562, %v559
        %v608 = vpack.c.bf16 %v566, %v563
        %v609 = vpack.c.bf16 %v567, %v564
        %v610 = vpack.c.bf16 %v568, %v565
        %v611 = vpack.c.bf16 %v572, %v569
        %v612 = vpack.c.bf16 %v573, %v570
        %v613 = vpack.c.bf16 %v574, %v571
        %v614 = vpack.c.bf16 %v578, %v575
        %v615 = vpack.c.bf16 %v579, %v576
        %v616 = vpack.c.bf16 %v580, %v577
        %v617 = vpack.c.bf16 %v584, %v581
        %v618 = vpack.c.bf16 %v585, %v582
        %v619 = vpack.c.bf16 %v586, %v583
        %v620 = vpack.c.bf16 %v590, %v587
        %v621 = vpack.c.bf16 %v591, %v588
        %v622 = vpack.c.bf16 %v592, %v589
        %v623 = vpack.c.bf16 %v596, %v593
        %v624 = vpack.c.bf16 %v597, %v594
        %v625 = vpack.c.bf16 %v598, %v595
        %v626 = vpack.c.bf16 %v602, %v599
        %v627 = vpack.c.bf16 %v603, %v600
        %v628 = vpack.c.bf16 %v604, %v601
        %v629 = vld [vmem:[#allocation5] sm:$0xff]
        %v630 = vld [vmem:[#allocation5 + $0x8] sm:$0xf]
        %v631 = vld [vmem:[#allocation5 + $0xc] sm:$0xff]
        %v632 = vld [vmem:[#allocation5 + $0x14] sm:$0xf]
        %v633 = vld [vmem:[#allocation5 + $0x18] sm:$0xff]
        %v634 = vld [vmem:[#allocation5 + $0x20] sm:$0xf]
        %v635 = vld [vmem:[#allocation5 + $0x24] sm:$0xff]
        %v636 = vld [vmem:[#allocation5 + $0x2c] sm:$0xf]
        %v637 = vld [vmem:[#allocation5 + $0x30] sm:$0xff]
        %v638 = vld [vmem:[#allocation5 + $0x38] sm:$0xf]
        %v639 = vld [vmem:[#allocation5 + $0x3c] sm:$0xff]
        %v640 = vld [vmem:[#allocation5 + $0x44] sm:$0xf]
        %v641 = vld [vmem:[#allocation5 + $0x48] sm:$0xff]
        %v642 = vld [vmem:[#allocation5 + $0x50] sm:$0xf]
        %v643 = vld [vmem:[#allocation5 + $0x54] sm:$0xff]
        %v644 = vld [vmem:[#allocation5 + $0x5c] sm:$0xf]
        %v645 = vld [vmem:[#allocation5 + $0x60] sm:$0xff]
        %v646 = vld [vmem:[#allocation5 + $0x68] sm:$0xf]
        %v647 = vld [vmem:[#allocation5 + $0x6c] sm:$0xff]
        %v648 = vld [vmem:[#allocation5 + $0x74] sm:$0xf]
        %v649 = vld [vmem:[#allocation5 + $0x78] sm:$0xff]
        %v650 = vld [vmem:[#allocation5 + $0x80] sm:$0xf]
        %v651 = vld [vmem:[#allocation5 + $0x84] sm:$0xff]
        %v652 = vld [vmem:[#allocation5 + $0x8c] sm:$0xf]
        %v653 = vld [vmem:[#allocation5 + $0x90] sm:$0xff]
        %v654 = vld [vmem:[#allocation5 + $0x98] sm:$0xf]
        %v655 = vld [vmem:[#allocation5 + $0x9c] sm:$0xff]
        %v656 = vld [vmem:[#allocation5 + $0xa4] sm:$0xf]
        %v657 = vld [vmem:[#allocation5 + $0xa8] sm:$0xff]
        %v658 = vld [vmem:[#allocation5 + $0xb0] sm:$0xf]
        %v659 = vld [vmem:[#allocation5 + $0xb4] sm:$0xff]
        %v660 = vld [vmem:[#allocation5 + $0xbc] sm:$0xf]
        %v661 = vld [vmem:[#allocation5 + $0xc0] sm:$0xff]
        %v662 = vld [vmem:[#allocation5 + $0xc8] sm:$0xf]
        %v663 = vld [vmem:[#allocation5 + $0xcc] sm:$0xff]
        %v664 = vld [vmem:[#allocation5 + $0xd4] sm:$0xf]
        %v665 = vld [vmem:[#allocation5 + $0xd8] sm:$0xff]
        %v666 = vld [vmem:[#allocation5 + $0xe0] sm:$0xf]
        %v667 = vld [vmem:[#allocation5 + $0xe4] sm:$0xff]
        %v668 = vld [vmem:[#allocation5 + $0xec] sm:$0xf]
        %v669 = vld [vmem:[#allocation5 + $0xf0] sm:$0xff]
        %v670 = vld [vmem:[#allocation5 + $0xf8] sm:$0xf]
        %v671 = vld [vmem:[#allocation5 + $0xfc] sm:$0xff]
        %v672 = vld [vmem:[#allocation5 + $0x104] sm:$0xf]
        %v673 = vld [vmem:[#allocation5 + $0x108] sm:$0xff]
        %v674 = vld [vmem:[#allocation5 + $0x110] sm:$0xf]
        %v675 = vld [vmem:[#allocation5 + $0x114] sm:$0xff]
        %v676 = vld [vmem:[#allocation5 + $0x11c] sm:$0xf]
        %v677 = vld [vmem:[#allocation5 + $0x120] sm:$0xff]
        %v678 = vld [vmem:[#allocation5 + $0x128] sm:$0xf]
        %v679 = vld [vmem:[#allocation5 + $0x12c] sm:$0xff]
        %v680 = vld [vmem:[#allocation5 + $0x134] sm:$0xf]
        %v681 = vld [vmem:[#allocation5 + $0x138] sm:$0xff]
        %v682 = vld [vmem:[#allocation5 + $0x140] sm:$0xf]
        %v683 = vld [vmem:[#allocation5 + $0x144] sm:$0xff]
        %v684 = vld [vmem:[#allocation5 + $0x14c] sm:$0xf]
        %v685 = vld [vmem:[#allocation5 + $0x150] sm:$0xff]
        %v686 = vld [vmem:[#allocation5 + $0x158] sm:$0xf]
        %v687 = vld [vmem:[#allocation5 + $0x15c] sm:$0xff]
        %v688 = vld [vmem:[#allocation5 + $0x164] sm:$0xf]
        %v689 = vld [vmem:[#allocation5 + $0x168] sm:$0xff]
        %v690 = vld [vmem:[#allocation5 + $0x170] sm:$0xf]
        %v691 = vld [vmem:[#allocation5 + $0x174] sm:$0xff]
        %v692 = vld [vmem:[#allocation5 + $0x17c] sm:$0xf]
        %v693 = vld [vmem:[#allocation5 + $0x180] sm:$0xff]
        %v694 = vld [vmem:[#allocation5 + $0x188] sm:$0xf]
        %v695 = vld [vmem:[#allocation5 + $0x18c] sm:$0xff]
        %v696 = vld [vmem:[#allocation5 + $0x194] sm:$0xf]
        %v697 = vld [vmem:[#allocation5 + $0x198] sm:$0xff]
        %v698 = vld [vmem:[#allocation5 + $0x1a0] sm:$0xf]
        %v699 = vld [vmem:[#allocation5 + $0x1a4] sm:$0xff]
        %v700 = vld [vmem:[#allocation5 + $0x1ac] sm:$0xf]
        %v701 = vld [vmem:[#allocation5 + $0x1b0] sm:$0xff]
        %v702 = vld [vmem:[#allocation5 + $0x1b8] sm:$0xf]
        %v703 = vld [vmem:[#allocation5 + $0x1bc] sm:$0xff]
        %v704 = vld [vmem:[#allocation5 + $0x1c4] sm:$0xf]
        %v705 = vld [vmem:[#allocation5 + $0x1c8] sm:$0xff]
        %v706 = vld [vmem:[#allocation5 + $0x1d0] sm:$0xf]
        %v707 = vld [vmem:[#allocation5 + $0x1d4] sm:$0xff]
        %v708 = vld [vmem:[#allocation5 + $0x1dc] sm:$0xf]
        %v709 = vld [vmem:[#allocation5 + $0x1e0] sm:$0xff]
        %v710 = vld [vmem:[#allocation5 + $0x1e8] sm:$0xf]
        %v711 = vld [vmem:[#allocation5 + $0x1ec] sm:$0xff]
        %v712 = vld [vmem:[#allocation5 + $0x1f4] sm:$0xf]
        %v713 = vld [vmem:[#allocation5 + $0x1f8] sm:$0xff]
        %v714 = vld [vmem:[#allocation5 + $0x200] sm:$0xf]
        %v715 = vld [vmem:[#allocation5 + $0x204] sm:$0xff]
        %v716 = vld [vmem:[#allocation5 + $0x20c] sm:$0xf]
        %v717 = vld [vmem:[#allocation5 + $0x210] sm:$0xff]
        %v718 = vld [vmem:[#allocation5 + $0x218] sm:$0xf]
        %v719 = vld [vmem:[#allocation5 + $0x21c] sm:$0xff]
        %v720 = vld [vmem:[#allocation5 + $0x224] sm:$0xf]
        %v721 = vld [vmem:[#allocation5 + $0x228] sm:$0xff]
        %v722 = vld [vmem:[#allocation5 + $0x230] sm:$0xf]
        %v723 = vld [vmem:[#allocation5 + $0x234] sm:$0xff]
        %v724 = vld [vmem:[#allocation5 + $0x23c] sm:$0xf]
        %v725 = vld [vmem:[#allocation7] sm:$0x7]
        %v727 = vlaneseq
        %v728 = vshrl.u32 %v727, 7
        %v729 = vsub.s32 0, %v728
        %v730 = vrot.slane %v725, %v729
        %v731 = vlaneseq
        %v732 = vshrl.u32 %v731, 7
        %v733 = vsub.s32 1, %v732
        %v734 = vrot.slane %v725, %v733
        %v735 = vlaneseq
        %v736 = vshrl.u32 %v735, 7
        %v737 = vsub.s32 2, %v736
        %v738 = vrot.slane %v725, %v737
        %v838 = vunpack.c.l.b16 %v629
        %v839 = vunpack.c.h.b16 %v629
        %v840 = vunpack.c.l.b16 %v630
        %v841 = vunpack.c.l.b16 %v631
        %v842 = vunpack.c.h.b16 %v631
        %v843 = vunpack.c.l.b16 %v632
        %v844 = vunpack.c.l.b16 %v633
        %v845 = vunpack.c.h.b16 %v633
        %v846 = vunpack.c.l.b16 %v634
        %v847 = vunpack.c.l.b16 %v635
        %v848 = vunpack.c.h.b16 %v635
        %v849 = vunpack.c.l.b16 %v636
        %v850 = vunpack.c.l.b16 %v637
        %v851 = vunpack.c.h.b16 %v637
        %v852 = vunpack.c.l.b16 %v638
        %v853 = vunpack.c.l.b16 %v639
        %v854 = vunpack.c.h.b16 %v639
        %v855 = vunpack.c.l.b16 %v640
        %v856 = vunpack.c.l.b16 %v641
        %v857 = vunpack.c.h.b16 %v641
        %v858 = vunpack.c.l.b16 %v642
        %v859 = vunpack.c.l.b16 %v643
        %v860 = vunpack.c.h.b16 %v643
        %v861 = vunpack.c.l.b16 %v644
        %v862 = vunpack.c.l.b16 %v645
        %v863 = vunpack.c.h.b16 %v645
        %v864 = vunpack.c.l.b16 %v646
        %v865 = vunpack.c.l.b16 %v647
        %v866 = vunpack.c.h.b16 %v647
        %v867 = vunpack.c.l.b16 %v648
        %v868 = vunpack.c.l.b16 %v649
        %v869 = vunpack.c.h.b16 %v649
        %v870 = vunpack.c.l.b16 %v650
        %v871 = vunpack.c.l.b16 %v651
        %v872 = vunpack.c.h.b16 %v651
        %v873 = vunpack.c.l.b16 %v652
        %v874 = vunpack.c.l.b16 %v653
        %v875 = vunpack.c.h.b16 %v653
        %v876 = vunpack.c.l.b16 %v654
        %v877 = vunpack.c.l.b16 %v655
        %v878 = vunpack.c.h.b16 %v655
        %v879 = vunpack.c.l.b16 %v656
        %v880 = vunpack.c.l.b16 %v657
        %v881 = vunpack.c.h.b16 %v657
        %v882 = vunpack.c.l.b16 %v658
        %v883 = vunpack.c.l.b16 %v659
        %v884 = vunpack.c.h.b16 %v659
        %v885 = vunpack.c.l.b16 %v660
        %v886 = vunpack.c.l.b16 %v661
        %v887 = vunpack.c.h.b16 %v661
        %v888 = vunpack.c.l.b16 %v662
        %v889 = vunpack.c.l.b16 %v663
        %v890 = vunpack.c.h.b16 %v663
        %v891 = vunpack.c.l.b16 %v664
        %v892 = vunpack.c.l.b16 %v665
        %v893 = vunpack.c.h.b16 %v665
        %v894 = vunpack.c.l.b16 %v666
        %v895 = vunpack.c.l.b16 %v667
        %v896 = vunpack.c.h.b16 %v667
        %v897 = vunpack.c.l.b16 %v668
        %v898 = vunpack.c.l.b16 %v669
        %v899 = vunpack.c.h.b16 %v669
        %v900 = vunpack.c.l.b16 %v670
        %v901 = vunpack.c.l.b16 %v671
        %v902 = vunpack.c.h.b16 %v671
        %v903 = vunpack.c.l.b16 %v672
        %v904 = vunpack.c.l.b16 %v673
        %v905 = vunpack.c.h.b16 %v673
        %v906 = vunpack.c.l.b16 %v674
        %v907 = vunpack.c.l.b16 %v675
        %v908 = vunpack.c.h.b16 %v675
        %v909 = vunpack.c.l.b16 %v676
        %v910 = vunpack.c.l.b16 %v677
        %v911 = vunpack.c.h.b16 %v677
        %v912 = vunpack.c.l.b16 %v678
        %v913 = vunpack.c.l.b16 %v679
        %v914 = vunpack.c.h.b16 %v679
        %v915 = vunpack.c.l.b16 %v680
        %v916 = vunpack.c.l.b16 %v681
        %v917 = vunpack.c.h.b16 %v681
        %v918 = vunpack.c.l.b16 %v682
        %v919 = vunpack.c.l.b16 %v683
        %v920 = vunpack.c.h.b16 %v683
        %v921 = vunpack.c.l.b16 %v684
        %v922 = vunpack.c.l.b16 %v685
        %v923 = vunpack.c.h.b16 %v685
        %v924 = vunpack.c.l.b16 %v686
        %v925 = vunpack.c.l.b16 %v687
        %v926 = vunpack.c.h.b16 %v687
        %v927 = vunpack.c.l.b16 %v688
        %v928 = vunpack.c.l.b16 %v689
        %v929 = vunpack.c.h.b16 %v689
        %v930 = vunpack.c.l.b16 %v690
        %v931 = vunpack.c.l.b16 %v691
        %v932 = vunpack.c.h.b16 %v691
        %v933 = vunpack.c.l.b16 %v692
        %v934 = vunpack.c.l.b16 %v693
        %v935 = vunpack.c.h.b16 %v693
        %v936 = vunpack.c.l.b16 %v694
        %v937 = vunpack.c.l.b16 %v695
        %v938 = vunpack.c.h.b16 %v695
        %v939 = vunpack.c.l.b16 %v696
        %v940 = vunpack.c.l.b16 %v697
        %v941 = vunpack.c.h.b16 %v697
        %v942 = vunpack.c.l.b16 %v698
        %v943 = vunpack.c.l.b16 %v699
        %v944 = vunpack.c.h.b16 %v699
        %v945 = vunpack.c.l.b16 %v700
        %v946 = vunpack.c.l.b16 %v701
        %v947 = vunpack.c.h.b16 %v701
        %v948 = vunpack.c.l.b16 %v702
        %v949 = vunpack.c.l.b16 %v703
        %v950 = vunpack.c.h.b16 %v703
        %v951 = vunpack.c.l.b16 %v704
        %v952 = vunpack.c.l.b16 %v705
        %v953 = vunpack.c.h.b16 %v705
        %v954 = vunpack.c.l.b16 %v706
        %v955 = vunpack.c.l.b16 %v707
        %v956 = vunpack.c.h.b16 %v707
        %v957 = vunpack.c.l.b16 %v708
        %v958 = vunpack.c.l.b16 %v709
        %v959 = vunpack.c.h.b16 %v709
        %v960 = vunpack.c.l.b16 %v710
        %v961 = vunpack.c.l.b16 %v711
        %v962 = vunpack.c.h.b16 %v711
        %v963 = vunpack.c.l.b16 %v712
        %v964 = vunpack.c.l.b16 %v713
        %v965 = vunpack.c.h.b16 %v713
        %v966 = vunpack.c.l.b16 %v714
        %v967 = vunpack.c.l.b16 %v715
        %v968 = vunpack.c.h.b16 %v715
        %v969 = vunpack.c.l.b16 %v716
        %v970 = vunpack.c.l.b16 %v717
        %v971 = vunpack.c.h.b16 %v717
        %v972 = vunpack.c.l.b16 %v718
        %v973 = vunpack.c.l.b16 %v719
        %v974 = vunpack.c.h.b16 %v719
        %v975 = vunpack.c.l.b16 %v720
        %v976 = vunpack.c.l.b16 %v721
        %v977 = vunpack.c.h.b16 %v721
        %v978 = vunpack.c.l.b16 %v722
        %v979 = vunpack.c.l.b16 %v723
        %v980 = vunpack.c.h.b16 %v723
        %v981 = vunpack.c.l.b16 %v724
        %v982 = vpack.c.b16 %v841, %v838
        %v983 = vpack.c.b16 %v842, %v839
        %v984 = vpack.c.b16 %v843, %v840
        %v985 = vpack.c.b16 %v847, %v844
        %v986 = vpack.c.b16 %v848, %v845
        %v987 = vpack.c.b16 %v849, %v846
        %v988 = vpack.c.b16 %v853, %v850
        %v989 = vpack.c.b16 %v854, %v851
        %v990 = vpack.c.b16 %v855, %v852
        %v991 = vpack.c.b16 %v859, %v856
        %v992 = vpack.c.b16 %v860, %v857
        %v993 = vpack.c.b16 %v861, %v858
        %v994 = vpack.c.b16 %v865, %v862
        %v995 = vpack.c.b16 %v866, %v863
        %v996 = vpack.c.b16 %v867, %v864
        %v997 = vpack.c.b16 %v871, %v868
        %v998 = vpack.c.b16 %v872, %v869
        %v999 = vpack.c.b16 %v873, %v870
        %v1000 = vpack.c.b16 %v877, %v874
        %v1001 = vpack.c.b16 %v878, %v875
        %v1002 = vpack.c.b16 %v879, %v876
        %v1003 = vpack.c.b16 %v883, %v880
        %v1004 = vpack.c.b16 %v884, %v881
        %v1005 = vpack.c.b16 %v885, %v882
        %v1006 = vpack.c.b16 %v889, %v886
        %v1007 = vpack.c.b16 %v890, %v887
        %v1008 = vpack.c.b16 %v891, %v888
        %v1009 = vpack.c.b16 %v895, %v892
        %v1010 = vpack.c.b16 %v896, %v893
        %v1011 = vpack.c.b16 %v897, %v894
        %v1012 = vpack.c.b16 %v901, %v898
        %v1013 = vpack.c.b16 %v902, %v899
        %v1014 = vpack.c.b16 %v903, %v900
        %v1015 = vpack.c.b16 %v907, %v904
        %v1016 = vpack.c.b16 %v908, %v905
        %v1017 = vpack.c.b16 %v909, %v906
        %v1018 = vpack.c.b16 %v913, %v910
        %v1019 = vpack.c.b16 %v914, %v911
        %v1020 = vpack.c.b16 %v915, %v912
        %v1021 = vpack.c.b16 %v919, %v916
        %v1022 = vpack.c.b16 %v920, %v917
        %v1023 = vpack.c.b16 %v921, %v918
        %v1024 = vpack.c.b16 %v925, %v922
        %v1025 = vpack.c.b16 %v926, %v923
        %v1026 = vpack.c.b16 %v927, %v924
        %v1027 = vpack.c.b16 %v931, %v928
        %v1028 = vpack.c.b16 %v932, %v929
        %v1029 = vpack.c.b16 %v933, %v930
        %v1030 = vpack.c.b16 %v937, %v934
        %v1031 = vpack.c.b16 %v938, %v935
        %v1032 = vpack.c.b16 %v939, %v936
        %v1033 = vpack.c.b16 %v943, %v940
        %v1034 = vpack.c.b16 %v944, %v941
        %v1035 = vpack.c.b16 %v945, %v942
        %v1036 = vpack.c.b16 %v949, %v946
        %v1037 = vpack.c.b16 %v950, %v947
        %v1038 = vpack.c.b16 %v951, %v948
        %v1039 = vpack.c.b16 %v955, %v952
        %v1040 = vpack.c.b16 %v956, %v953
        %v1041 = vpack.c.b16 %v957, %v954
        %v1042 = vpack.c.b16 %v961, %v958
        %v1043 = vpack.c.b16 %v962, %v959
        %v1044 = vpack.c.b16 %v963, %v960
        %v1045 = vpack.c.b16 %v967, %v964
        %v1046 = vpack.c.b16 %v968, %v965
        %v1047 = vpack.c.b16 %v969, %v966
        %v1048 = vpack.c.b16 %v973, %v970
        %v1049 = vpack.c.b16 %v974, %v971
        %v1050 = vpack.c.b16 %v975, %v972
        %v1051 = vpack.c.b16 %v979, %v976
        %v1052 = vpack.c.b16 %v980, %v977
        %v1053 = vpack.c.b16 %v981, %v978
        %1126 = vmatprep.subr.bf16.mxu0 %v983
        %1127 = vmatpush1.bf16.msra.mxu0 %v982
        %1128 = vmatprep.subr.bf16.mxu0 %v986
        %1129 = vmatpush1.bf16.msra.mxu0 %v985
        %1130 = vmatprep.subr.bf16.mxu0 %v989
        %1131 = vmatpush1.bf16.msra.mxu0 %v988
        %1132 = vmatprep.subr.bf16.mxu0 %v992
        %1133 = vmatpush1.bf16.msra.mxu0 %v991
        %1134 = vmatprep.subr.bf16.mxu0 %v995
        %1135 = vmatpush1.bf16.msra.mxu0 %v994
        %1136 = vmatprep.subr.bf16.mxu0 %v998
        %1137 = vmatpush1.bf16.msra.mxu0 %v997
        %1138 = vmatprep.subr.bf16.mxu0 %v1001
        %1139 = vmatpush1.bf16.msra.mxu0 %v1000
        %1140 = vmatprep.subr.bf16.mxu0 %v1004
        %1141 = vmatpush1.bf16.msra.mxu0 %v1003
        %1142 = vmatprep.subr.bf16.mxu0 %v1007
        %1143 = vmatpush1.bf16.msra.mxu0 %v1006
        %1144 = vmatprep.subr.bf16.mxu0 %v1010
        %1145 = vmatpush1.bf16.msra.mxu0 %v1009
        %1146 = vmatprep.subr.bf16.mxu0 %v1013
        %1147 = vmatpush1.bf16.msra.mxu0 %v1012
        %1148 = vmatprep.subr.bf16.mxu0 %v1016
        %1149 = vmatpush1.bf16.msra.mxu0 %v1015
        %1150 = vmatprep.subr.bf16.mxu0 %v1019
        %1151 = vmatpush1.bf16.msra.mxu0 %v1018
        %1152 = vmatprep.subr.bf16.mxu0 %v1022
        %1153 = vmatpush1.bf16.msra.mxu0 %v1021
        %1154 = vmatprep.subr.bf16.mxu0 %v1025
        %1155 = vmatpush1.bf16.msra.mxu0 %v1024
        %1156 = vmatprep.subr.bf16.mxu0 %v1028
        %1157 = vmatpush1.bf16.msra.mxu0 %v1027
        %1158 = vmatprep.mubr.bf16.mxu0 %v606
        %1159 = vmatmul.mubr.bf16.gmra.mrb[0].mxu0 %v605
        %v1160 = vpop.f32.mrb[0].mxu0
        %v1161 = vadd.f32 %v730, %v1160
        %v1162 = vpop.f32.mrb[0].mxu0
        %v1163 = vadd.f32 %v734, %v1162
        %v1164 = vpop.f32.mrb[0].mxu0
        %v1165 = vadd.f32 %v730, %v1164
        %v1166 = vpop.f32.mrb[0].mxu0
        %v1167 = vadd.f32 %v734, %v1166
        %1168 = vmatprep.mubr.bf16.mxu0 %v609
        %1169 = vmatmul.mubr.bf16.gmra.mrb[0].mxu0 %v608
        %v1170 = vpop.f32.mrb[0].mxu0
        %v1171 = vadd.f32 %v730, %v1170
        %v1172 = vpop.f32.mrb[0].mxu0
        %v1173 = vadd.f32 %v734, %v1172
        %v1174 = vpop.f32.mrb[0].mxu0
        %v1175 = vadd.f32 %v730, %v1174
        %v1176 = vpop.f32.mrb[0].mxu0
        %v1177 = vadd.f32 %v734, %v1176
        %1178 = vmatprep.mubr.bf16.mxu0 %v612
        %1179 = vmatmul.mubr.bf16.gmra.mrb[0].mxu0 %v611
        %v1180 = vpop.f32.mrb[0].mxu0
        %v1181 = vadd.f32 %v730, %v1180
        %v1182 = vpop.f32.mrb[0].mxu0
        %v1183 = vadd.f32 %v734, %v1182
        %v1184 = vpop.f32.mrb[0].mxu0
        %v1185 = vadd.f32 %v730, %v1184
        %v1186 = vpop.f32.mrb[0].mxu0
        %v1187 = vadd.f32 %v734, %v1186
        %1188 = vmatprep.mubr.bf16.mxu0 %v615
        %1189 = vmatmul.mubr.bf16.gmra.mrb[0].mxu0 %v614
        %v1190 = vpop.f32.mrb[0].mxu0
        %v1191 = vadd.f32 %v730, %v1190
        %v1192 = vpop.f32.mrb[0].mxu0
        %v1193 = vadd.f32 %v734, %v1192
        %v1194 = vpop.f32.mrb[0].mxu0
        %v1195 = vadd.f32 %v730, %v1194
        %v1196 = vpop.f32.mrb[0].mxu0
        %v1197 = vadd.f32 %v734, %v1196
        %1198 = vmatprep.mubr.bf16.mxu0 %v618
        %1199 = vmatmul.mubr.bf16.gmra.mrb[0].mxu0 %v617
        %v1200 = vpop.f32.mrb[0].mxu0
        %v1201 = vadd.f32 %v730, %v1200
        %v1202 = vpop.f32.mrb[0].mxu0
        %v1203 = vadd.f32 %v734, %v1202
        %v1204 = vpop.f32.mrb[0].mxu0
        %v1205 = vadd.f32 %v730, %v1204
        %v1206 = vpop.f32.mrb[0].mxu0
        %v1207 = vadd.f32 %v734, %v1206
        %1208 = vmatprep.mubr.bf16.mxu0 %v621
        %1209 = vmatmul.mubr.bf16.gmra.mrb[0].mxu0 %v620
        %v1210 = vpop.f32.mrb[0].mxu0
        %v1211 = vadd.f32 %v730, %v1210
        %v1212 = vpop.f32.mrb[0].mxu0
        %v1213 = vadd.f32 %v734, %v1212
        %v1214 = vpop.f32.mrb[0].mxu0
        %v1215 = vadd.f32 %v730, %v1214
        %v1216 = vpop.f32.mrb[0].mxu0
        %v1217 = vadd.f32 %v734, %v1216
        %1218 = vmatprep.mubr.bf16.mxu0 %v624
        %1219 = vmatmul.mubr.bf16.gmra.mrb[0].mxu0 %v623
        %v1220 = vpop.f32.mrb[0].mxu0
        %v1221 = vadd.f32 %v730, %v1220
        %v1222 = vpop.f32.mrb[0].mxu0
        %v1223 = vadd.f32 %v734, %v1222
        %v1224 = vpop.f32.mrb[0].mxu0
        %v1225 = vadd.f32 %v730, %v1224
        %v1226 = vpop.f32.mrb[0].mxu0
        %v1227 = vadd.f32 %v734, %v1226
        %1228 = vmatprep.mubr.bf16.mxu0 %v627
        %1229 = vmatmul.mubr.bf16.gmra.mrb[0].mxu0 %v626
        %v1230 = vpop.f32.mrb[0].mxu0
        %v1231 = vadd.f32 %v730, %v1230
        %v1232 = vpop.f32.mrb[0].mxu0
        %v1233 = vadd.f32 %v734, %v1232
        %v1234 = vpop.f32.mrb[0].mxu0
        %v1235 = vadd.f32 %v730, %v1234
        %v1236 = vpop.f32.mrb[0].mxu0
        %v1237 = vadd.f32 %v734, %v1236
        %1238 = vdwg.mxu0
        %1239 = vmatprep.subr.bf16.mxu0 %v1031
        %1240 = vmatpush1.bf16.msra.mxu0 %v1030
        %1241 = vmatprep.subr.bf16.mxu0 %v1034
        %1242 = vmatpush1.bf16.msra.mxu0 %v1033
        %1243 = vmatprep.subr.bf16.mxu0 %v1037
        %1244 = vmatpush1.bf16.msra.mxu0 %v1036
        %1245 = vmatprep.subr.bf16.mxu0 %v1040
        %1246 = vmatpush1.bf16.msra.mxu0 %v1039
        %1247 = vmatprep.subr.bf16.mxu0 %v1043
        %1248 = vmatpush1.bf16.msra.mxu0 %v1042
        %1249 = vmatprep.subr.bf16.mxu0 %v1046
        %1250 = vmatpush1.bf16.msra.mxu0 %v1045
        %1251 = vmatprep.subr.bf16.mxu0 %v1049
        %1252 = vmatpush1.bf16.msra.mxu0 %v1048
        %1253 = vmatprep.subr.bf16.mxu0 %v1052
        %1254 = vmatpush1.bf16.msra.mxu0 %v1051
        %1255 = vmatprep.subr.bf16.mxu0 0
        %1256 = vmatpush1.bf16.msra.mxu0 0
        %1257 = vmatprep.subr.bf16.mxu0 0
        %1258 = vmatpush1.bf16.msra.mxu0 0
        %1259 = vmatprep.subr.bf16.mxu0 0
        %1260 = vmatpush1.bf16.msra.mxu0 0
        %1261 = vmatprep.subr.bf16.mxu0 0
        %1262 = vmatpush1.bf16.msra.mxu0 0
        %1263 = vmatprep.subr.bf16.mxu0 0
        %1264 = vmatpush1.bf16.msra.mxu0 0
        %1265 = vmatprep.subr.bf16.mxu0 0
        %1266 = vmatpush1.bf16.msra.mxu0 0
        %1267 = vmatprep.subr.bf16.mxu0 0
        %1268 = vmatpush1.bf16.msra.mxu0 0
        %1269 = vmatprep.subr.bf16.mxu0 0
        %1270 = vmatpush1.bf16.msra.mxu0 0
        %1271 = vmatprep.mubr.bf16.mxu0 0
        %1272 = vmatmul.mubr.bf16.gmra.mrb[0].mxu0 %v607
        %v1273 = vpop.f32.mrb[0].mxu0
        %v1274 = vadd.f32 %v1161, %v1273
        %v1275 = vpop.f32.mrb[0].mxu0
        %v1276 = vadd.f32 %v1163, %v1275
        %v1277 = vpop.f32.mrb[0].mxu0
        %v1278 = vadd.f32 %v1165, %v1277
        %v1279 = vpop.f32.mrb[0].mxu0
        %v1280 = vadd.f32 %v1167, %v1279
        %1281 = vmatprep.mubr.bf16.mxu0 0
        %1282 = vmatmul.mubr.bf16.gmra.mrb[0].mxu0 %v610
        %v1283 = vpop.f32.mrb[0].mxu0
        %v1284 = vadd.f32 %v1171, %v1283
        %v1285 = vpop.f32.mrb[0].mxu0
        %v1286 = vadd.f32 %v1173, %v1285
        %v1287 = vpop.f32.mrb[0].mxu0
        %v1288 = vadd.f32 %v1175, %v1287
        %v1289 = vpop.f32.mrb[0].mxu0
        %v1290 = vadd.f32 %v1177, %v1289
        %1291 = vmatprep.mubr.bf16.mxu0 0
        %1292 = vmatmul.mubr.bf16.gmra.mrb[0].mxu0 %v613
        %v1293 = vpop.f32.mrb[0].mxu0
        %v1294 = vadd.f32 %v1181, %v1293
        %v1295 = vpop.f32.mrb[0].mxu0
        %v1296 = vadd.f32 %v1183, %v1295
        %v1297 = vpop.f32.mrb[0].mxu0
        %v1298 = vadd.f32 %v1185, %v1297
        %v1299 = vpop.f32.mrb[0].mxu0
        %v1300 = vadd.f32 %v1187, %v1299
        %1301 = vmatprep.mubr.bf16.mxu0 0
        %1302 = vmatmul.mubr.bf16.gmra.mrb[0].mxu0 %v616
        %v1303 = vpop.f32.mrb[0].mxu0
        %v1304 = vadd.f32 %v1191, %v1303
        %v1305 = vpop.f32.mrb[0].mxu0
        %v1306 = vadd.f32 %v1193, %v1305
        %v1307 = vpop.f32.mrb[0].mxu0
        %v1308 = vadd.f32 %v1195, %v1307
        %v1309 = vpop.f32.mrb[0].mxu0
        %v1310 = vadd.f32 %v1197, %v1309
        %1311 = vmatprep.mubr.bf16.mxu0 0
        %1312 = vmatmul.mubr.bf16.gmra.mrb[0].mxu0 %v619
        %v1313 = vpop.f32.mrb[0].mxu0
        %v1314 = vadd.f32 %v1201, %v1313
        %v1315 = vpop.f32.mrb[0].mxu0
        %v1316 = vadd.f32 %v1203, %v1315
        %v1317 = vpop.f32.mrb[0].mxu0
        %v1318 = vadd.f32 %v1205, %v1317
        %v1319 = vpop.f32.mrb[0].mxu0
        %v1320 = vadd.f32 %v1207, %v1319
        %1321 = vmatprep.mubr.bf16.mxu0 0
        %1322 = vmatmul.mubr.bf16.gmra.mrb[0].mxu0 %v622
        %v1323 = vpop.f32.mrb[0].mxu0
        %v1324 = vadd.f32 %v1211, %v1323
        %v1325 = vpop.f32.mrb[0].mxu0
        %v1326 = vadd.f32 %v1213, %v1325
        %v1327 = vpop.f32.mrb[0].mxu0
        %v1328 = vadd.f32 %v1215, %v1327
        %v1329 = vpop.f32.mrb[0].mxu0
        %v1330 = vadd.f32 %v1217, %v1329
        %1331 = vmatprep.mubr.bf16.mxu0 0
        %1332 = vmatmul.mubr.bf16.gmra.mrb[0].mxu0 %v625
        %v1333 = vpop.f32.mrb[0].mxu0
        %v1334 = vadd.f32 %v1221, %v1333
        %v1335 = vpop.f32.mrb[0].mxu0
        %v1336 = vadd.f32 %v1223, %v1335
        %v1337 = vpop.f32.mrb[0].mxu0
        %v1338 = vadd.f32 %v1225, %v1337
        %v1339 = vpop.f32.mrb[0].mxu0
        %v1340 = vadd.f32 %v1227, %v1339
        %1341 = vmatprep.mubr.bf16.mxu0 0
        %1342 = vmatmul.mubr.bf16.gmra.mrb[0].mxu0 %v628
        %v1343 = vpop.f32.mrb[0].mxu0
        %v1344 = vadd.f32 %v1231, %v1343
        %v1345 = vpop.f32.mrb[0].mxu0
        %v1346 = vadd.f32 %v1233, %v1345
        %v1347 = vpop.f32.mrb[0].mxu0
        %v1348 = vadd.f32 %v1235, %v1347
        %v1349 = vpop.f32.mrb[0].mxu0
        %v1350 = vadd.f32 %v1237, %v1349
        %1351 = vdwg.mxu0
        %1352 = vmatprep.subr.bf16.mxu0 0
        %1353 = vmatpush1.bf16.msra.mxu0 %v984
        %1354 = vmatprep.subr.bf16.mxu0 0
        %1355 = vmatpush1.bf16.msra.mxu0 %v987
        %1356 = vmatprep.subr.bf16.mxu0 0
        %1357 = vmatpush1.bf16.msra.mxu0 %v990
        %1358 = vmatprep.subr.bf16.mxu0 0
        %1359 = vmatpush1.bf16.msra.mxu0 %v993
        %1360 = vmatprep.subr.bf16.mxu0 0
        %1361 = vmatpush1.bf16.msra.mxu0 %v996
        %1362 = vmatprep.subr.bf16.mxu0 0
        %1363 = vmatpush1.bf16.msra.mxu0 %v999
        %1364 = vmatprep.subr.bf16.mxu0 0
        %1365 = vmatpush1.bf16.msra.mxu0 %v1002
        %1366 = vmatprep.subr.bf16.mxu0 0
        %1367 = vmatpush1.bf16.msra.mxu0 %v1005
        %1368 = vmatprep.subr.bf16.mxu0 0
        %1369 = vmatpush1.bf16.msra.mxu0 %v1008
        %1370 = vmatprep.subr.bf16.mxu0 0
        %1371 = vmatpush1.bf16.msra.mxu0 %v1011
        %1372 = vmatprep.subr.bf16.mxu0 0
        %1373 = vmatpush1.bf16.msra.mxu0 %v1014
        %1374 = vmatprep.subr.bf16.mxu0 0
        %1375 = vmatpush1.bf16.msra.mxu0 %v1017
        %1376 = vmatprep.subr.bf16.mxu0 0
        %1377 = vmatpush1.bf16.msra.mxu0 %v1020
        %1378 = vmatprep.subr.bf16.mxu0 0
        %1379 = vmatpush1.bf16.msra.mxu0 %v1023
        %1380 = vmatprep.subr.bf16.mxu0 0
        %1381 = vmatpush1.bf16.msra.mxu0 %v1026
        %1382 = vmatprep.subr.bf16.mxu0 0
        %1383 = vmatpush1.bf16.msra.mxu0 %v1029
        %1384 = vmatprep.mubr.bf16.mxu0 %v606
        %1385 = vmatmul.mubr.bf16.gmra.mrb[0].mxu0 %v605
        %v1386 = vpop.f32.mrb[0].mxu0
        %v1387 = vadd.f32 %v738, %v1386
        %v1388 = vpop.f32.mrb[0].mxu0
        %v1389 = vpop.f32.mrb[0].mxu0
        %v1390 = vadd.f32 %v738, %v1389
        %v1391 = vpop.f32.mrb[0].mxu0
        %1392 = vmatprep.mubr.bf16.mxu0 %v609
        %1393 = vmatmul.mubr.bf16.gmra.mrb[0].mxu0 %v608
        %v1394 = vpop.f32.mrb[0].mxu0
        %v1395 = vadd.f32 %v738, %v1394
        %v1396 = vpop.f32.mrb[0].mxu0
        %v1397 = vpop.f32.mrb[0].mxu0
        %v1398 = vadd.f32 %v738, %v1397
        %v1399 = vpop.f32.mrb[0].mxu0
        %1400 = vmatprep.mubr.bf16.mxu0 %v612
        %1401 = vmatmul.mubr.bf16.gmra.mrb[0].mxu0 %v611
        %v1402 = vpop.f32.mrb[0].mxu0
        %v1403 = vadd.f32 %v738, %v1402
        %v1404 = vpop.f32.mrb[0].mxu0
        %v1405 = vpop.f32.mrb[0].mxu0
        %v1406 = vadd.f32 %v738, %v1405
        %v1407 = vpop.f32.mrb[0].mxu0
        %1408 = vmatprep.mubr.bf16.mxu0 %v615
        %1409 = vmatmul.mubr.bf16.gmra.mrb[0].mxu0 %v614
        %v1410 = vpop.f32.mrb[0].mxu0
        %v1411 = vadd.f32 %v738, %v1410
        %v1412 = vpop.f32.mrb[0].mxu0
        %v1413 = vpop.f32.mrb[0].mxu0
        %v1414 = vadd.f32 %v738, %v1413
        %v1415 = vpop.f32.mrb[0].mxu0
        %1416 = vmatprep.mubr.bf16.mxu0 %v618
        %1417 = vmatmul.mubr.bf16.gmra.mrb[0].mxu0 %v617
        %v1418 = vpop.f32.mrb[0].mxu0
        %v1419 = vadd.f32 %v738, %v1418
        %v1420 = vpop.f32.mrb[0].mxu0
        %v1421 = vpop.f32.mrb[0].mxu0
        %v1422 = vadd.f32 %v738, %v1421
        %v1423 = vpop.f32.mrb[0].mxu0
        %1424 = vmatprep.mubr.bf16.mxu0 %v621
        %1425 = vmatmul.mubr.bf16.gmra.mrb[0].mxu0 %v620
        %v1426 = vpop.f32.mrb[0].mxu0
        %v1427 = vadd.f32 %v738, %v1426
        %v1428 = vpop.f32.mrb[0].mxu0
        %v1429 = vpop.f32.mrb[0].mxu0
        %v1430 = vadd.f32 %v738, %v1429
        %v1431 = vpop.f32.mrb[0].mxu0
        %1432 = vmatprep.mubr.bf16.mxu0 %v624
        %1433 = vmatmul.mubr.bf16.gmra.mrb[0].mxu0 %v623
        %v1434 = vpop.f32.mrb[0].mxu0
        %v1435 = vadd.f32 %v738, %v1434
        %v1436 = vpop.f32.mrb[0].mxu0
        %v1437 = vpop.f32.mrb[0].mxu0
        %v1438 = vadd.f32 %v738, %v1437
        %v1439 = vpop.f32.mrb[0].mxu0
        %1440 = vmatprep.mubr.bf16.mxu0 %v627
        %1441 = vmatmul.mubr.bf16.gmra.mrb[0].mxu0 %v626
        %v1442 = vpop.f32.mrb[0].mxu0
        %v1443 = vadd.f32 %v738, %v1442
        %v1444 = vpop.f32.mrb[0].mxu0
        %v1445 = vpop.f32.mrb[0].mxu0
        %v1446 = vadd.f32 %v738, %v1445
        %v1447 = vpop.f32.mrb[0].mxu0
        %1448 = vdwg.mxu0
        %1449 = vmatprep.subr.bf16.mxu0 0
        %1450 = vmatpush1.bf16.msra.mxu0 %v1032
        %1451 = vmatprep.subr.bf16.mxu0 0
        %1452 = vmatpush1.bf16.msra.mxu0 %v1035
        %1453 = vmatprep.subr.bf16.mxu0 0
        %1454 = vmatpush1.bf16.msra.mxu0 %v1038
        %1455 = vmatprep.subr.bf16.mxu0 0
        %1456 = vmatpush1.bf16.msra.mxu0 %v1041
        %1457 = vmatprep.subr.bf16.mxu0 0
        %1458 = vmatpush1.bf16.msra.mxu0 %v1044
        %1459 = vmatprep.subr.bf16.mxu0 0
        %1460 = vmatpush1.bf16.msra.mxu0 %v1047
        %1461 = vmatprep.subr.bf16.mxu0 0
        %1462 = vmatpush1.bf16.msra.mxu0 %v1050
        %1463 = vmatprep.subr.bf16.mxu0 0
        %1464 = vmatpush1.bf16.msra.mxu0 %v1053
        %1465 = vmatprep.subr.bf16.mxu0 0
        %1466 = vmatpush1.bf16.msra.mxu0 0
        %1467 = vmatprep.subr.bf16.mxu0 0
        %1468 = vmatpush1.bf16.msra.mxu0 0
        %1469 = vmatprep.subr.bf16.mxu0 0
        %1470 = vmatpush1.bf16.msra.mxu0 0
        %1471 = vmatprep.subr.bf16.mxu0 0
        %1472 = vmatpush1.bf16.msra.mxu0 0
        %1473 = vmatprep.subr.bf16.mxu0 0
        %1474 = vmatpush1.bf16.msra.mxu0 0
        %1475 = vmatprep.subr.bf16.mxu0 0
        %1476 = vmatpush1.bf16.msra.mxu0 0
        %1477 = vmatprep.subr.bf16.mxu0 0
        %1478 = vmatpush1.bf16.msra.mxu0 0
        %1479 = vmatprep.subr.bf16.mxu0 0
        %1480 = vmatpush1.bf16.msra.mxu0 0
        %1481 = vmatprep.mubr.bf16.mxu0 0
        %1482 = vmatmul.mubr.bf16.gmra.mrb[0].mxu0 %v607
        %v1483 = vpop.f32.mrb[0].mxu0
        %v1484 = vadd.f32 %v1387, %v1483
        %v1485 = vpop.f32.mrb[0].mxu0
        %v1486 = vpop.f32.mrb[0].mxu0
        %v1487 = vadd.f32 %v1390, %v1486
        %v1488 = vpop.f32.mrb[0].mxu0
        %1489 = vmatprep.mubr.bf16.mxu0 0
        %1490 = vmatmul.mubr.bf16.gmra.mrb[0].mxu0 %v610
        %v1491 = vpop.f32.mrb[0].mxu0
        %v1492 = vadd.f32 %v1395, %v1491
        %v1493 = vpop.f32.mrb[0].mxu0
        %v1494 = vpop.f32.mrb[0].mxu0
        %v1495 = vadd.f32 %v1398, %v1494
        %v1496 = vpop.f32.mrb[0].mxu0
        %1497 = vmatprep.mubr.bf16.mxu0 0
        %1498 = vmatmul.mubr.bf16.gmra.mrb[0].mxu0 %v613
        %v1499 = vpop.f32.mrb[0].mxu0
        %v1500 = vadd.f32 %v1403, %v1499
        %v1501 = vpop.f32.mrb[0].mxu0
        %v1502 = vpop.f32.mrb[0].mxu0
        %v1503 = vadd.f32 %v1406, %v1502
        %v1504 = vpop.f32.mrb[0].mxu0
        %1505 = vmatprep.mubr.bf16.mxu0 0
        %1506 = vmatmul.mubr.bf16.gmra.mrb[0].mxu0 %v616
        %v1507 = vpop.f32.mrb[0].mxu0
        %v1508 = vadd.f32 %v1411, %v1507
        %v1509 = vpop.f32.mrb[0].mxu0
        %v1510 = vpop.f32.mrb[0].mxu0
        %v1511 = vadd.f32 %v1414, %v1510
        %v1512 = vpop.f32.mrb[0].mxu0
        %1513 = vmatprep.mubr.bf16.mxu0 0
        %1514 = vmatmul.mubr.bf16.gmra.mrb[0].mxu0 %v619
        %v1515 = vpop.f32.mrb[0].mxu0
        %v1516 = vadd.f32 %v1419, %v1515
        %v1517 = vpop.f32.mrb[0].mxu0
        %v1518 = vpop.f32.mrb[0].mxu0
        %v1519 = vadd.f32 %v1422, %v1518
        %v1520 = vpop.f32.mrb[0].mxu0
        %1521 = vmatprep.mubr.bf16.mxu0 0
        %1522 = vmatmul.mubr.bf16.gmra.mrb[0].mxu0 %v622
        %v1523 = vpop.f32.mrb[0].mxu0
        %v1524 = vadd.f32 %v1427, %v1523
        %v1525 = vpop.f32.mrb[0].mxu0
        %v1526 = vpop.f32.mrb[0].mxu0
        %v1527 = vadd.f32 %v1430, %v1526
        %v1528 = vpop.f32.mrb[0].mxu0
        %1529 = vmatprep.mubr.bf16.mxu0 0
        %1530 = vmatmul.mubr.bf16.gmra.mrb[0].mxu0 %v625
        %v1531 = vpop.f32.mrb[0].mxu0
        %v1532 = vadd.f32 %v1435, %v1531
        %v1533 = vpop.f32.mrb[0].mxu0
        %v1534 = vpop.f32.mrb[0].mxu0
        %v1535 = vadd.f32 %v1438, %v1534
        %v1536 = vpop.f32.mrb[0].mxu0
        %1537 = vmatprep.mubr.bf16.mxu0 0
        %1538 = vmatmul.mubr.bf16.gmra.mrb[0].mxu0 %v628
        %v1539 = vpop.f32.mrb[0].mxu0
        %v1540 = vadd.f32 %v1443, %v1539
        %v1541 = vpop.f32.mrb[0].mxu0
        %v1542 = vpop.f32.mrb[0].mxu0
        %v1543 = vadd.f32 %v1446, %v1542
        %v1544 = vpop.f32.mrb[0].mxu0
        %1545 = vdwg.mxu0
        %v1546 = vmax.f32 %v1274, 0.0
        %v1547 = vmax.f32 %v1276, 0.0
        %v1548 = vmax.f32 %v1484, 0.0
        %v1549 = vmax.f32 %v1278, 0.0
        %v1550 = vmax.f32 %v1280, 0.0
        %v1551 = vmax.f32 %v1487, 0.0
        %v1552 = vmax.f32 %v1284, 0.0
        %v1553 = vmax.f32 %v1286, 0.0
        %v1554 = vmax.f32 %v1492, 0.0
        %v1555 = vmax.f32 %v1288, 0.0
        %v1556 = vmax.f32 %v1290, 0.0
        %v1557 = vmax.f32 %v1495, 0.0
        %v1558 = vmax.f32 %v1294, 0.0
        %v1559 = vmax.f32 %v1296, 0.0
        %v1560 = vmax.f32 %v1500, 0.0
        %v1561 = vmax.f32 %v1298, 0.0
        %v1562 = vmax.f32 %v1300, 0.0
        %v1563 = vmax.f32 %v1503, 0.0
        %v1564 = vmax.f32 %v1304, 0.0
        %v1565 = vmax.f32 %v1306, 0.0
        %v1566 = vmax.f32 %v1508, 0.0
        %v1567 = vmax.f32 %v1308, 0.0
        %v1568 = vmax.f32 %v1310, 0.0
        %v1569 = vmax.f32 %v1511, 0.0
        %v1570 = vmax.f32 %v1314, 0.0
        %v1571 = vmax.f32 %v1316, 0.0
        %v1572 = vmax.f32 %v1516, 0.0
        %v1573 = vmax.f32 %v1318, 0.0
        %v1574 = vmax.f32 %v1320, 0.0
        %v1575 = vmax.f32 %v1519, 0.0
        %v1576 = vmax.f32 %v1324, 0.0
        %v1577 = vmax.f32 %v1326, 0.0
        %v1578 = vmax.f32 %v1524, 0.0
        %v1579 = vmax.f32 %v1328, 0.0
        %v1580 = vmax.f32 %v1330, 0.0
        %v1581 = vmax.f32 %v1527, 0.0
        %v1582 = vmax.f32 %v1334, 0.0
        %v1583 = vmax.f32 %v1336, 0.0
        %v1584 = vmax.f32 %v1532, 0.0
        %v1585 = vmax.f32 %v1338, 0.0
        %v1586 = vmax.f32 %v1340, 0.0
        %v1587 = vmax.f32 %v1535, 0.0
        %v1588 = vmax.f32 %v1344, 0.0
        %v1589 = vmax.f32 %v1346, 0.0
        %v1590 = vmax.f32 %v1540, 0.0
        %v1591 = vmax.f32 %v1348, 0.0
        %v1592 = vmax.f32 %v1350, 0.0
        %v1593 = vmax.f32 %v1543, 0.0
        %v1594 = vpack.c.bf16 %v1549, %v1546
        %v1595 = vpack.c.bf16 %v1550, %v1547
        %v1596 = vpack.c.bf16 %v1551, %v1548
        %v1597 = vpack.c.bf16 %v1555, %v1552
        %v1598 = vpack.c.bf16 %v1556, %v1553
        %v1599 = vpack.c.bf16 %v1557, %v1554
        %v1600 = vpack.c.bf16 %v1561, %v1558
        %v1601 = vpack.c.bf16 %v1562, %v1559
        %v1602 = vpack.c.bf16 %v1563, %v1560
        %v1603 = vpack.c.bf16 %v1567, %v1564
        %v1604 = vpack.c.bf16 %v1568, %v1565
        %v1605 = vpack.c.bf16 %v1569, %v1566
        %v1606 = vpack.c.bf16 %v1573, %v1570
        %v1607 = vpack.c.bf16 %v1574, %v1571
        %v1608 = vpack.c.bf16 %v1575, %v1572
        %v1609 = vpack.c.bf16 %v1579, %v1576
        %v1610 = vpack.c.bf16 %v1580, %v1577
        %v1611 = vpack.c.bf16 %v1581, %v1578
        %v1612 = vpack.c.bf16 %v1585, %v1582
        %v1613 = vpack.c.bf16 %v1586, %v1583
        %v1614 = vpack.c.bf16 %v1587, %v1584
        %v1615 = vpack.c.bf16 %v1591, %v1588
        %v1616 = vpack.c.bf16 %v1592, %v1589
        %v1617 = vpack.c.bf16 %v1593, %v1590
        %v1618 = vld [vmem:[%s3] sm:$0xf]
        %v1619 = vld [vmem:[%s3 + $0x4] sm:$0xf]
        %v1620 = vld [vmem:[%s3 + $0x8] sm:$0xf]
        %v1621 = vld [vmem:[%s3 + $0xc] sm:$0xf]
        %v1622 = vld [vmem:[%s3 + $0x10] sm:$0xf]
        %v1623 = vld [vmem:[%s3 + $0x14] sm:$0xf]
        %v1624 = vld [vmem:[%s3 + $0x18] sm:$0xf]
        %v1625 = vld [vmem:[%s3 + $0x1c] sm:$0xf]
        %v1626 = vld [vmem:[%s3 + $0x20] sm:$0xf]
        %v1627 = vld [vmem:[%s3 + $0x24] sm:$0xf]
        %v1628 = vld [vmem:[%s3 + $0x28] sm:$0xf]
        %v1629 = vld [vmem:[%s3 + $0x2c] sm:$0xf]
        %v1630 = vld [vmem:[%s3 + $0x30] sm:$0xf]
        %v1631 = vld [vmem:[%s3 + $0x34] sm:$0xf]
        %v1632 = vld [vmem:[%s3 + $0x38] sm:$0xf]
        %v1633 = vld [vmem:[%s3 + $0x3c] sm:$0xf]
        %v1634 = vld [vmem:[%s3 + $0x40] sm:$0xf]
        %v1635 = vld [vmem:[%s3 + $0x44] sm:$0xf]
        %v1636 = vld [vmem:[%s3 + $0x48] sm:$0xf]
        %v1637 = vld [vmem:[%s3 + $0x4c] sm:$0xf]
        %v1638 = vld [vmem:[%s3 + $0x50] sm:$0xf]
        %v1639 = vld [vmem:[%s3 + $0x54] sm:$0xf]
        %v1640 = vld [vmem:[%s3 + $0x58] sm:$0xf]
        %v1641 = vld [vmem:[%s3 + $0x5c] sm:$0xf]
        %v1642 = vld [vmem:[%s3 + $0x60] sm:$0xf]
        %v1643 = vld [vmem:[%s3 + $0x64] sm:$0xf]
        %v1644 = vld [vmem:[%s3 + $0x68] sm:$0xf]
        %v1645 = vld [vmem:[%s3 + $0x6c] sm:$0xf]
        %v1646 = vld [vmem:[%s3 + $0x70] sm:$0xf]
        %v1647 = vld [vmem:[%s3 + $0x74] sm:$0xf]
        %v1648 = vld [vmem:[%s3 + $0x78] sm:$0xf]
        %v1649 = vld [vmem:[%s3 + $0x7c] sm:$0xf]
        %v1650 = vld [vmem:[%s3 + $0x80] sm:$0xf]
        %v1651 = vld [vmem:[%s3 + $0x84] sm:$0xf]
        %v1652 = vld [vmem:[%s3 + $0x88] sm:$0xf]
        %v1653 = vld [vmem:[%s3 + $0x8c] sm:$0xf]
        %v1654 = vld [vmem:[%s3 + $0x90] sm:$0xf]
        %v1655 = vld [vmem:[%s3 + $0x94] sm:$0xf]
        %v1656 = vld [vmem:[%s3 + $0x98] sm:$0xf]
        %v1657 = vld [vmem:[%s3 + $0x9c] sm:$0xf]
        %v1658 = vld [vmem:[%s3 + $0xa0] sm:$0xf]
        %v1659 = vld [vmem:[%s3 + $0xa4] sm:$0xf]
        %v1660 = vld [vmem:[%s3 + $0xa8] sm:$0xf]
        %v1661 = vld [vmem:[%s3 + $0xac] sm:$0xf]
        %v1662 = vld [vmem:[%s3 + $0xb0] sm:$0xf]
        %v1663 = vld [vmem:[%s3 + $0xb4] sm:$0xf]
        %v1664 = vld [vmem:[%s3 + $0xb8] sm:$0xf]
        %v1665 = vld [vmem:[%s3 + $0xbc] sm:$0xf]
        %v1666 = vld [vmem:[#allocation8] sm:$0x1]
        %v1668 = vlaneseq
        %v1669 = vshrl.u32 %v1668, 7
        %v1670 = vsub.s32 0, %v1669
        %v1671 = vrot.slane %v1666, %v1670
        %v1721 = vunpack.c.l.b16 %v1618
        %v1722 = vunpack.c.l.b16 %v1619
        %v1723 = vunpack.c.l.b16 %v1620
        %v1724 = vunpack.c.l.b16 %v1621
        %v1725 = vunpack.c.l.b16 %v1622
        %v1726 = vunpack.c.l.b16 %v1623
        %v1727 = vunpack.c.l.b16 %v1624
        %v1728 = vunpack.c.l.b16 %v1625
        %v1729 = vunpack.c.l.b16 %v1626
        %v1730 = vunpack.c.l.b16 %v1627
        %v1731 = vunpack.c.l.b16 %v1628
        %v1732 = vunpack.c.l.b16 %v1629
        %v1733 = vunpack.c.l.b16 %v1630
        %v1734 = vunpack.c.l.b16 %v1631
        %v1735 = vunpack.c.l.b16 %v1632
        %v1736 = vunpack.c.l.b16 %v1633
        %v1737 = vunpack.c.l.b16 %v1634
        %v1738 = vunpack.c.l.b16 %v1635
        %v1739 = vunpack.c.l.b16 %v1636
        %v1740 = vunpack.c.l.b16 %v1637
        %v1741 = vunpack.c.l.b16 %v1638
        %v1742 = vunpack.c.l.b16 %v1639
        %v1743 = vunpack.c.l.b16 %v1640
        %v1744 = vunpack.c.l.b16 %v1641
        %v1745 = vunpack.c.l.b16 %v1642
        %v1746 = vunpack.c.l.b16 %v1643
        %v1747 = vunpack.c.l.b16 %v1644
        %v1748 = vunpack.c.l.b16 %v1645
        %v1749 = vunpack.c.l.b16 %v1646
        %v1750 = vunpack.c.l.b16 %v1647
        %v1751 = vunpack.c.l.b16 %v1648
        %v1752 = vunpack.c.l.b16 %v1649
        %v1753 = vunpack.c.l.b16 %v1650
        %v1754 = vunpack.c.l.b16 %v1651
        %v1755 = vunpack.c.l.b16 %v1652
        %v1756 = vunpack.c.l.b16 %v1653
        %v1757 = vunpack.c.l.b16 %v1654
        %v1758 = vunpack.c.l.b16 %v1655
        %v1759 = vunpack.c.l.b16 %v1656
        %v1760 = vunpack.c.l.b16 %v1657
        %v1761 = vunpack.c.l.b16 %v1658
        %v1762 = vunpack.c.l.b16 %v1659
        %v1763 = vunpack.c.l.b16 %v1660
        %v1764 = vunpack.c.l.b16 %v1661
        %v1765 = vunpack.c.l.b16 %v1662
        %v1766 = vunpack.c.l.b16 %v1663
        %v1767 = vunpack.c.l.b16 %v1664
        %v1768 = vunpack.c.l.b16 %v1665
        %v1769 = vpack.c.b16 %v1722, %v1721
        %v1770 = vpack.c.b16 %v1724, %v1723
        %v1771 = vpack.c.b16 %v1726, %v1725
        %v1772 = vpack.c.b16 %v1728, %v1727
        %v1773 = vpack.c.b16 %v1730, %v1729
        %v1774 = vpack.c.b16 %v1732, %v1731
        %v1775 = vpack.c.b16 %v1734, %v1733
        %v1776 = vpack.c.b16 %v1736, %v1735
        %v1777 = vpack.c.b16 %v1738, %v1737
        %v1778 = vpack.c.b16 %v1740, %v1739
        %v1779 = vpack.c.b16 %v1742, %v1741
        %v1780 = vpack.c.b16 %v1744, %v1743
        %v1781 = vpack.c.b16 %v1746, %v1745
        %v1782 = vpack.c.b16 %v1748, %v1747
        %v1783 = vpack.c.b16 %v1750, %v1749
        %v1784 = vpack.c.b16 %v1752, %v1751
        %v1785 = vpack.c.b16 %v1754, %v1753
        %v1786 = vpack.c.b16 %v1756, %v1755
        %v1787 = vpack.c.b16 %v1758, %v1757
        %v1788 = vpack.c.b16 %v1760, %v1759
        %v1789 = vpack.c.b16 %v1762, %v1761
        %v1790 = vpack.c.b16 %v1764, %v1763
        %v1791 = vpack.c.b16 %v1766, %v1765
        %v1792 = vpack.c.b16 %v1768, %v1767
        %1817 = vmatprep.subr.bf16.mxu0 0
        %1818 = vmatpush1.bf16.msra.mxu0 %v1769
        %1819 = vmatprep.subr.bf16.mxu0 0
        %1820 = vmatpush1.bf16.msra.mxu0 %v1770
        %1821 = vmatprep.subr.bf16.mxu0 0
        %1822 = vmatpush1.bf16.msra.mxu0 %v1771
        %1823 = vmatprep.subr.bf16.mxu0 0
        %1824 = vmatpush1.bf16.msra.mxu0 %v1772
        %1825 = vmatprep.subr.bf16.mxu0 0
        %1826 = vmatpush1.bf16.msra.mxu0 %v1773
        %1827 = vmatprep.subr.bf16.mxu0 0
        %1828 = vmatpush1.bf16.msra.mxu0 %v1774
        %1829 = vmatprep.subr.bf16.mxu0 0
        %1830 = vmatpush1.bf16.msra.mxu0 %v1775
        %1831 = vmatprep.subr.bf16.mxu0 0
        %1832 = vmatpush1.bf16.msra.mxu0 %v1776
        %1833 = vmatprep.subr.bf16.mxu0 0
        %1834 = vmatpush1.bf16.msra.mxu0 %v1777
        %1835 = vmatprep.subr.bf16.mxu0 0
        %1836 = vmatpush1.bf16.msra.mxu0 %v1778
        %1837 = vmatprep.subr.bf16.mxu0 0
        %1838 = vmatpush1.bf16.msra.mxu0 %v1779
        %1839 = vmatprep.subr.bf16.mxu0 0
        %1840 = vmatpush1.bf16.msra.mxu0 %v1780
        %1841 = vmatprep.subr.bf16.mxu0 0
        %1842 = vmatpush1.bf16.msra.mxu0 %v1781
        %1843 = vmatprep.subr.bf16.mxu0 0
        %1844 = vmatpush1.bf16.msra.mxu0 %v1782
        %1845 = vmatprep.subr.bf16.mxu0 0
        %1846 = vmatpush1.bf16.msra.mxu0 %v1783
        %1847 = vmatprep.subr.bf16.mxu0 0
        %1848 = vmatpush1.bf16.msra.mxu0 %v1784
        %1849 = vmatprep.mubr.bf16.mxu0 %v1595
        %1850 = vmatmul.mubr.bf16.gmra.mrb[0].mxu0 %v1594
        %v1851 = vpop.f32.mrb[0].mxu0
        %v1852 = vadd.f32 %v1671, %v1851
        %v1853 = vpop.f32.mrb[0].mxu0
        %v1854 = vpop.f32.mrb[0].mxu0
        %v1855 = vadd.f32 %v1671, %v1854
        %v1856 = vpop.f32.mrb[0].mxu0
        %1857 = vmatprep.mubr.bf16.mxu0 %v1598
        %1858 = vmatmul.mubr.bf16.gmra.mrb[0].mxu0 %v1597
        %v1859 = vpop.f32.mrb[0].mxu0
        %v1860 = vadd.f32 %v1671, %v1859
        %v1861 = vpop.f32.mrb[0].mxu0
        %v1862 = vpop.f32.mrb[0].mxu0
        %v1863 = vadd.f32 %v1671, %v1862
        %v1864 = vpop.f32.mrb[0].mxu0
        %1865 = vmatprep.mubr.bf16.mxu0 %v1601
        %1866 = vmatmul.mubr.bf16.gmra.mrb[0].mxu0 %v1600
        %v1867 = vpop.f32.mrb[0].mxu0
        %v1868 = vadd.f32 %v1671, %v1867
        %v1869 = vpop.f32.mrb[0].mxu0
        %v1870 = vpop.f32.mrb[0].mxu0
        %v1871 = vadd.f32 %v1671, %v1870
        %v1872 = vpop.f32.mrb[0].mxu0
        %1873 = vmatprep.mubr.bf16.mxu0 %v1604
        %1874 = vmatmul.mubr.bf16.gmra.mrb[0].mxu0 %v1603
        %v1875 = vpop.f32.mrb[0].mxu0
        %v1876 = vadd.f32 %v1671, %v1875
        %v1877 = vpop.f32.mrb[0].mxu0
        %v1878 = vpop.f32.mrb[0].mxu0
        %v1879 = vadd.f32 %v1671, %v1878
        %v1880 = vpop.f32.mrb[0].mxu0
        %1881 = vmatprep.mubr.bf16.mxu0 %v1607
        %1882 = vmatmul.mubr.bf16.gmra.mrb[0].mxu0 %v1606
        %v1883 = vpop.f32.mrb[0].mxu0
        %v1884 = vadd.f32 %v1671, %v1883
        %v1885 = vpop.f32.mrb[0].mxu0
        %v1886 = vpop.f32.mrb[0].mxu0
        %v1887 = vadd.f32 %v1671, %v1886
        %v1888 = vpop.f32.mrb[0].mxu0
        %1889 = vmatprep.mubr.bf16.mxu0 %v1610
        %1890 = vmatmul.mubr.bf16.gmra.mrb[0].mxu0 %v1609
        %v1891 = vpop.f32.mrb[0].mxu0
        %v1892 = vadd.f32 %v1671, %v1891
        %v1893 = vpop.f32.mrb[0].mxu0
        %v1894 = vpop.f32.mrb[0].mxu0
        %v1895 = vadd.f32 %v1671, %v1894
        %v1896 = vpop.f32.mrb[0].mxu0
        %1897 = vmatprep.mubr.bf16.mxu0 %v1613
        %1898 = vmatmul.mubr.bf16.gmra.mrb[0].mxu0 %v1612
        %v1899 = vpop.f32.mrb[0].mxu0
        %v1900 = vadd.f32 %v1671, %v1899
        %v1901 = vpop.f32.mrb[0].mxu0
        %v1902 = vpop.f32.mrb[0].mxu0
        %v1903 = vadd.f32 %v1671, %v1902
        %v1904 = vpop.f32.mrb[0].mxu0
        %1905 = vmatprep.mubr.bf16.mxu0 %v1616
        %1906 = vmatmul.mubr.bf16.gmra.mrb[0].mxu0 %v1615
        %v1907 = vpop.f32.mrb[0].mxu0
        %v1908 = vadd.f32 %v1671, %v1907
        %v1909 = vpop.f32.mrb[0].mxu0
        %v1910 = vpop.f32.mrb[0].mxu0
        %v1911 = vadd.f32 %v1671, %v1910
        %v1912 = vpop.f32.mrb[0].mxu0
        %1913 = vdwg.mxu0
        %1914 = vmatprep.subr.bf16.mxu0 0
        %1915 = vmatpush1.bf16.msra.mxu0 %v1785
        %1916 = vmatprep.subr.bf16.mxu0 0
        %1917 = vmatpush1.bf16.msra.mxu0 %v1786
        %1918 = vmatprep.subr.bf16.mxu0 0
        %1919 = vmatpush1.bf16.msra.mxu0 %v1787
        %1920 = vmatprep.subr.bf16.mxu0 0
        %1921 = vmatpush1.bf16.msra.mxu0 %v1788
        %1922 = vmatprep.subr.bf16.mxu0 0
        %1923 = vmatpush1.bf16.msra.mxu0 %v1789
        %1924 = vmatprep.subr.bf16.mxu0 0
        %1925 = vmatpush1.bf16.msra.mxu0 %v1790
        %1926 = vmatprep.subr.bf16.mxu0 0
        %1927 = vmatpush1.bf16.msra.mxu0 %v1791
        %1928 = vmatprep.subr.bf16.mxu0 0
        %1929 = vmatpush1.bf16.msra.mxu0 %v1792
        %1930 = vmatprep.subr.bf16.mxu0 0
        %1931 = vmatpush1.bf16.msra.mxu0 0
        %1932 = vmatprep.subr.bf16.mxu0 0
        %1933 = vmatpush1.bf16.msra.mxu0 0
        %1934 = vmatprep.subr.bf16.mxu0 0
        %1935 = vmatpush1.bf16.msra.mxu0 0
        %1936 = vmatprep.subr.bf16.mxu0 0
        %1937 = vmatpush1.bf16.msra.mxu0 0
        %1938 = vmatprep.subr.bf16.mxu0 0
        %1939 = vmatpush1.bf16.msra.mxu0 0
        %1940 = vmatprep.subr.bf16.mxu0 0
        %1941 = vmatpush1.bf16.msra.mxu0 0
        %1942 = vmatprep.subr.bf16.mxu0 0
        %1943 = vmatpush1.bf16.msra.mxu0 0
        %1944 = vmatprep.subr.bf16.mxu0 0
        %1945 = vmatpush1.bf16.msra.mxu0 0
        %1946 = vmatprep.mubr.bf16.mxu0 0
        %1947 = vmatmul.mubr.bf16.gmra.mrb[0].mxu0 %v1596
        %v1948 = vpop.f32.mrb[0].mxu0
        %v1949 = vadd.f32 %v1852, %v1948
        %v1950 = vpop.f32.mrb[0].mxu0
        %v1951 = vpop.f32.mrb[0].mxu0
        %v1952 = vadd.f32 %v1855, %v1951
        %v1953 = vpop.f32.mrb[0].mxu0
        %1954 = vmatprep.mubr.bf16.mxu0 0
        %1955 = vmatmul.mubr.bf16.gmra.mrb[0].mxu0 %v1599
        %v1956 = vpop.f32.mrb[0].mxu0
        %v1957 = vadd.f32 %v1860, %v1956
        %v1958 = vpop.f32.mrb[0].mxu0
        %v1959 = vpop.f32.mrb[0].mxu0
        %v1960 = vadd.f32 %v1863, %v1959
        %v1961 = vpop.f32.mrb[0].mxu0
        %1962 = vmatprep.mubr.bf16.mxu0 0
        %1963 = vmatmul.mubr.bf16.gmra.mrb[0].mxu0 %v1602
        %v1964 = vpop.f32.mrb[0].mxu0
        %v1965 = vadd.f32 %v1868, %v1964
        %v1966 = vpop.f32.mrb[0].mxu0
        %v1967 = vpop.f32.mrb[0].mxu0
        %v1968 = vadd.f32 %v1871, %v1967
        %v1969 = vpop.f32.mrb[0].mxu0
        %1970 = vmatprep.mubr.bf16.mxu0 0
        %1971 = vmatmul.mubr.bf16.gmra.mrb[0].mxu0 %v1605
        %v1972 = vpop.f32.mrb[0].mxu0
        %v1973 = vadd.f32 %v1876, %v1972
        %v1974 = vpop.f32.mrb[0].mxu0
        %v1975 = vpop.f32.mrb[0].mxu0
        %v1976 = vadd.f32 %v1879, %v1975
        %v1977 = vpop.f32.mrb[0].mxu0
        %1978 = vmatprep.mubr.bf16.mxu0 0
        %1979 = vmatmul.mubr.bf16.gmra.mrb[0].mxu0 %v1608
        %v1980 = vpop.f32.mrb[0].mxu0
        %v1981 = vadd.f32 %v1884, %v1980
        %v1982 = vpop.f32.mrb[0].mxu0
        %v1983 = vpop.f32.mrb[0].mxu0
        %v1984 = vadd.f32 %v1887, %v1983
        %v1985 = vpop.f32.mrb[0].mxu0
        %1986 = vmatprep.mubr.bf16.mxu0 0
        %1987 = vmatmul.mubr.bf16.gmra.mrb[0].mxu0 %v1611
        %v1988 = vpop.f32.mrb[0].mxu0
        %v1989 = vadd.f32 %v1892, %v1988
        %v1990 = vpop.f32.mrb[0].mxu0
        %v1991 = vpop.f32.mrb[0].mxu0
        %v1992 = vadd.f32 %v1895, %v1991
        %v1993 = vpop.f32.mrb[0].mxu0
        %1994 = vmatprep.mubr.bf16.mxu0 0
        %1995 = vmatmul.mubr.bf16.gmra.mrb[0].mxu0 %v1614
        %v1996 = vpop.f32.mrb[0].mxu0
        %v1997 = vadd.f32 %v1900, %v1996
        %v1998 = vpop.f32.mrb[0].mxu0
        %v1999 = vpop.f32.mrb[0].mxu0
        %v2000 = vadd.f32 %v1903, %v1999
        %v2001 = vpop.f32.mrb[0].mxu0
        %2002 = vmatprep.mubr.bf16.mxu0 0
        %2003 = vmatmul.mubr.bf16.gmra.mrb[0].mxu0 %v1617
        %v2004 = vpop.f32.mrb[0].mxu0
        %v2005 = vadd.f32 %v1908, %v2004
        %v2006 = vpop.f32.mrb[0].mxu0
        %v2007 = vpop.f32.mrb[0].mxu0
        %v2008 = vadd.f32 %v1911, %v2007
        %v2009 = vpop.f32.mrb[0].mxu0
        %2010 = vdwg.mxu0
        %v2011 = vmax.f32 %v1949, 0.0
        %v2012 = vmax.f32 %v1952, 0.0
        %v2013 = vmax.f32 %v1957, 0.0
        %v2014 = vmax.f32 %v1960, 0.0
        %v2015 = vmax.f32 %v1965, 0.0
        %v2016 = vmax.f32 %v1968, 0.0
        %v2017 = vmax.f32 %v1973, 0.0
        %v2018 = vmax.f32 %v1976, 0.0
        %v2019 = vmax.f32 %v1981, 0.0
        %v2020 = vmax.f32 %v1984, 0.0
        %v2021 = vmax.f32 %v1989, 0.0
        %v2022 = vmax.f32 %v1992, 0.0
        %v2023 = vmax.f32 %v1997, 0.0
        %v2024 = vmax.f32 %v2000, 0.0
        %v2025 = vmax.f32 %v2005, 0.0
        %v2026 = vmax.f32 %v2008, 0.0
        %v2027 = vpack.c.bf16 %v2012, %v2011
        %v2028 = vpack.c.bf16 %v2014, %v2013
        %v2029 = vpack.c.bf16 %v2016, %v2015
        %v2030 = vpack.c.bf16 %v2018, %v2017
        %v2031 = vpack.c.bf16 %v2020, %v2019
        %v2032 = vpack.c.bf16 %v2022, %v2021
        %v2033 = vpack.c.bf16 %v2024, %v2023
        %v2034 = vpack.c.bf16 %v2026, %v2025
        %v2035 = vld [vmem:[%s5] sm:$0xf]
        %v2036 = vld [vmem:[%s5 + $0x4] sm:$0xf]
        %v2037 = vld [vmem:[%s5 + $0x8] sm:$0xf]
        %v2038 = vld [vmem:[%s5 + $0xc] sm:$0xf]
        %v2039 = vld [vmem:[%s5 + $0x10] sm:$0xf]
        %v2040 = vld [vmem:[%s5 + $0x14] sm:$0xf]
        %v2041 = vld [vmem:[%s5 + $0x18] sm:$0xf]
        %v2042 = vld [vmem:[%s5 + $0x1c] sm:$0xf]
        %v2043 = vld [vmem:[#allocation10] sm:$0x1]
        %v2045 = vlaneseq
        %v2046 = vshrl.u32 %v2045, 7
        %v2047 = vsub.s32 0, %v2046
        %v2048 = vrot.slane %v2043, %v2047
        %v2058 = vunpack.c.l.b16 %v2035
        %v2059 = vunpack.c.l.b16 %v2036
        %v2060 = vunpack.c.l.b16 %v2037
        %v2061 = vunpack.c.l.b16 %v2038
        %v2062 = vunpack.c.l.b16 %v2039
        %v2063 = vunpack.c.l.b16 %v2040
        %v2064 = vunpack.c.l.b16 %v2041
        %v2065 = vunpack.c.l.b16 %v2042
        %v2066 = vpack.c.b16 %v2059, %v2058
        %v2067 = vpack.c.b16 %v2061, %v2060
        %v2068 = vpack.c.b16 %v2063, %v2062
        %v2069 = vpack.c.b16 %v2065, %v2064
        %vm2074 = vcmask 523264
        %v2076 = vsel %vm2074, %v2027, 0
        %v2079 = vsel %vm2074, %v2028, 0
        %v2082 = vsel %vm2074, %v2029, 0
        %v2085 = vsel %vm2074, %v2030, 0
        %v2088 = vsel %vm2074, %v2031, 0
        %v2091 = vsel %vm2074, %v2032, 0
        %v2094 = vsel %vm2074, %v2033, 0
        %v2097 = vsel %vm2074, %v2034, 0
        %2099 = vmatprep.subr.bf16.mxu0 0
        %2100 = vmatpush1.bf16.msra.mxu0 %v2066
        %2101 = vmatprep.subr.bf16.mxu0 0
        %2102 = vmatpush1.bf16.msra.mxu0 %v2067
        %2103 = vmatprep.subr.bf16.mxu0 0
        %2104 = vmatpush1.bf16.msra.mxu0 %v2068
        %2105 = vmatprep.subr.bf16.mxu0 0
        %2106 = vmatpush1.bf16.msra.mxu0 %v2069
        %2107 = vmatprep.subr.bf16.mxu0 0
        %2108 = vmatpush1.bf16.msra.mxu0 0
        %2109 = vmatprep.subr.bf16.mxu0 0
        %2110 = vmatpush1.bf16.msra.mxu0 0
        %2111 = vmatprep.subr.bf16.mxu0 0
        %2112 = vmatpush1.bf16.msra.mxu0 0
        %2113 = vmatprep.subr.bf16.mxu0 0
        %2114 = vmatpush1.bf16.msra.mxu0 0
        %2115 = vmatprep.subr.bf16.mxu0 0
        %2116 = vmatpush1.bf16.msra.mxu0 0
        %2117 = vmatprep.subr.bf16.mxu0 0
        %2118 = vmatpush1.bf16.msra.mxu0 0
        %2119 = vmatprep.subr.bf16.mxu0 0
        %2120 = vmatpush1.bf16.msra.mxu0 0
        %2121 = vmatprep.subr.bf16.mxu0 0
        %2122 = vmatpush1.bf16.msra.mxu0 0
        %2123 = vmatprep.subr.bf16.mxu0 0
        %2124 = vmatpush1.bf16.msra.mxu0 0
        %2125 = vmatprep.subr.bf16.mxu0 0
        %2126 = vmatpush1.bf16.msra.mxu0 0
        %2127 = vmatprep.subr.bf16.mxu0 0
        %2128 = vmatpush1.bf16.msra.mxu0 0
        %2129 = vmatprep.subr.bf16.mxu0 0
        %2130 = vmatpush1.bf16.msra.mxu0 0
        %2131 = vmatprep.mubr.bf16.mxu0 0
        %2132 = vmatmul.mubr.bf16.gmra.mrb[0].mxu0 %v2076
        %v2133 = vpop.f32.mrb[0].mxu0
        %v2134 = vadd.f32 %v2048, %v2133
        %v2135 = vpop.f32.mrb[0].mxu0
        %v2136 = vpop.f32.mrb[0].mxu0
        %v2137 = vadd.f32 %v2048, %v2136
        %v2138 = vpop.f32.mrb[0].mxu0
        %2139 = vmatprep.mubr.bf16.mxu0 0
        %2140 = vmatmul.mubr.bf16.gmra.mrb[0].mxu0 %v2079
        %v2141 = vpop.f32.mrb[0].mxu0
        %v2142 = vadd.f32 %v2048, %v2141
        %v2143 = vpop.f32.mrb[0].mxu0
        %v2144 = vpop.f32.mrb[0].mxu0
        %v2145 = vadd.f32 %v2048, %v2144
        %v2146 = vpop.f32.mrb[0].mxu0
        %2147 = vmatprep.mubr.bf16.mxu0 0
        %2148 = vmatmul.mubr.bf16.gmra.mrb[0].mxu0 %v2082
        %v2149 = vpop.f32.mrb[0].mxu0
        %v2150 = vadd.f32 %v2048, %v2149
        %v2151 = vpop.f32.mrb[0].mxu0
        %v2152 = vpop.f32.mrb[0].mxu0
        %v2153 = vadd.f32 %v2048, %v2152
        %v2154 = vpop.f32.mrb[0].mxu0
        %2155 = vmatprep.mubr.bf16.mxu0 0
        %2156 = vmatmul.mubr.bf16.gmra.mrb[0].mxu0 %v2085
        %v2157 = vpop.f32.mrb[0].mxu0
        %v2158 = vadd.f32 %v2048, %v2157
        %v2159 = vpop.f32.mrb[0].mxu0
        %v2160 = vpop.f32.mrb[0].mxu0
        %v2161 = vadd.f32 %v2048, %v2160
        %v2162 = vpop.f32.mrb[0].mxu0
        %2163 = vmatprep.mubr.bf16.mxu0 0
        %2164 = vmatmul.mubr.bf16.gmra.mrb[0].mxu0 %v2088
        %v2165 = vpop.f32.mrb[0].mxu0
        %v2166 = vadd.f32 %v2048, %v2165
        %v2167 = vpop.f32.mrb[0].mxu0
        %v2168 = vpop.f32.mrb[0].mxu0
        %v2169 = vadd.f32 %v2048, %v2168
        %v2170 = vpop.f32.mrb[0].mxu0
        %2171 = vmatprep.mubr.bf16.mxu0 0
        %2172 = vmatmul.mubr.bf16.gmra.mrb[0].mxu0 %v2091
        %v2173 = vpop.f32.mrb[0].mxu0
        %v2174 = vadd.f32 %v2048, %v2173
        %v2175 = vpop.f32.mrb[0].mxu0
        %v2176 = vpop.f32.mrb[0].mxu0
        %v2177 = vadd.f32 %v2048, %v2176
        %v2178 = vpop.f32.mrb[0].mxu0
        %2179 = vmatprep.mubr.bf16.mxu0 0
        %2180 = vmatmul.mubr.bf16.gmra.mrb[0].mxu0 %v2094
        %v2181 = vpop.f32.mrb[0].mxu0
        %v2182 = vadd.f32 %v2048, %v2181
        %v2183 = vpop.f32.mrb[0].mxu0
        %v2184 = vpop.f32.mrb[0].mxu0
        %v2185 = vadd.f32 %v2048, %v2184
        %v2186 = vpop.f32.mrb[0].mxu0
        %2187 = vmatprep.mubr.bf16.mxu0 0
        %2188 = vmatmul.mubr.bf16.gmra.mrb[0].mxu0 %v2097
        %v2189 = vpop.f32.mrb[0].mxu0
        %v2190 = vadd.f32 %v2048, %v2189
        %v2191 = vpop.f32.mrb[0].mxu0
        %v2192 = vpop.f32.mrb[0].mxu0
        %v2193 = vadd.f32 %v2048, %v2192
        %v2194 = vpop.f32.mrb[0].mxu0
        %2195 = vdwg.mxu0
        %v2196 = vmax.f32 %v2134, 0.0
        %v2197 = vmax.f32 %v2137, 0.0
        %v2198 = vmax.f32 %v2142, 0.0
        %v2199 = vmax.f32 %v2145, 0.0
        %v2200 = vmax.f32 %v2150, 0.0
        %v2201 = vmax.f32 %v2153, 0.0
        %v2202 = vmax.f32 %v2158, 0.0
        %v2203 = vmax.f32 %v2161, 0.0
        %v2204 = vmax.f32 %v2166, 0.0
        %v2205 = vmax.f32 %v2169, 0.0
        %v2206 = vmax.f32 %v2174, 0.0
        %v2207 = vmax.f32 %v2177, 0.0
        %v2208 = vmax.f32 %v2182, 0.0
        %v2209 = vmax.f32 %v2185, 0.0
        %v2210 = vmax.f32 %v2190, 0.0
        %v2211 = vmax.f32 %v2193, 0.0
        %v2212 = vpack.c.bf16 %v2197, %v2196
        %v2213 = vpack.c.bf16 %v2199, %v2198
        %v2214 = vpack.c.bf16 %v2201, %v2200
        %v2215 = vpack.c.bf16 %v2203, %v2202
        %v2216 = vpack.c.bf16 %v2205, %v2204
        %v2217 = vpack.c.bf16 %v2207, %v2206
        %v2218 = vpack.c.bf16 %v2209, %v2208
        %v2219 = vpack.c.bf16 %v2211, %v2210
        %v2220 = vld [vmem:[#allocation11] sm:$0xf]
        %v2221 = vld [vmem:[#allocation11 + $0x4] sm:$0xf]
        %v2222 = vld [vmem:[#allocation11 + $0x8] sm:$0xf]
        %v2223 = vld [vmem:[#allocation11 + $0xc] sm:$0xf]
        %v2224 = vld [vmem:[#allocation13] sm:$0x1]
        %v2226 = vlaneseq
        %v2227 = vshrl.u32 %v2226, 7
        %v2228 = vsub.s32 0, %v2227
        %v2229 = vrot.slane %v2224, %v2228
        %v2235 = vunpack.c.l.b16 %v2220
        %v2236 = vunpack.c.l.b16 %v2221
        %v2237 = vunpack.c.l.b16 %v2222
        %v2238 = vunpack.c.l.b16 %v2223
        %v2239 = vpack.c.b16 %v2236, %v2235
        %v2240 = vpack.c.b16 %v2238, %v2237
        %vm2243 = vcmask 261120
        %v2245 = vsel %vm2243, %v2212, 0
        %v2248 = vsel %vm2243, %v2213, 0
        %v2251 = vsel %vm2243, %v2214, 0
        %v2254 = vsel %vm2243, %v2215, 0
        %v2257 = vsel %vm2243, %v2216, 0
        %v2260 = vsel %vm2243, %v2217, 0
        %v2263 = vsel %vm2243, %v2218, 0
        %v2266 = vsel %vm2243, %v2219, 0
        %2268 = vmatprep.subr.bf16.mxu0 0
        %2269 = vmatpush1.bf16.msra.mxu0 %v2239
        %2270 = vmatprep.subr.bf16.mxu0 0
        %2271 = vmatpush1.bf16.msra.mxu0 %v2240
        %2272 = vmatprep.subr.bf16.mxu0 0
        %2273 = vmatpush1.bf16.msra.mxu0 0
        %2274 = vmatprep.subr.bf16.mxu0 0
        %2275 = vmatpush1.bf16.msra.mxu0 0
        %2276 = vmatprep.subr.bf16.mxu0 0
        %2277 = vmatpush1.bf16.msra.mxu0 0
        %2278 = vmatprep.subr.bf16.mxu0 0
        %2279 = vmatpush1.bf16.msra.mxu0 0
        %2280 = vmatprep.subr.bf16.mxu0 0
        %2281 = vmatpush1.bf16.msra.mxu0 0
        %2282 = vmatprep.subr.bf16.mxu0 0
        %2283 = vmatpush1.bf16.msra.mxu0 0
        %2284 = vmatprep.subr.bf16.mxu0 0
        %2285 = vmatpush1.bf16.msra.mxu0 0
        %2286 = vmatprep.subr.bf16.mxu0 0
        %2287 = vmatpush1.bf16.msra.mxu0 0
        %2288 = vmatprep.subr.bf16.mxu0 0
        %2289 = vmatpush1.bf16.msra.mxu0 0
        %2290 = vmatprep.subr.bf16.mxu0 0
        %2291 = vmatpush1.bf16.msra.mxu0 0
        %2292 = vmatprep.subr.bf16.mxu0 0
        %2293 = vmatpush1.bf16.msra.mxu0 0
        %2294 = vmatprep.subr.bf16.mxu0 0
        %2295 = vmatpush1.bf16.msra.mxu0 0
        %2296 = vmatprep.subr.bf16.mxu0 0
        %2297 = vmatpush1.bf16.msra.mxu0 0
        %2298 = vmatprep.subr.bf16.mxu0 0
        %2299 = vmatpush1.bf16.msra.mxu0 0
        %2300 = vmatprep.mubr.bf16.mxu0 0
        %2301 = vmatmul.mubr.bf16.gmra.mrb[0].mxu0 %v2245
        %v2302 = vpop.f32.mrb[0].mxu0
        %v2303 = vadd.f32 %v2229, %v2302
        %v2304 = vpop.f32.mrb[0].mxu0
        %v2305 = vpop.f32.mrb[0].mxu0
        %v2306 = vadd.f32 %v2229, %v2305
        %v2307 = vpop.f32.mrb[0].mxu0
        %2308 = vmatprep.mubr.bf16.mxu0 0
        %2309 = vmatmul.mubr.bf16.gmra.mrb[0].mxu0 %v2248
        %v2310 = vpop.f32.mrb[0].mxu0
        %v2311 = vadd.f32 %v2229, %v2310
        %v2312 = vpop.f32.mrb[0].mxu0
        %v2313 = vpop.f32.mrb[0].mxu0
        %v2314 = vadd.f32 %v2229, %v2313
        %v2315 = vpop.f32.mrb[0].mxu0
        %2316 = vmatprep.mubr.bf16.mxu0 0
        %2317 = vmatmul.mubr.bf16.gmra.mrb[0].mxu0 %v2251
        %v2318 = vpop.f32.mrb[0].mxu0
        %v2319 = vadd.f32 %v2229, %v2318
        %v2320 = vpop.f32.mrb[0].mxu0
        %v2321 = vpop.f32.mrb[0].mxu0
        %v2322 = vadd.f32 %v2229, %v2321
        %v2323 = vpop.f32.mrb[0].mxu0
        %2324 = vmatprep.mubr.bf16.mxu0 0
        %2325 = vmatmul.mubr.bf16.gmra.mrb[0].mxu0 %v2254
        %v2326 = vpop.f32.mrb[0].mxu0
        %v2327 = vadd.f32 %v2229, %v2326
        %v2328 = vpop.f32.mrb[0].mxu0
        %v2329 = vpop.f32.mrb[0].mxu0
        %v2330 = vadd.f32 %v2229, %v2329
        %v2331 = vpop.f32.mrb[0].mxu0
        %2332 = vmatprep.mubr.bf16.mxu0 0
        %2333 = vmatmul.mubr.bf16.gmra.mrb[0].mxu0 %v2257
        %v2334 = vpop.f32.mrb[0].mxu0
        %v2335 = vadd.f32 %v2229, %v2334
        %v2336 = vpop.f32.mrb[0].mxu0
        %v2337 = vpop.f32.mrb[0].mxu0
        %v2338 = vadd.f32 %v2229, %v2337
        %v2339 = vpop.f32.mrb[0].mxu0
        %2340 = vmatprep.mubr.bf16.mxu0 0
        %2341 = vmatmul.mubr.bf16.gmra.mrb[0].mxu0 %v2260
        %v2342 = vpop.f32.mrb[0].mxu0
        %v2343 = vadd.f32 %v2229, %v2342
        %v2344 = vpop.f32.mrb[0].mxu0
        %v2345 = vpop.f32.mrb[0].mxu0
        %v2346 = vadd.f32 %v2229, %v2345
        %v2347 = vpop.f32.mrb[0].mxu0
        %2348 = vmatprep.mubr.bf16.mxu0 0
        %2349 = vmatmul.mubr.bf16.gmra.mrb[0].mxu0 %v2263
        %v2350 = vpop.f32.mrb[0].mxu0
        %v2351 = vadd.f32 %v2229, %v2350
        %v2352 = vpop.f32.mrb[0].mxu0
        %v2353 = vpop.f32.mrb[0].mxu0
        %v2354 = vadd.f32 %v2229, %v2353
        %v2355 = vpop.f32.mrb[0].mxu0
        %2356 = vmatprep.mubr.bf16.mxu0 0
        %2357 = vmatmul.mubr.bf16.gmra.mrb[0].mxu0 %v2266
        %v2358 = vpop.f32.mrb[0].mxu0
        %v2359 = vadd.f32 %v2229, %v2358
        %v2360 = vpop.f32.mrb[0].mxu0
        %v2361 = vpop.f32.mrb[0].mxu0
        %v2362 = vadd.f32 %v2229, %v2361
        %v2363 = vpop.f32.mrb[0].mxu0
        %2364 = vdwg.mxu0
        %v2365 = vmax.f32 %v2303, 0.0
        %v2366 = vmax.f32 %v2306, 0.0
        %v2367 = vmax.f32 %v2311, 0.0
        %v2368 = vmax.f32 %v2314, 0.0
        %v2369 = vmax.f32 %v2319, 0.0
        %v2370 = vmax.f32 %v2322, 0.0
        %v2371 = vmax.f32 %v2327, 0.0
        %v2372 = vmax.f32 %v2330, 0.0
        %v2373 = vmax.f32 %v2335, 0.0
        %v2374 = vmax.f32 %v2338, 0.0
        %v2375 = vmax.f32 %v2343, 0.0
        %v2376 = vmax.f32 %v2346, 0.0
        %v2377 = vmax.f32 %v2351, 0.0
        %v2378 = vmax.f32 %v2354, 0.0
        %v2379 = vmax.f32 %v2359, 0.0
        %v2380 = vmax.f32 %v2362, 0.0
        %v2381 = vpack.c.bf16 %v2366, %v2365
        %v2382 = vpack.c.bf16 %v2368, %v2367
        %v2383 = vpack.c.bf16 %v2370, %v2369
        %v2384 = vpack.c.bf16 %v2372, %v2371
        %v2385 = vpack.c.bf16 %v2374, %v2373
        %v2386 = vpack.c.bf16 %v2376, %v2375
        %v2387 = vpack.c.bf16 %v2378, %v2377
        %v2388 = vpack.c.bf16 %v2380, %v2379
        %v2389 = vld [vmem:[#allocation14] sm:$0xf]
        %v2390 = vld [vmem:[#allocation14 + $0x4] sm:$0xf]
        %v2391 = vld [vmem:[#allocation14 + $0x8] sm:$0xf]
        %v2392 = vld [vmem:[#allocation14 + $0xc] sm:$0xf]
        %v2393 = vld [vmem:[#allocation16] sm:$0x1]
        %v2395 = vlaneseq
        %v2396 = vshrl.u32 %v2395, 7
        %v2397 = vsub.s32 0, %v2396
        %v2398 = vrot.slane %v2393, %v2397
        %v2404 = vunpack.c.l.b16 %v2389
        %v2405 = vunpack.c.l.b16 %v2390
        %v2406 = vunpack.c.l.b16 %v2391
        %v2407 = vunpack.c.l.b16 %v2392
        %v2408 = vpack.c.b16 %v2405, %v2404
        %v2409 = vpack.c.b16 %v2407, %v2406
        %v2413 = vsel %vm2243, %v2381, 0
        %v2416 = vsel %vm2243, %v2382, 0
        %v2419 = vsel %vm2243, %v2383, 0
        %v2422 = vsel %vm2243, %v2384, 0
        %v2425 = vsel %vm2243, %v2385, 0
        %v2428 = vsel %vm2243, %v2386, 0
        %v2431 = vsel %vm2243, %v2387, 0
        %v2434 = vsel %vm2243, %v2388, 0
        %2436 = vmatprep.subr.bf16.mxu0 0
        %2437 = vmatpush1.bf16.msra.mxu0 %v2408
        %2438 = vmatprep.subr.bf16.mxu0 0
        %2439 = vmatpush1.bf16.msra.mxu0 %v2409
        %2440 = vmatprep.subr.bf16.mxu0 0
        %2441 = vmatpush1.bf16.msra.mxu0 0
        %2442 = vmatprep.subr.bf16.mxu0 0
        %2443 = vmatpush1.bf16.msra.mxu0 0
        %2444 = vmatprep.subr.bf16.mxu0 0
        %2445 = vmatpush1.bf16.msra.mxu0 0
        %2446 = vmatprep.subr.bf16.mxu0 0
        %2447 = vmatpush1.bf16.msra.mxu0 0
        %2448 = vmatprep.subr.bf16.mxu0 0
        %2449 = vmatpush1.bf16.msra.mxu0 0
        %2450 = vmatprep.subr.bf16.mxu0 0
        %2451 = vmatpush1.bf16.msra.mxu0 0
        %2452 = vmatprep.subr.bf16.mxu0 0
        %2453 = vmatpush1.bf16.msra.mxu0 0
        %2454 = vmatprep.subr.bf16.mxu0 0
        %2455 = vmatpush1.bf16.msra.mxu0 0
        %2456 = vmatprep.subr.bf16.mxu0 0
        %2457 = vmatpush1.bf16.msra.mxu0 0
        %2458 = vmatprep.subr.bf16.mxu0 0
        %2459 = vmatpush1.bf16.msra.mxu0 0
        %2460 = vmatprep.subr.bf16.mxu0 0
        %2461 = vmatpush1.bf16.msra.mxu0 0
        %2462 = vmatprep.subr.bf16.mxu0 0
        %2463 = vmatpush1.bf16.msra.mxu0 0
        %2464 = vmatprep.subr.bf16.mxu0 0
        %2465 = vmatpush1.bf16.msra.mxu0 0
        %2466 = vmatprep.subr.bf16.mxu0 0
        %2467 = vmatpush1.bf16.msra.mxu0 0
        %2468 = vmatprep.mubr.bf16.mxu0 0
        %2469 = vmatmul.mubr.bf16.gmra.mrb[0].mxu0 %v2413
        %v2470 = vpop.f32.mrb[0].mxu0
        %v2471 = vadd.f32 %v2398, %v2470
        %v2472 = vpop.f32.mrb[0].mxu0
        %v2473 = vpop.f32.mrb[0].mxu0
        %v2474 = vadd.f32 %v2398, %v2473
        %v2475 = vpop.f32.mrb[0].mxu0
        %2476 = vmatprep.mubr.bf16.mxu0 0
        %2477 = vmatmul.mubr.bf16.gmra.mrb[0].mxu0 %v2416
        %v2478 = vpop.f32.mrb[0].mxu0
        %v2479 = vadd.f32 %v2398, %v2478
        %v2480 = vpop.f32.mrb[0].mxu0
        %v2481 = vpop.f32.mrb[0].mxu0
        %v2482 = vadd.f32 %v2398, %v2481
        %v2483 = vpop.f32.mrb[0].mxu0
        %2484 = vmatprep.mubr.bf16.mxu0 0
        %2485 = vmatmul.mubr.bf16.gmra.mrb[0].mxu0 %v2419
        %v2486 = vpop.f32.mrb[0].mxu0
        %v2487 = vadd.f32 %v2398, %v2486
        %v2488 = vpop.f32.mrb[0].mxu0
        %v2489 = vpop.f32.mrb[0].mxu0
        %v2490 = vadd.f32 %v2398, %v2489
        %v2491 = vpop.f32.mrb[0].mxu0
        %2492 = vmatprep.mubr.bf16.mxu0 0
        %2493 = vmatmul.mubr.bf16.gmra.mrb[0].mxu0 %v2422
        %v2494 = vpop.f32.mrb[0].mxu0
        %v2495 = vadd.f32 %v2398, %v2494
        %v2496 = vpop.f32.mrb[0].mxu0
        %v2497 = vpop.f32.mrb[0].mxu0
        %v2498 = vadd.f32 %v2398, %v2497
        %v2499 = vpop.f32.mrb[0].mxu0
        %2500 = vmatprep.mubr.bf16.mxu0 0
        %2501 = vmatmul.mubr.bf16.gmra.mrb[0].mxu0 %v2425
        %v2502 = vpop.f32.mrb[0].mxu0
        %v2503 = vadd.f32 %v2398, %v2502
        %v2504 = vpop.f32.mrb[0].mxu0
        %v2505 = vpop.f32.mrb[0].mxu0
        %v2506 = vadd.f32 %v2398, %v2505
        %v2507 = vpop.f32.mrb[0].mxu0
        %2508 = vmatprep.mubr.bf16.mxu0 0
        %2509 = vmatmul.mubr.bf16.gmra.mrb[0].mxu0 %v2428
        %v2510 = vpop.f32.mrb[0].mxu0
        %v2511 = vadd.f32 %v2398, %v2510
        %v2512 = vpop.f32.mrb[0].mxu0
        %v2513 = vpop.f32.mrb[0].mxu0
        %v2514 = vadd.f32 %v2398, %v2513
        %v2515 = vpop.f32.mrb[0].mxu0
        %2516 = vmatprep.mubr.bf16.mxu0 0
        %2517 = vmatmul.mubr.bf16.gmra.mrb[0].mxu0 %v2431
        %v2518 = vpop.f32.mrb[0].mxu0
        %v2519 = vadd.f32 %v2398, %v2518
        %v2520 = vpop.f32.mrb[0].mxu0
        %v2521 = vpop.f32.mrb[0].mxu0
        %v2522 = vadd.f32 %v2398, %v2521
        %v2523 = vpop.f32.mrb[0].mxu0
        %2524 = vmatprep.mubr.bf16.mxu0 0
        %2525 = vmatmul.mubr.bf16.gmra.mrb[0].mxu0 %v2434
        %v2526 = vpop.f32.mrb[0].mxu0
        %v2527 = vadd.f32 %v2398, %v2526
        %v2528 = vpop.f32.mrb[0].mxu0
        %v2529 = vpop.f32.mrb[0].mxu0
        %v2530 = vadd.f32 %v2398, %v2529
        %v2531 = vpop.f32.mrb[0].mxu0
        %2532 = vdwg.mxu0
        %v2533 = vmax.f32 %v2471, 0.0
        %v2534 = vmax.f32 %v2474, 0.0
        %v2535 = vmax.f32 %v2479, 0.0
        %v2536 = vmax.f32 %v2482, 0.0
        %v2537 = vmax.f32 %v2487, 0.0
        %v2538 = vmax.f32 %v2490, 0.0
        %v2539 = vmax.f32 %v2495, 0.0
        %v2540 = vmax.f32 %v2498, 0.0
        %v2541 = vmax.f32 %v2503, 0.0
        %v2542 = vmax.f32 %v2506, 0.0
        %v2543 = vmax.f32 %v2511, 0.0
        %v2544 = vmax.f32 %v2514, 0.0
        %v2545 = vmax.f32 %v2519, 0.0
        %v2546 = vmax.f32 %v2522, 0.0
        %v2547 = vmax.f32 %v2527, 0.0
        %v2548 = vmax.f32 %v2530, 0.0
        %v2549 = vpack.c.bf16 %v2534, %v2533
        %v2550 = vpack.c.bf16 %v2536, %v2535
        %v2551 = vpack.c.bf16 %v2538, %v2537
        %v2552 = vpack.c.bf16 %v2540, %v2539
        %v2553 = vpack.c.bf16 %v2542, %v2541
        %v2554 = vpack.c.bf16 %v2544, %v2543
        %v2555 = vpack.c.bf16 %v2546, %v2545
        %v2556 = vpack.c.bf16 %v2548, %v2547
        %v2557 = vld [vmem:[#allocation17] sm:$0xff]
        %v2558 = vld [vmem:[#allocation17 + $0x8] sm:$0xf]
        %v2559 = vld [vmem:[#allocation17 + $0xc] sm:$0xff]
        %v2560 = vld [vmem:[#allocation17 + $0x14] sm:$0xf]
        %v2561 = vld [vmem:[#allocation17 + $0x18] sm:$0xff]
        %v2562 = vld [vmem:[#allocation17 + $0x20] sm:$0xf]
        %v2563 = vld [vmem:[#allocation17 + $0x24] sm:$0xff]
        %v2564 = vld [vmem:[#allocation17 + $0x2c] sm:$0xf]
        %v2565 = vld [vmem:[#allocation17 + $0x30] sm:$0xff]
        %v2566 = vld [vmem:[#allocation17 + $0x38] sm:$0xf]
        %v2567 = vld [vmem:[#allocation17 + $0x3c] sm:$0xff]
        %v2568 = vld [vmem:[#allocation17 + $0x44] sm:$0xf]
        %v2569 = vld [vmem:[#allocation17 + $0x48] sm:$0xff]
        %v2570 = vld [vmem:[#allocation17 + $0x50] sm:$0xf]
        %v2571 = vld [vmem:[#allocation17 + $0x54] sm:$0xff]
        %v2572 = vld [vmem:[#allocation17 + $0x5c] sm:$0xf]
        %v2573 = vld [vmem:[#allocation17 + $0x60] sm:$0xff]
        %v2574 = vld [vmem:[#allocation17 + $0x68] sm:$0xf]
        %v2575 = vld [vmem:[#allocation17 + $0x6c] sm:$0xff]
        %v2576 = vld [vmem:[#allocation17 + $0x74] sm:$0xf]
        %v2577 = vld [vmem:[#allocation17 + $0x78] sm:$0xff]
        %v2578 = vld [vmem:[#allocation17 + $0x80] sm:$0xf]
        %v2579 = vld [vmem:[#allocation17 + $0x84] sm:$0xff]
        %v2580 = vld [vmem:[#allocation17 + $0x8c] sm:$0xf]
        %v2605 = vunpack.c.l.b16 %v2557
        %v2606 = vunpack.c.h.b16 %v2557
        %v2607 = vunpack.c.l.b16 %v2558
        %v2608 = vunpack.c.l.b16 %v2559
        %v2609 = vunpack.c.h.b16 %v2559
        %v2610 = vunpack.c.l.b16 %v2560
        %v2611 = vunpack.c.l.b16 %v2561
        %v2612 = vunpack.c.h.b16 %v2561
        %v2613 = vunpack.c.l.b16 %v2562
        %v2614 = vunpack.c.l.b16 %v2563
        %v2615 = vunpack.c.h.b16 %v2563
        %v2616 = vunpack.c.l.b16 %v2564
        %v2617 = vunpack.c.l.b16 %v2565
        %v2618 = vunpack.c.h.b16 %v2565
        %v2619 = vunpack.c.l.b16 %v2566
        %v2620 = vunpack.c.l.b16 %v2567
        %v2621 = vunpack.c.h.b16 %v2567
        %v2622 = vunpack.c.l.b16 %v2568
        %v2623 = vunpack.c.l.b16 %v2569
        %v2624 = vunpack.c.h.b16 %v2569
        %v2625 = vunpack.c.l.b16 %v2570
        %v2626 = vunpack.c.l.b16 %v2571
        %v2627 = vunpack.c.h.b16 %v2571
        %v2628 = vunpack.c.l.b16 %v2572
        %v2629 = vunpack.c.l.b16 %v2573
        %v2630 = vunpack.c.h.b16 %v2573
        %v2631 = vunpack.c.l.b16 %v2574
        %v2632 = vunpack.c.l.b16 %v2575
        %v2633 = vunpack.c.h.b16 %v2575
        %v2634 = vunpack.c.l.b16 %v2576
        %v2635 = vunpack.c.l.b16 %v2577
        %v2636 = vunpack.c.h.b16 %v2577
        %v2637 = vunpack.c.l.b16 %v2578
        %v2638 = vunpack.c.l.b16 %v2579
        %v2639 = vunpack.c.h.b16 %v2579
        %v2640 = vunpack.c.l.b16 %v2580
        %v2641 = vpack.c.b16 %v2608, %v2605
        %v2642 = vpack.c.b16 %v2609, %v2606
        %v2643 = vpack.c.b16 %v2610, %v2607
        %v2644 = vpack.c.b16 %v2614, %v2611
        %v2645 = vpack.c.b16 %v2615, %v2612
        %v2646 = vpack.c.b16 %v2616, %v2613
        %v2647 = vpack.c.b16 %v2620, %v2617
        %v2648 = vpack.c.b16 %v2621, %v2618
        %v2649 = vpack.c.b16 %v2622, %v2619
        %v2650 = vpack.c.b16 %v2626, %v2623
        %v2651 = vpack.c.b16 %v2627, %v2624
        %v2652 = vpack.c.b16 %v2628, %v2625
        %v2653 = vpack.c.b16 %v2632, %v2629
        %v2654 = vpack.c.b16 %v2633, %v2630
        %v2655 = vpack.c.b16 %v2634, %v2631
        %v2656 = vpack.c.b16 %v2638, %v2635
        %v2657 = vpack.c.b16 %v2639, %v2636
        %v2658 = vpack.c.b16 %v2640, %v2637
        %vm2677 = vcmask 785408
        %v2679 = vsel %vm2677, %v2549, 0
        %v2682 = vsel %vm2677, %v2550, 0
        %v2685 = vsel %vm2677, %v2551, 0
        %v2688 = vsel %vm2677, %v2552, 0
        %v2691 = vsel %vm2677, %v2553, 0
        %v2694 = vsel %vm2677, %v2554, 0
        %v2697 = vsel %vm2677, %v2555, 0
        %v2700 = vsel %vm2677, %v2556, 0
        %2702 = vmatprep.subr.bf16.mxu0 %v2642
        %2703 = vmatpush1.bf16.msra.mxu0 %v2641
        %2704 = vmatprep.subr.bf16.mxu0 %v2645
        %2705 = vmatpush1.bf16.msra.mxu0 %v2644
        %2706 = vmatprep.subr.bf16.mxu0 %v2648
        %2707 = vmatpush1.bf16.msra.mxu0 %v2647
        %2708 = vmatprep.subr.bf16.mxu0 %v2651
        %2709 = vmatpush1.bf16.msra.mxu0 %v2650
        %2710 = vmatprep.subr.bf16.mxu0 %v2654
        %2711 = vmatpush1.bf16.msra.mxu0 %v2653
        %2712 = vmatprep.subr.bf16.mxu0 %v2657
        %2713 = vmatpush1.bf16.msra.mxu0 %v2656
        %2714 = vmatprep.subr.bf16.mxu0 0
        %2715 = vmatpush1.bf16.msra.mxu0 0
        %2716 = vmatprep.subr.bf16.mxu0 0
        %2717 = vmatpush1.bf16.msra.mxu0 0
        %2718 = vmatprep.subr.bf16.mxu0 0
        %2719 = vmatpush1.bf16.msra.mxu0 0
        %2720 = vmatprep.subr.bf16.mxu0 0
        %2721 = vmatpush1.bf16.msra.mxu0 0
        %2722 = vmatprep.subr.bf16.mxu0 0
        %2723 = vmatpush1.bf16.msra.mxu0 0
        %2724 = vmatprep.subr.bf16.mxu0 0
        %2725 = vmatpush1.bf16.msra.mxu0 0
        %2726 = vmatprep.subr.bf16.mxu0 0
        %2727 = vmatpush1.bf16.msra.mxu0 0
        %2728 = vmatprep.subr.bf16.mxu0 0
        %2729 = vmatpush1.bf16.msra.mxu0 0
        %2730 = vmatprep.subr.bf16.mxu0 0
        %2731 = vmatpush1.bf16.msra.mxu0 0
        %2732 = vmatprep.subr.bf16.mxu0 0
        %2733 = vmatpush1.bf16.msra.mxu0 0
        %2734 = vmatprep.mubr.bf16.mxu0 0
        %2735 = vmatmul.mubr.bf16.gmra.mrb[0].mxu0 %v2679
        %v2736 = vpop.f32.mrb[0].mxu0
        %v2737 = vadd.f32 0.0, %v2736
        %v2738 = vpop.f32.mrb[0].mxu0
        %v2739 = vadd.f32 0.0, %v2738
        %v2740 = vpop.f32.mrb[0].mxu0
        %v2741 = vadd.f32 0.0, %v2740
        %v2742 = vpop.f32.mrb[0].mxu0
        %v2743 = vadd.f32 0.0, %v2742
        %2744 = vmatprep.mubr.bf16.mxu0 0
        %2745 = vmatmul.mubr.bf16.gmra.mrb[0].mxu0 %v2682
        %v2746 = vpop.f32.mrb[0].mxu0
        %v2747 = vadd.f32 0.0, %v2746
        %v2748 = vpop.f32.mrb[0].mxu0
        %v2749 = vadd.f32 0.0, %v2748
        %v2750 = vpop.f32.mrb[0].mxu0
        %v2751 = vadd.f32 0.0, %v2750
        %v2752 = vpop.f32.mrb[0].mxu0
        %v2753 = vadd.f32 0.0, %v2752
        %2754 = vmatprep.mubr.bf16.mxu0 0
        %2755 = vmatmul.mubr.bf16.gmra.mrb[0].mxu0 %v2685
        %v2756 = vpop.f32.mrb[0].mxu0
        %v2757 = vadd.f32 0.0, %v2756
        %v2758 = vpop.f32.mrb[0].mxu0
        %v2759 = vadd.f32 0.0, %v2758
        %v2760 = vpop.f32.mrb[0].mxu0
        %v2761 = vadd.f32 0.0, %v2760
        %v2762 = vpop.f32.mrb[0].mxu0
        %v2763 = vadd.f32 0.0, %v2762
        %2764 = vmatprep.mubr.bf16.mxu0 0
        %2765 = vmatmul.mubr.bf16.gmra.mrb[0].mxu0 %v2688
        %v2766 = vpop.f32.mrb[0].mxu0
        %v2767 = vadd.f32 0.0, %v2766
        %v2768 = vpop.f32.mrb[0].mxu0
        %v2769 = vadd.f32 0.0, %v2768
        %v2770 = vpop.f32.mrb[0].mxu0
        %v2771 = vadd.f32 0.0, %v2770
        %v2772 = vpop.f32.mrb[0].mxu0
        %v2773 = vadd.f32 0.0, %v2772
        %2774 = vmatprep.mubr.bf16.mxu0 0
        %2775 = vmatmul.mubr.bf16.gmra.mrb[0].mxu0 %v2691
        %v2776 = vpop.f32.mrb[0].mxu0
        %v2777 = vadd.f32 0.0, %v2776
        %v2778 = vpop.f32.mrb[0].mxu0
        %v2779 = vadd.f32 0.0, %v2778
        %v2780 = vpop.f32.mrb[0].mxu0
        %v2781 = vadd.f32 0.0, %v2780
        %v2782 = vpop.f32.mrb[0].mxu0
        %v2783 = vadd.f32 0.0, %v2782
        %2784 = vmatprep.mubr.bf16.mxu0 0
        %2785 = vmatmul.mubr.bf16.gmra.mrb[0].mxu0 %v2694
        %v2786 = vpop.f32.mrb[0].mxu0
        %v2787 = vadd.f32 0.0, %v2786
        %v2788 = vpop.f32.mrb[0].mxu0
        %v2789 = vadd.f32 0.0, %v2788
        %v2790 = vpop.f32.mrb[0].mxu0
        %v2791 = vadd.f32 0.0, %v2790
        %v2792 = vpop.f32.mrb[0].mxu0
        %v2793 = vadd.f32 0.0, %v2792
        %2794 = vmatprep.mubr.bf16.mxu0 0
        %2795 = vmatmul.mubr.bf16.gmra.mrb[0].mxu0 %v2697
        %v2796 = vpop.f32.mrb[0].mxu0
        %v2797 = vadd.f32 0.0, %v2796
        %v2798 = vpop.f32.mrb[0].mxu0
        %v2799 = vadd.f32 0.0, %v2798
        %v2800 = vpop.f32.mrb[0].mxu0
        %v2801 = vadd.f32 0.0, %v2800
        %v2802 = vpop.f32.mrb[0].mxu0
        %v2803 = vadd.f32 0.0, %v2802
        %2804 = vmatprep.mubr.bf16.mxu0 0
        %2805 = vmatmul.mubr.bf16.gmra.mrb[0].mxu0 %v2700
        %v2806 = vpop.f32.mrb[0].mxu0
        %v2807 = vadd.f32 0.0, %v2806
        %v2808 = vpop.f32.mrb[0].mxu0
        %v2809 = vadd.f32 0.0, %v2808
        %v2810 = vpop.f32.mrb[0].mxu0
        %v2811 = vadd.f32 0.0, %v2810
        %v2812 = vpop.f32.mrb[0].mxu0
        %v2813 = vadd.f32 0.0, %v2812
        %2814 = vdwg.mxu0
        %2815 = vmatprep.subr.bf16.mxu0 0
        %2816 = vmatpush1.bf16.msra.mxu0 %v2643
        %2817 = vmatprep.subr.bf16.mxu0 0
        %2818 = vmatpush1.bf16.msra.mxu0 %v2646
        %2819 = vmatprep.subr.bf16.mxu0 0
        %2820 = vmatpush1.bf16.msra.mxu0 %v2649
        %2821 = vmatprep.subr.bf16.mxu0 0
        %2822 = vmatpush1.bf16.msra.mxu0 %v2652
        %2823 = vmatprep.subr.bf16.mxu0 0
        %2824 = vmatpush1.bf16.msra.mxu0 %v2655
        %2825 = vmatprep.subr.bf16.mxu0 0
        %2826 = vmatpush1.bf16.msra.mxu0 %v2658
        %2827 = vmatprep.subr.bf16.mxu0 0
        %2828 = vmatpush1.bf16.msra.mxu0 0
        %2829 = vmatprep.subr.bf16.mxu0 0
        %2830 = vmatpush1.bf16.msra.mxu0 0
        %2831 = vmatprep.subr.bf16.mxu0 0
        %2832 = vmatpush1.bf16.msra.mxu0 0
        %2833 = vmatprep.subr.bf16.mxu0 0
        %2834 = vmatpush1.bf16.msra.mxu0 0
        %2835 = vmatprep.subr.bf16.mxu0 0
        %2836 = vmatpush1.bf16.msra.mxu0 0
        %2837 = vmatprep.subr.bf16.mxu0 0
        %2838 = vmatpush1.bf16.msra.mxu0 0
        %2839 = vmatprep.subr.bf16.mxu0 0
        %2840 = vmatpush1.bf16.msra.mxu0 0
        %2841 = vmatprep.subr.bf16.mxu0 0
        %2842 = vmatpush1.bf16.msra.mxu0 0
        %2843 = vmatprep.subr.bf16.mxu0 0
        %2844 = vmatpush1.bf16.msra.mxu0 0
        %2845 = vmatprep.subr.bf16.mxu0 0
        %2846 = vmatpush1.bf16.msra.mxu0 0
        %2847 = vmatprep.mubr.bf16.mxu0 0
        %2848 = vmatmul.mubr.bf16.gmra.mrb[0].mxu0 %v2679
        %v2849 = vpop.f32.mrb[0].mxu0
        %v2850 = vadd.f32 0.0, %v2849
        %v2851 = vpop.f32.mrb[0].mxu0
        %v2852 = vpop.f32.mrb[0].mxu0
        %v2853 = vadd.f32 0.0, %v2852
        %v2854 = vpop.f32.mrb[0].mxu0
        %2855 = vmatprep.mubr.bf16.mxu0 0
        %2856 = vmatmul.mubr.bf16.gmra.mrb[0].mxu0 %v2682
        %v2857 = vpop.f32.mrb[0].mxu0
        %v2858 = vadd.f32 0.0, %v2857
        %v2859 = vpop.f32.mrb[0].mxu0
        %v2860 = vpop.f32.mrb[0].mxu0
        %v2861 = vadd.f32 0.0, %v2860
        %v2862 = vpop.f32.mrb[0].mxu0
        %2863 = vmatprep.mubr.bf16.mxu0 0
        %2864 = vmatmul.mubr.bf16.gmra.mrb[0].mxu0 %v2685
        %v2865 = vpop.f32.mrb[0].mxu0
        %v2866 = vadd.f32 0.0, %v2865
        %v2867 = vpop.f32.mrb[0].mxu0
        %v2868 = vpop.f32.mrb[0].mxu0
        %v2869 = vadd.f32 0.0, %v2868
        %v2870 = vpop.f32.mrb[0].mxu0
        %2871 = vmatprep.mubr.bf16.mxu0 0
        %2872 = vmatmul.mubr.bf16.gmra.mrb[0].mxu0 %v2688
        %v2873 = vpop.f32.mrb[0].mxu0
        %v2874 = vadd.f32 0.0, %v2873
        %v2875 = vpop.f32.mrb[0].mxu0
        %v2876 = vpop.f32.mrb[0].mxu0
        %v2877 = vadd.f32 0.0, %v2876
        %v2878 = vpop.f32.mrb[0].mxu0
        %2879 = vmatprep.mubr.bf16.mxu0 0
        %2880 = vmatmul.mubr.bf16.gmra.mrb[0].mxu0 %v2691
        %v2881 = vpop.f32.mrb[0].mxu0
        %v2882 = vadd.f32 0.0, %v2881
        %v2883 = vpop.f32.mrb[0].mxu0
        %v2884 = vpop.f32.mrb[0].mxu0
        %v2885 = vadd.f32 0.0, %v2884
        %v2886 = vpop.f32.mrb[0].mxu0
        %2887 = vmatprep.mubr.bf16.mxu0 0
        %2888 = vmatmul.mubr.bf16.gmra.mrb[0].mxu0 %v2694
        %v2889 = vpop.f32.mrb[0].mxu0
        %v2890 = vadd.f32 0.0, %v2889
        %v2891 = vpop.f32.mrb[0].mxu0
        %v2892 = vpop.f32.mrb[0].mxu0
        %v2893 = vadd.f32 0.0, %v2892
        %v2894 = vpop.f32.mrb[0].mxu0
        %2895 = vmatprep.mubr.bf16.mxu0 0
        %2896 = vmatmul.mubr.bf16.gmra.mrb[0].mxu0 %v2697
        %v2897 = vpop.f32.mrb[0].mxu0
        %v2898 = vadd.f32 0.0, %v2897
        %v2899 = vpop.f32.mrb[0].mxu0
        %v2900 = vpop.f32.mrb[0].mxu0
        %v2901 = vadd.f32 0.0, %v2900
        %v2902 = vpop.f32.mrb[0].mxu0
        %2903 = vmatprep.mubr.bf16.mxu0 0
        %2904 = vmatmul.mubr.bf16.gmra.mrb[0].mxu0 %v2700
        %v2905 = vpop.f32.mrb[0].mxu0
        %v2906 = vadd.f32 0.0, %v2905
        %v2907 = vpop.f32.mrb[0].mxu0
        %v2908 = vpop.f32.mrb[0].mxu0
        %v2909 = vadd.f32 0.0, %v2908
        %v2910 = vpop.f32.mrb[0].mxu0
        %2911 = vdwg.mxu0
        %v2912 = vpack.c.bf16 %v2741, %v2737
        %v2913 = vpack.c.bf16 %v2743, %v2739
        %v2914 = vpack.c.bf16 %v2853, %v2850
        %v2915 = vpack.c.bf16 %v2751, %v2747
        %v2916 = vpack.c.bf16 %v2753, %v2749
        %v2917 = vpack.c.bf16 %v2861, %v2858
        %v2918 = vpack.c.bf16 %v2761, %v2757
        %v2919 = vpack.c.bf16 %v2763, %v2759
        %v2920 = vpack.c.bf16 %v2869, %v2866
        %v2921 = vpack.c.bf16 %v2771, %v2767
        %v2922 = vpack.c.bf16 %v2773, %v2769
        %v2923 = vpack.c.bf16 %v2877, %v2874
        %v2924 = vpack.c.bf16 %v2781, %v2777
        %v2925 = vpack.c.bf16 %v2783, %v2779
        %v2926 = vpack.c.bf16 %v2885, %v2882
        %v2927 = vpack.c.bf16 %v2791, %v2787
        %v2928 = vpack.c.bf16 %v2793, %v2789
        %v2929 = vpack.c.bf16 %v2893, %v2890
        %v2930 = vpack.c.bf16 %v2801, %v2797
        %v2931 = vpack.c.bf16 %v2803, %v2799
        %v2932 = vpack.c.bf16 %v2901, %v2898
        %v2933 = vpack.c.bf16 %v2811, %v2807
        %v2934 = vpack.c.bf16 %v2813, %v2809
        %v2935 = vpack.c.bf16 %v2909, %v2906
        %v2960 = vunpack.c.l.b16 %v2912
        %v2961 = vunpack.c.l.b16 %v2913
        %v2962 = vunpack.c.l.b16 %v2914
        %v2963 = vunpack.c.h.b16 %v2912
        %v2964 = vunpack.c.h.b16 %v2913
        %v2965 = vunpack.c.h.b16 %v2914
        %v2966 = vunpack.c.l.b16 %v2915
        %v2967 = vunpack.c.l.b16 %v2916
        %v2968 = vunpack.c.l.b16 %v2917
        %v2969 = vunpack.c.h.b16 %v2915
        %v2970 = vunpack.c.h.b16 %v2916
        %v2971 = vunpack.c.h.b16 %v2917
        %v2972 = vunpack.c.l.b16 %v2918
        %v2973 = vunpack.c.l.b16 %v2919
        %v2974 = vunpack.c.l.b16 %v2920
        %v2975 = vunpack.c.h.b16 %v2918
        %v2976 = vunpack.c.h.b16 %v2919
        %v2977 = vunpack.c.h.b16 %v2920
        %v2978 = vunpack.c.l.b16 %v2921
        %v2979 = vunpack.c.l.b16 %v2922
        %v2980 = vunpack.c.l.b16 %v2923
        %v2981 = vunpack.c.h.b16 %v2921
        %v2982 = vunpack.c.h.b16 %v2922
        %v2983 = vunpack.c.h.b16 %v2923
        %v2984 = vunpack.c.l.b16 %v2924
        %v2985 = vunpack.c.l.b16 %v2925
        %v2986 = vunpack.c.l.b16 %v2926
        %v2987 = vunpack.c.h.b16 %v2924
        %v2988 = vunpack.c.h.b16 %v2925
        %v2989 = vunpack.c.h.b16 %v2926
        %v2990 = vunpack.c.l.b16 %v2927
        %v2991 = vunpack.c.l.b16 %v2928
        %v2992 = vunpack.c.l.b16 %v2929
        %v2993 = vunpack.c.h.b16 %v2927
        %v2994 = vunpack.c.h.b16 %v2928
        %v2995 = vunpack.c.h.b16 %v2929
        %v2996 = vunpack.c.l.b16 %v2930
        %v2997 = vunpack.c.l.b16 %v2931
        %v2998 = vunpack.c.l.b16 %v2932
        %v2999 = vunpack.c.h.b16 %v2930
        %v3000 = vunpack.c.h.b16 %v2931
        %v3001 = vunpack.c.h.b16 %v2932
        %v3002 = vunpack.c.l.b16 %v2933
        %v3003 = vunpack.c.l.b16 %v2934
        %v3004 = vunpack.c.l.b16 %v2935
        %v3005 = vunpack.c.h.b16 %v2933
        %v3006 = vunpack.c.h.b16 %v2934
        %v3007 = vunpack.c.h.b16 %v2935
        %v3008 = vpack.c.b16 %v2961, %v2960
        %v3009 = vpack.c.b16 %v2962, %v2962
        %v3010 = vpack.c.b16 %v2964, %v2963
        %v3011 = vpack.c.b16 %v2965, %v2965
        %v3012 = vpack.c.b16 %v2967, %v2966
        %v3013 = vpack.c.b16 %v2968, %v2968
        %v3014 = vpack.c.b16 %v2970, %v2969
        %v3015 = vpack.c.b16 %v2971, %v2971
        %v3016 = vpack.c.b16 %v2973, %v2972
        %v3017 = vpack.c.b16 %v2974, %v2974
        %v3018 = vpack.c.b16 %v2976, %v2975
        %v3019 = vpack.c.b16 %v2977, %v2977
        %v3020 = vpack.c.b16 %v2979, %v2978
        %v3021 = vpack.c.b16 %v2980, %v2980
        %v3022 = vpack.c.b16 %v2982, %v2981
        %v3023 = vpack.c.b16 %v2983, %v2983
        %v3024 = vpack.c.b16 %v2985, %v2984
        %v3025 = vpack.c.b16 %v2986, %v2986
        %v3026 = vpack.c.b16 %v2988, %v2987
        %v3027 = vpack.c.b16 %v2989, %v2989
        %v3028 = vpack.c.b16 %v2991, %v2990
        %v3029 = vpack.c.b16 %v2992, %v2992
        %v3030 = vpack.c.b16 %v2994, %v2993
        %v3031 = vpack.c.b16 %v2995, %v2995
        %v3032 = vpack.c.b16 %v2997, %v2996
        %v3033 = vpack.c.b16 %v2998, %v2998
        %v3034 = vpack.c.b16 %v3000, %v2999
        %v3035 = vpack.c.b16 %v3001, %v3001
        %v3036 = vpack.c.b16 %v3003, %v3002
        %v3037 = vpack.c.b16 %v3004, %v3004
        %v3038 = vpack.c.b16 %v3006, %v3005
        %v3039 = vpack.c.b16 %v3007, %v3007
        %3072 = vst [vmem:[%s553] sm:$0xff] %v3008
        %3073 = vst [vmem:[%s553 + $0x8] sm:$0xf] %v3009
        %3074 = vst [vmem:[%s553 + $0xc] sm:$0xff] %v3010
        %3075 = vst [vmem:[%s553 + $0x14] sm:$0xf] %v3011
        %3076 = vst [vmem:[%s553 + $0x18] sm:$0xff] %v3012
        %3077 = vst [vmem:[%s553 + $0x20] sm:$0xf] %v3013
        %3078 = vst [vmem:[%s553 + $0x24] sm:$0xff] %v3014
        %3079 = vst [vmem:[%s553 + $0x2c] sm:$0xf] %v3015
        %3080 = vst [vmem:[%s553 + $0x30] sm:$0xff] %v3016
        %3081 = vst [vmem:[%s553 + $0x38] sm:$0xf] %v3017
        %3082 = vst [vmem:[%s553 + $0x3c] sm:$0xff] %v3018
        %3083 = vst [vmem:[%s553 + $0x44] sm:$0xf] %v3019
        %3084 = vst [vmem:[%s553 + $0x48] sm:$0xff] %v3020
        %3085 = vst [vmem:[%s553 + $0x50] sm:$0xf] %v3021
        %3086 = vst [vmem:[%s553 + $0x54] sm:$0xff] %v3022
        %3087 = vst [vmem:[%s553 + $0x5c] sm:$0xf] %v3023
        %3088 = vst [vmem:[%s553 + $0x60] sm:$0xff] %v3024
        %3089 = vst [vmem:[%s553 + $0x68] sm:$0xf] %v3025
        %3090 = vst [vmem:[%s553 + $0x6c] sm:$0xff] %v3026
        %3091 = vst [vmem:[%s553 + $0x74] sm:$0xf] %v3027
        %3092 = vst [vmem:[%s553 + $0x78] sm:$0xff] %v3028
        %3093 = vst [vmem:[%s553 + $0x80] sm:$0xf] %v3029
        %3094 = vst [vmem:[%s553 + $0x84] sm:$0xff] %v3030
        %3095 = vst [vmem:[%s553 + $0x8c] sm:$0xf] %v3031
        %3096 = vst [vmem:[%s553 + $0x90] sm:$0xff] %v3032
        %3097 = vst [vmem:[%s553 + $0x98] sm:$0xf] %v3033
        %3098 = vst [vmem:[%s553 + $0x9c] sm:$0xff] %v3034
        %3099 = vst [vmem:[%s553 + $0xa4] sm:$0xf] %v3035
        %3100 = vst [vmem:[%s553 + $0xa8] sm:$0xff] %v3036
        %3101 = vst [vmem:[%s553 + $0xb0] sm:$0xf] %v3037
        %3102 = vst [vmem:[%s553 + $0xb4] sm:$0xff] %v3038
        %3103 = vst [vmem:[%s553 + $0xbc] sm:$0xf] %v3039
        %s3104 = sand.u32 %s299, 1
        %s3105 = scalar_lea.sflag [#allocation4], %s3104
        %s3106 = sand.u32 %s299, 1
        %s3107 = smul.addr %s3106, 192
        %s3108 = scalar_lea.vmem [#allocation19], %s3107
        // Predicated region
        $region109: #{tpu_custom_call.1} parent=67 // pred_check
          %p3109 = pneg %p309
        $region110: #{tpu_custom_call.1} parent=67 // pred_check_branch
          %3111 = sbr.rel (%p3109) target = $region112
        $region111: #{tpu_custom_call.1} parent=67 // pred_region
          %s3112 = smul.u32 16, %s34
          %s3114 = ssub.s32 3072, 3072
          %3115 = vsyncadd %s3105, %s3114
          %s3116 = smul.addr %s3112, 3
          %s3117 = smul.addr %s3116, 64
          %s3118 = scalar_lea.hbm %s12, %s3117
          %s3119 = sshll.u32 %s3108, 4
          %s3120 = int_to_ptr.vmem [resolvable:$true] %s3119
          %3125 = dma.vmem_to_hbm [thread:$0]  %s3120, 3072, %s3118, %s3105, 192, 192, 12
        $region112: #{tpu_custom_call.1} parent=67 // pred_fallthru
          _
      $region68: #{tpu_custom_call.1} parent=5 // pred_fallthru
        _
      %p3126 = scmp.le.s32.totalorder 2, %s29
      // Predicated region
      $region113: #{tpu_custom_call.1} parent=5 // pred_check
        %p3127 = pneg %p3126
      $region114: #{tpu_custom_call.1} parent=5 // pred_check_branch
        %3129 = sbr.rel (%p3127) target = $region116
      $region115: #{tpu_custom_call.1} parent=5 // pred_region
        %s3130 = ssub.s32 %s29, 2
        // Predicated region
        $region117: #{tpu_custom_call.1} parent=115 // pred_check
          %p3131 = pneg %p315
        $region118: #{tpu_custom_call.1} parent=115 // pred_check_branch
          %3133 = sbr.rel (%p3131) target = $region120
        $region119: #{tpu_custom_call.1} parent=115 // pred_region
          %s3134 = sand.u32 %s300, 1
          %s3135 = scalar_lea.sflag [#allocation4], %s3134
          %s3136 = sand.u32 %s300, 1
          %s3137 = smul.addr %s3136, 192
          %s3138 = scalar_lea.vmem [#allocation19], %s3137
          %3139 = dma.done %s3135, 3072
        $region120: #{tpu_custom_call.1} parent=115 // pred_fallthru
          _
      $region116: #{tpu_custom_call.1} parent=5 // pred_fallthru
        _
    $region6: #{tpu_custom_call.1} parent=1 // loop_footer
      %s33 = sadd.s32 1, %s29
    $region7: #{tpu_custom_call.1} parent=1 // loop_footer_branch
      %28 = sbr.rel target = $region3
    $region8: #{tpu_custom_call.1} parent=1 // loop_exit
      _
    %3140 = vsyncpa [#allocation3], 1
    %s3141 = scalar_lea.sflag [#allocation3], 1
    %3142 = vsyncpa %s3141, 1
    %3143 = vsyncpa [#allocation6], 1
    %3144 = vsyncpa [#allocation9], 1
    %3145 = vsyncpa [#allocation12], 1
    %3146 = vsyncpa [#allocation15], 1
    %3147 = vsyncpa [#allocation18], 1
    %3148 = vsyncpa [#allocation4], 1
    %s3149 = scalar_lea.sflag [#allocation4], 1
    %3150 = vsyncpa %s3149, 1

</llo_original>
